<compile_context>
chip_gen: v7x
topology: tpu7x:2x2x1
jax: 0.10.0
libtpu: 0.0.40
codegen_flags: <defaults>
</compile_context>

<pallas_src>
import functools

import jax
import jax.numpy as jnp
from jax.experimental import pallas as pl
from jax.experimental.pallas import tpu as pltpu

_BN_EPS = 1e-5
_LANE = 128

_COMPILER_PARAMS = pltpu.CompilerParams(
    dimension_semantics=("parallel",),       # batch axis -> megacore split on v7x
    vmem_limit_bytes=32 * 1024 * 1024,       # safe scoped-VMEM budget on v5e/v6e/v7x
)


def _round_up(x, m):
    return (x + m - 1) // m * m


def _pick_row_tile(ho, wo, cout):
    """Largest row-tile th dividing ho with th*wo*cout f32 <= ~32 vregs."""
    target_m = max(64, 32768 // max(cout, 1))
    best = 1
    for th in range(1, ho + 1):
        if ho % th == 0 and th * wo <= target_m:
            best = th
    return best


def _pick_batch_tile(n, bytes_per_image, target=1 << 20):
    """Largest batch tile (divisor of n) with ~<=1MB per-array blocks."""
    best = 1
    for bt in range(1, n + 1):
        if n % bt == 0 and bt * bytes_per_image <= target:
            best = bt
    return best


# ---------------------------------------------------------------------------
# Pallas kernels
# ---------------------------------------------------------------------------
def _conv3x3_s1_kernel(x_ref, sc_ref, sh_ref, w_ref, y_ref, s_ref, acol_ref,
                       *, ho, wo, th, apply_act):
    """3x3 stride-1 conv (pad 1) with optional fused input affine+ReLU (bn1).

    Input rows go into a width-packed VMEM scratch
        acol[h, j, kx*Cin + c] = padded_act[h, j + kx, c],
    so the 9-tap conv becomes 3 dots with contraction K = 3*Cin, each reading
    a contiguous, unshifted row window of acol.  Emits raw conv output (bf16)
    plus per-image (sum, sum_sq) BN partial stats.
    """
    cin = x_ref.shape[-1]
    cout = w_ref.shape[-1]
    n_tiles = ho // th
    mt = th * wo

    # Halo regions of acol stay zero; re-zero only them each step (cheap,
    # O(rows + cols) vectors) so correctness never depends on program_id==0
    # initialization (megacore-safe).
    zrow = jnp.zeros((1, wo, 3 * cin), acol_ref.dtype)
    acol_ref[pl.ds(0, 1), :, :] = zrow
    acol_ref[pl.ds(ho + 1, 1), :, :] = zrow
    zcol = jnp.zeros((ho, 1, cin), acol_ref.dtype)
    acol_ref[pl.ds(1, ho), pl.ds(0, 1), pl.ds(0, cin)] = zcol
    acol_ref[pl.ds(1, ho), pl.ds(wo - 1, 1), pl.ds(2 * cin, cin)] = zcol

    if apply_act:
        scale = sc_ref[...].reshape(1, 1, cin)
        shift = sh_ref[...].reshape(1, 1, cin)

    def build_body(t, carry):
        r0 = pl.multiple_of(t * th, th)
        xt = x_ref[0, pl.ds(r0, th), :, :]
        if apply_act:
            at = jnp.maximum(xt.astype(jnp.float32) * scale + shift,
                             0.0).astype(acol_ref.dtype)
        else:
            at = xt.astype(acol_ref.dtype)
        # kx = 0 / 1 / 2 tap slabs (lane offsets 0, Cin, 2*Cin are 128-aligned).
        acol_ref[pl.ds(1 + r0, th), pl.ds(1, wo - 1), pl.ds(0, cin)] = at[:, :wo - 1, :]
        acol_ref[pl.ds(1 + r0, th), pl.ds(0, wo), pl.ds(cin, cin)] = at
        acol_ref[pl.ds(1 + r0, th), pl.ds(0, wo - 1), pl.ds(2 * cin, cin)] = at[:, 1:, :]
        return carry

    jax.lax.fori_loop(0, n_tiles, build_body, jnp.int32(0))

    def conv_body(t, stats):
        r0 = pl.multiple_of(t * th, th)
        acc = None
        for ky in range(3):                                   # 3 dots, K = 3*Cin
            blk = acol_ref[pl.ds(r0 + ky, th), :, :]
            d = jnp.dot(blk.reshape(mt, 3 * cin), w_ref[ky],
                        preferred_element_type=jnp.float32)
            acc = d if acc is None else acc + d
        y_ref[0, pl.ds(r0, th), :, :] = acc.reshape(th, wo, cout).astype(y_ref.dtype)
        return stats + jnp.concatenate(
            [jnp.sum(acc, axis=0, keepdims=True),
             jnp.sum(acc * acc, axis=0, keepdims=True)], axis=0)

    stats = jax.lax.fori_loop(0, n_tiles, conv_body,
                              jnp.zeros((2, cout), jnp.float32))
    s_ref[0] = stats


def _conv1_strided_kernel(*refs, stride, ho, wo, th, has_sc):
    """conv1 (3x3, stride s, pad 1) [+ fused 1x1 projection shortcut].

    Input is the phase-split padded image (space-to-depth on the stride), so
    every tap read is a contiguous window.  Output rows are produced in small
    row tiles so the live f32 accumulator stays bounded (<= ~32 vregs).
    """
    if has_sc:
        x_ref, w_ref, wsc_ref, y_ref, s_ref, ysc_ref, ssc_ref = refs
    else:
        x_ref, w_ref, y_ref, s_ref = refs
    cin = x_ref.shape[-1]
    cout = w_ref.shape[-1]
    n_tiles = ho // th
    mt = th * wo

    def tile_body(t, carry):
        r0 = pl.multiple_of(t * th, th)
        acc = None
        for ky in range(3):
            for kx in range(3):
                ph = (ky % stride) * stride + (kx % stride)
                sub = x_ref[0, ph, pl.ds(ky // stride + r0, th),
                            pl.ds(kx // stride, wo), :]
                d = jnp.dot(sub.reshape(mt, cin), w_ref[ky * 3 + kx],
                            preferred_element_type=jnp.float32)
                acc = d if acc is None else acc + d
        y_ref[0, pl.ds(r0, th), :, :] = acc.reshape(th, wo, cout).astype(y_ref.dtype)
        new = jnp.concatenate(
            [jnp.sum(acc, axis=0, keepdims=True),
             jnp.sum(acc * acc, axis=0, keepdims=True)], axis=0)
        if not has_sc:
            return (carry[0] + new,)
        # 1x1/stride-s projection reads padded-x position (s*i + 1, s*j + 1).
        ph = (1 % stride) * stride + (1 % stride)
        ctr = x_ref[0, ph, pl.ds(1 // stride + r0, th), pl.ds(1 // stride, wo), :]
        sacc = jnp.dot(ctr.reshape(mt, cin), wsc_ref[...],
                       preferred_element_type=jnp.float32)
        ysc_ref[0, pl.ds(r0, th), :, :] = sacc.reshape(th, wo, cout).astype(ysc_ref.dtype)
        new_sc = jnp.concatenate(
            [jnp.sum(sacc, axis=0, keepdims=True),
             jnp.sum(sacc * sacc, axis=0, keepdims=True)], axis=0)
        return (carry[0] + new, carry[1] + new_sc)

    init = tuple(jnp.zeros((2, cout), jnp.float32)
                 for _ in range(2 if has_sc else 1))
    stats = jax.lax.fori_loop(0, n_tiles, tile_body, init)
    s_ref[0] = stats[0]
    if has_sc:
        ssc_ref[0] = stats[1]


def _bn_add_relu_kernel(y2_ref, r_ref, s2_ref, h2_ref, sr_ref, hr_ref, o_ref):
    """out = relu( bn2(y2) + (bn_sc(y_sc) or identity residual) ), pass 2."""
    cp = y2_ref.shape[-1]
    s2 = s2_ref[...].reshape(1, 1, 1, cp)
    h2 = h2_ref[...].reshape(1, 1, 1, cp)
    sr = sr_ref[...].reshape(1, 1, 1, cp)
    hr = hr_ref[...].reshape(1, 1, 1, cp)
    y = y2_ref[...].astype(jnp.float32) * s2 + h2
    r = r_ref[...].astype(jnp.float32) * sr + hr
    o_ref[...] = jnp.maximum(y + r, 0.0).astype(o_ref.dtype)


# ---------------------------------------------------------------------------
# pallas_call wrappers
# ---------------------------------------------------------------------------
def _conv3x3_s1_call(x, scale, shift, w_packed, *, apply_act):
    n, ho, wo, cin = x.shape
    cout = w_packed.shape[-1]
    th = _pick_row_tile(ho, wo, cout)
    kern = functools.partial(_conv3x3_s1_kernel, ho=ho, wo=wo, th=th,
                             apply_act=apply_act)
    return pl.pallas_call(
        kern,
        grid=(n,),
        in_specs=[
            pl.BlockSpec((1, ho, wo, cin), lambda i: (i, 0, 0, 0)),
            pl.BlockSpec((1, cin), lambda i: (0, 0)),
            pl.BlockSpec((1, cin), lambda i: (0, 0)),
            pl.BlockSpec((3, 3 * cin, cout), lambda i: (0, 0, 0)),
        ],
        out_specs=(pl.BlockSpec((1, ho, wo, cout), lambda i: (i, 0, 0, 0)),
                   pl.BlockSpec((1, 2, cout), lambda i: (i, 0, 0))),
        out_shape=(jax.ShapeDtypeStruct((n, ho, wo, cout), jnp.bfloat16),
                   jax.ShapeDtypeStruct((n, 2, cout), jnp.float32)),
        scratch_shapes=[pltpu.VMEM((ho + 2, wo, 3 * cin), jnp.bfloat16)],
        compiler_params=_COMPILER_PARAMS,
    )(x, scale, shift, w_packed)


def _conv1_strided_call(xph, w, wsc, *, stride, ho, wo):
    n, nphase, hq, wq, cin = xph.shape
    cout = w.shape[-1]
    has_sc = wsc is not None
    th = _pick_row_tile(ho, wo, cout)
    kern = functools.partial(_conv1_strided_kernel, stride=stride, ho=ho, wo=wo,
                             th=th, has_sc=has_sc)

    in_specs = [
        pl.BlockSpec((1, nphase, hq, wq, cin), lambda i: (i, 0, 0, 0, 0)),
        pl.BlockSpec((9, cin, cout), lambda i: (0, 0, 0)),
    ]
    args = [xph, w]
    out_shape = [jax.ShapeDtypeStruct((n, ho, wo, cout), jnp.bfloat16),
                 jax.ShapeDtypeStruct((n, 2, cout), jnp.float32)]
    out_specs = [pl.BlockSpec((1, ho, wo, cout), lambda i: (i, 0, 0, 0)),
                 pl.BlockSpec((1, 2, cout), lambda i: (i, 0, 0))]
    if has_sc:
        in_specs.append(pl.BlockSpec((cin, cout), lambda i: (0, 0)))
        args.append(wsc)
        out_shape += [jax.ShapeDtypeStruct((n, ho, wo, cout), jnp.bfloat16),
                      jax.ShapeDtypeStruct((n, 2, cout), jnp.float32)]
        out_specs += [pl.BlockSpec((1, ho, wo, cout), lambda i: (i, 0, 0, 0)),
                      pl.BlockSpec((1, 2, cout), lambda i: (i, 0, 0))]

    return pl.pallas_call(
        kern,
        grid=(n,),
        in_specs=in_specs,
        out_specs=tuple(out_specs),
        out_shape=tuple(out_shape),
        compiler_params=_COMPILER_PARAMS,
    )(*args)


def _bn_add_relu_call(y2, res, scale2, shift2, scale_r, shift_r):
    n, ho, wo, cp = y2.shape
    bt = _pick_batch_tile(n, ho * wo * cp * 2)
    return pl.pallas_call(
        _bn_add_relu_kernel,
        grid=(n // bt,),
        in_specs=[
            pl.BlockSpec((bt, ho, wo, cp), lambda i: (i, 0, 0, 0)),
            pl.BlockSpec((bt, ho, wo, cp), lambda i: (i, 0, 0, 0)),
            pl.BlockSpec((1, cp), lambda i: (0, 0)),
            pl.BlockSpec((1, cp), lambda i: (0, 0)),
            pl.BlockSpec((1, cp), lambda i: (0, 0)),
            pl.BlockSpec((1, cp), lambda i: (0, 0)),
        ],
        out_specs=pl.BlockSpec((bt, ho, wo, cp), lambda i: (i, 0, 0, 0)),
        out_shape=jax.ShapeDtypeStruct((n, ho, wo, cp), jnp.bfloat16),
        compiler_params=_COMPILER_PARAMS,
    )(y2, res, scale2, shift2, scale_r, shift_r)


# ---------------------------------------------------------------------------
# JAX glue: layout plumbing and the tiny BN-stat reductions
# ---------------------------------------------------------------------------
def _phase_split(x_nhwc, *, pad, stride, ksize):
    """Traffic-neutral space-to-depth so strided conv taps become contiguous."""
    n, h, w, c = x_nhwc.shape
    ho = (h + 2 * pad - ksize) // stride + 1
    wo = (w + 2 * pad - ksize) // stride + 1
    hq = ho + (ksize - 1) // stride
    wq = wo + (ksize - 1) // stride
    xp = jnp.pad(x_nhwc, ((0, 0),
                          (pad, stride * hq - h - pad),
                          (pad, stride * wq - w - pad),
                          (0, 0)))
    xph = xp.reshape(n, hq, stride, wq, stride, c)
    xph = jnp.transpose(xph, (0, 2, 4, 1, 3, 5)).reshape(n, stride * stride, hq, wq, c)
    return xph, ho, wo


def _prep_weight_taps(w_oihw, cin_pad, cout_pad):
    """(Cout, Cin, Kh, Kw) -> (Kh*Kw, Cin_p, Cout_p) bf16 (one slab per tap)."""
    cout, cin, kh, kw = w_oihw.shape
    w = jnp.transpose(w_oihw, (2, 3, 1, 0)).reshape(kh * kw, cin, cout)
    w = jnp.pad(w, ((0, 0), (0, cin_pad - cin), (0, cout_pad - cout)))
    return w.astype(jnp.bfloat16)


def _prep_weight_packed(w_oihw, cin_pad, cout_pad):
    """(Cout, Cin, Kh, Kw) -> (Kh, Kw*Cin_p, Cout_p) bf16 (kx taps packed on K)."""
    cout, cin, kh, kw = w_oihw.shape
    w = jnp.transpose(w_oihw, (2, 3, 1, 0))                      # (kh, kw, cin, cout)
    w = jnp.pad(w, ((0, 0), (0, 0), (0, cin_pad - cin), (0, cout_pad - cout)))
    return w.reshape(kh, kw * cin_pad, cout_pad).astype(jnp.bfloat16)


def _stats_to_affine(stats, gamma, beta, count, cout_pad):
    """(N, 2, Cp) per-image partial sums -> folded BN (scale, shift) of (1, Cp)."""
    ssum = jnp.sum(stats[:, 0, :], axis=0)
    ssq = jnp.sum(stats[:, 1, :], axis=0)
    mean = ssum / count
    var = jnp.maximum(ssq / count - mean * mean, 0.0)   # one-pass variance (f32)
    g = jnp.pad(gamma.reshape(-1).astype(jnp.float32), (0, cout_pad - gamma.size))
    b = jnp.pad(beta.reshape(-1).astype(jnp.float32), (0, cout_pad - beta.size))
    scale = g * jax.lax.rsqrt(var + _BN_EPS)
    shift = b - mean * scale
    return scale.reshape(1, -1), shift.reshape(1, -1)


@functools.partial(jax.jit, static_argnums=(2,))
def basic_block_forward(x_nchw, params, stride):
    """Forward pass equivalent to the PyTorch BasicBlock (training-mode BN)."""
    x = jnp.transpose(x_nchw, (0, 2, 3, 1)).astype(jnp.float32)   # NHWC
    n, h, w, cin = x.shape
    planes = params["conv1_w"].shape[0]
    cin_p = _round_up(cin, _LANE)
    cout_p = _round_up(planes, _LANE)

    # bf16 matmul operands, zero-padded channels (lane-dense, 128-multiple).
    x_p = jnp.pad(x, ((0, 0), (0, 0), (0, 0), (0, cin_p - cin))).astype(jnp.bfloat16)

    has_proj = (stride != 1) or (cin != planes)

    if has_proj:
        # Projection path: phase-split strided conv1 with fused 1x1 shortcut.
        xph, ho, wo = _phase_split(x_p, pad=1, stride=stride, ksize=3)
        w1 = _prep_weight_taps(params["conv1_w"], cin_p, cout_p)
        wsc = _prep_weight_taps(params["sc_w"], cin_p, cout_p)[0]   # (Cin_p, Cout_p)
        y1, s1, ysc, ssc = _conv1_strided_call(xph, w1, wsc,
                                               stride=stride, ho=ho, wo=wo)
    else:
        # Identity path (common case): no phase split, K-packed stride-1 conv.
        ho, wo = h, w
        w1 = _prep_weight_packed(params["conv1_w"], cin_p, cout_p)
        zeros = jnp.zeros((1, cin_p), jnp.float32)
        y1, s1 = _conv3x3_s1_call(x_p, zeros, zeros, w1, apply_act=False)

    count = n * ho * wo
    scale1, shift1 = _stats_to_affine(s1, params["bn1_g"], params["bn1_b"],
                                      count, cout_p)

    # conv2: bn1 + relu fused in VMEM, K-packed stride-1 conv.
    w2 = _prep_weight_packed(params["conv2_w"], cout_p, cout_p)
    y2, s2 = _conv3x3_s1_call(y1, scale1, shift1, w2, apply_act=True)
    scale2, shift2 = _stats_to_affine(s2, params["bn2_g"], params["bn2_b"],
                                      count, cout_p)

    if has_proj:
        scale_r, shift_r = _stats_to_affine(ssc, params["sc_g"], params["sc_b"],
                                            count, cout_p)
        res = ysc
    else:
        scale_r = jnp.ones((1, cout_p), jnp.float32)
        shift_r = jnp.zeros((1, cout_p), jnp.float32)
        res = x_p                         # identity shortcut (same layout as y2)

    out = _bn_add_relu_call(y2, res, scale2, shift2, scale_r, shift_r)   # bf16
    out = out[..., :planes]
    return jnp.transpose(out, (0, 3, 1, 2)).astype(jnp.float32)          # NCHW


# ---------------------------------------------------------------------------
# Pure-JAX reference (correctness check only; matches the kernel's bf16 operands)
# ---------------------------------------------------------------------------
def _ref_forward(x, params, stride):
    bf = lambda a: a.astype(jnp.bfloat16).astype(jnp.float32)

    def conv(x_, w_, s, pad):
        return jax.lax.conv_general_dilated(
            bf(x_), bf(w_), (s, s), [(pad, pad), (pad, pad)],
            dimension_numbers=("NCHW", "OIHW", "NCHW"))

    def bn(y, g, b):
        mean = jnp.mean(y, axis=(0, 2, 3), keepdims=True)
        var = jnp.mean(jnp.square(y - mean), axis=(0, 2, 3), keepdims=True)
        return ((y - mean) * jax.lax.rsqrt(var + _BN_EPS)
                * g.reshape(1, -1, 1, 1) + b.reshape(1, -1, 1, 1))

    out = jax.nn.relu(bn(conv(x, params["conv1_w"], stride, 1),
                         params["bn1_g"], params["bn1_b"]))
    out = bn(conv(out, params["conv2_w"], 1, 1),
             params["bn2_g"], params["bn2_b"])
    cin, planes = x.shape[1], params["conv1_w"].shape[0]
    if stride != 1 or cin != planes:
        sc = bn(conv(x, params["sc_w"], stride, 0),
                params["sc_g"], params["sc_b"])
    else:
        sc = x
    return jax.nn.relu(out + sc)


# ---------------------------------------------------------------------------
if __name__ == "__main__":
    def make_params(key, in_planes, planes, with_proj):
        ks = jax.random.split(key, 9)
        p = {
            "conv1_w": 0.1 * jax.random.normal(ks[0], (planes, in_planes, 3, 3), jnp.float32),
            "bn1_g": 1.0 + 0.1 * jax.random.normal(ks[1], (1, planes), jnp.float32),
            "bn1_b": 0.1 * jax.random.normal(ks[2], (1, planes), jnp.float32),
            "conv2_w": 0.1 * jax.random.normal(ks[3], (planes, planes, 3, 3), jnp.float32),
            "bn2_g": 1.0 + 0.1 * jax.random.normal(ks[4], (1, planes), jnp.float32),
            "bn2_b": 0.1 * jax.random.normal(ks[5], (1, planes), jnp.float32),
        }
        if with_proj:
            p["sc_w"] = 0.1 * jax.random.normal(ks[6], (planes, in_planes, 1, 1), jnp.float32)
            p["sc_g"] = 1.0 + 0.1 * jax.random.normal(ks[7], (1, planes), jnp.float32)
            p["sc_b"] = 0.1 * jax.random.normal(ks[8], (1, planes), jnp.float32)
        return p

    # Tolerance reflects bf16 storage of conv intermediates / matmul operands
    # and the bf16 final output (f32 accumulation and BN math); wrong math
    # would be off by O(0.1-1).
    RTOL = ATOL = 4e-2

    key = jax.random.PRNGKey(0)
    k1, k2, k3, k4 = jax.random.split(key, 4)

    # Case 1: down-sampling block with a 1x1 projection shortcut (stride 2, 4 -> 8).
    x1 = jax.random.normal(k1, (2, 4, 16, 16), jnp.float32)
    p1 = make_params(k2, 4, 8, with_proj=True)
    out1 = jax.block_until_ready(basic_block_forward(x1, p1, 2))
    assert out1.shape == (2, 8, 8, 8), out1.shape
    ref1 = _ref_forward(x1, p1, 2)
    err1 = float(jnp.max(jnp.abs(out1 - ref1)))
    assert jnp.allclose(out1, ref1, rtol=RTOL, atol=ATOL), err1

    # Case 2: identity-shortcut block (stride 1, 8 -> 8).
    x2 = jax.random.normal(k3, (2, 8, 16, 16), jnp.float32)
    p2 = make_params(k4, 8, 8, with_proj=False)
    out2 = jax.block_until_ready(basic_block_forward(x2, p2, 1))
    assert out2.shape == (2, 8, 16, 16), out2.shape
    ref2 = _ref_forward(x2, p2, 1)
    err2 = float(jnp.max(jnp.abs(out2 - ref2)))
    assert jnp.allclose(out2, ref2, rtol=RTOL, atol=ATOL), err2

    print("KERNEL_OK")
</pallas_src>

<mosaic_0001>
module attributes {stable_mosaic.version = 11 : i64} {
  func.func @_conv1_strided_kernel(%arg0: i32, %arg1: memref<1x4x9x9x128xbf16, #tpu.memory_space<vmem>>, %arg2: memref<9x128x128xbf16, #tpu.memory_space<vmem>>, %arg3: memref<128x128xbf16, #tpu.memory_space<vmem>>, %arg4: memref<1x8x8x128xbf16, #tpu.memory_space<vmem>>, %arg5: memref<1x2x128xf32, #tpu.memory_space<vmem>>, %arg6: memref<1x8x8x128xbf16, #tpu.memory_space<vmem>>, %arg7: memref<1x2x128xf32, #tpu.memory_space<vmem>>) attributes {dimension_semantics = [#tpu.dimension_semantics<parallel>], iteration_bounds = array<i64: 2>, scalar_prefetch = 0 : i64, scratch_operands = 0 : i64, tpu.core_type = #tpu.core_type<tc>, window_params = [{transform_indices = @transform_0, window_bounds = array<i64: 1, 4, 9, 9, 128>}, {pipeline_mode = #tpu.pipeline_mode<synchronous>, transform_indices = @transform_1, window_bounds = array<i64: 9, 128, 128>}, {pipeline_mode = #tpu.pipeline_mode<synchronous>, transform_indices = @transform_2, window_bounds = array<i64: 128, 128>}, {transform_indices = @transform_3, window_bounds = array<i64: 1, 8, 8, 128>}, {transform_indices = @transform_4, window_bounds = array<i64: 1, 2, 128>}, {transform_indices = @transform_5, window_bounds = array<i64: 1, 8, 8, 128>}, {transform_indices = @transform_6, window_bounds = array<i64: 1, 2, 128>}]} {
    %cst = arith.constant 0.000000e+00 : f32
    %0 = vector.broadcast %cst : f32 to vector<2x128xf32>
    %cst_0 = arith.constant 0.000000e+00 : f32
    %1 = vector.broadcast %cst_0 : f32 to vector<2x128xf32>
    %c0_i32 = arith.constant 0 : i32
    %c8_i32 = arith.constant 8 : i32
    %2 = arith.muli %c0_i32, %c8_i32 : i32
    %3 = tpu.assume_multiple %2, 8 : i32
    %c0_i32_1 = arith.constant 0 : i32
    %4 = arith.addi %c0_i32_1, %3 : i32
    %c0 = arith.constant 0 : index
    %c0_2 = arith.constant 0 : index
    %5 = arith.index_cast %4 : i32 to index
    %c0_3 = arith.constant 0 : index
    %c0_4 = arith.constant 0 : index
    %6 = vector.load %arg1[%c0, %c0_2, %5, %c0_3, %c0_4] : memref<1x4x9x9x128xbf16, #tpu.memory_space<vmem>>, vector<1x1x8x8x128xbf16>
    %7 = vector.shape_cast %6 : vector<1x1x8x8x128xbf16> to vector<8x8x128xbf16>
    %8 = vector.shape_cast %7 : vector<8x8x128xbf16> to vector<64x128xbf16>
    %c0_5 = arith.constant 0 : index
    %c0_6 = arith.constant 0 : index
    %c0_7 = arith.constant 0 : index
    %9 = vector.load %arg2[%c0_5, %c0_6, %c0_7] : memref<9x128x128xbf16, #tpu.memory_space<vmem>>, vector<1x128x128xbf16>
    %10 = vector.shape_cast %9 : vector<1x128x128xbf16> to vector<128x128xbf16>
    %cst_8 = arith.constant dense<0.000000e+00> : vector<64x128xf32>
    %11 = tpu.matmul %8, %10, %cst_8 {dimension_numbers = #tpu.dot_dimension_numbers<[1], [0], [0], [1], [0, 0, 1, 1], [], []>} : vector<64x128xbf16>, vector<128x128xbf16>, vector<64x128xf32> -> vector<64x128xf32>
    %c0_i32_9 = arith.constant 0 : i32
    %12 = arith.addi %c0_i32_9, %3 : i32
    %c0_10 = arith.constant 0 : index
    %c1 = arith.constant 1 : index
    %13 = arith.index_cast %12 : i32 to index
    %c0_11 = arith.constant 0 : index
    %c0_12 = arith.constant 0 : index
    %14 = vector.load %arg1[%c0_10, %c1, %13, %c0_11, %c0_12] : memref<1x4x9x9x128xbf16, #tpu.memory_space<vmem>>, vector<1x1x8x8x128xbf16>
    %15 = vector.shape_cast %14 : vector<1x1x8x8x128xbf16> to vector<8x8x128xbf16>
    %16 = vector.shape_cast %15 : vector<8x8x128xbf16> to vector<64x128xbf16>
    %c1_13 = arith.constant 1 : index
    %c0_14 = arith.constant 0 : index
    %c0_15 = arith.constant 0 : index
    %17 = vector.load %arg2[%c1_13, %c0_14, %c0_15] : memref<9x128x128xbf16, #tpu.memory_space<vmem>>, vector<1x128x128xbf16>
    %18 = vector.shape_cast %17 : vector<1x128x128xbf16> to vector<128x128xbf16>
    %cst_16 = arith.constant dense<0.000000e+00> : vector<64x128xf32>
    %19 = tpu.matmul %16, %18, %cst_16 {dimension_numbers = #tpu.dot_dimension_numbers<[1], [0], [0], [1], [0, 0, 1, 1], [], []>} : vector<64x128xbf16>, vector<128x128xbf16>, vector<64x128xf32> -> vector<64x128xf32>
    %20 = arith.addf %11, %19 : vector<64x128xf32>
    %c0_i32_17 = arith.constant 0 : i32
    %21 = arith.addi %c0_i32_17, %3 : i32
    %c0_18 = arith.constant 0 : index
    %c0_19 = arith.constant 0 : index
    %22 = arith.index_cast %21 : i32 to index
    %c1_20 = arith.constant 1 : index
    %c0_21 = arith.constant 0 : index
    %23 = vector.load %arg1[%c0_18, %c0_19, %22, %c1_20, %c0_21] : memref<1x4x9x9x128xbf16, #tpu.memory_space<vmem>>, vector<1x1x8x8x128xbf16>
    %24 = vector.shape_cast %23 : vector<1x1x8x8x128xbf16> to vector<8x8x128xbf16>
    %25 = vector.shape_cast %24 : vector<8x8x128xbf16> to vector<64x128xbf16>
    %c2 = arith.constant 2 : index
    %c0_22 = arith.constant 0 : index
    %c0_23 = arith.constant 0 : index
    %26 = vector.load %arg2[%c2, %c0_22, %c0_23] : memref<9x128x128xbf16, #tpu.memory_space<vmem>>, vector<1x128x128xbf16>
    %27 = vector.shape_cast %26 : vector<1x128x128xbf16> to vector<128x128xbf16>
    %cst_24 = arith.constant dense<0.000000e+00> : vector<64x128xf32>
    %28 = tpu.matmul %25, %27, %cst_24 {dimension_numbers = #tpu.dot_dimension_numbers<[1], [0], [0], [1], [0, 0, 1, 1], [], []>} : vector<64x128xbf16>, vector<128x128xbf16>, vector<64x128xf32> -> vector<64x128xf32>
    %29 = arith.addf %20, %28 : vector<64x128xf32>
    %c0_i32_25 = arith.constant 0 : i32
    %30 = arith.addi %c0_i32_25, %3 : i32
    %c0_26 = arith.constant 0 : index
    %c2_27 = arith.constant 2 : index
    %31 = arith.index_cast %30 : i32 to index
    %c0_28 = arith.constant 0 : index
    %c0_29 = arith.constant 0 : index
    %32 = vector.load %arg1[%c0_26, %c2_27, %31, %c0_28, %c0_29] : memref<1x4x9x9x128xbf16, #tpu.memory_space<vmem>>, vector<1x1x8x8x128xbf16>
    %33 = vector.shape_cast %32 : vector<1x1x8x8x128xbf16> to vector<8x8x128xbf16>
    %34 = vector.shape_cast %33 : vector<8x8x128xbf16> to vector<64x128xbf16>
    %c3 = arith.constant 3 : index
    %c0_30 = arith.constant 0 : index
    %c0_31 = arith.constant 0 : index
    %35 = vector.load %arg2[%c3, %c0_30, %c0_31] : memref<9x128x128xbf16, #tpu.memory_space<vmem>>, vector<1x128x128xbf16>
    %36 = vector.shape_cast %35 : vector<1x128x128xbf16> to vector<128x128xbf16>
    %cst_32 = arith.constant dense<0.000000e+00> : vector<64x128xf32>
    %37 = tpu.matmul %34, %36, %cst_32 {dimension_numbers = #tpu.dot_dimension_numbers<[1], [0], [0], [1], [0, 0, 1, 1], [], []>} : vector<64x128xbf16>, vector<128x128xbf16>, vector<64x128xf32> -> vector<64x128xf32>
    %38 = arith.addf %29, %37 : vector<64x128xf32>
    %c0_i32_33 = arith.constant 0 : i32
    %39 = arith.addi %c0_i32_33, %3 : i32
    %c0_34 = arith.constant 0 : index
    %c3_35 = arith.constant 3 : index
    %40 = arith.index_cast %39 : i32 to index
    %c0_36 = arith.constant 0 : index
    %c0_37 = arith.constant 0 : index
    %41 = vector.load %arg1[%c0_34, %c3_35, %40, %c0_36, %c0_37] : memref<1x4x9x9x128xbf16, #tpu.memory_space<vmem>>, vector<1x1x8x8x128xbf16>
    %42 = vector.shape_cast %41 : vector<1x1x8x8x128xbf16> to vector<8x8x128xbf16>
    %43 = vector.shape_cast %42 : vector<8x8x128xbf16> to vector<64x128xbf16>
    %c4 = arith.constant 4 : index
    %c0_38 = arith.constant 0 : index
    %c0_39 = arith.constant 0 : index
    %44 = vector.load %arg2[%c4, %c0_38, %c0_39] : memref<9x128x128xbf16, #tpu.memory_space<vmem>>, vector<1x128x128xbf16>
    %45 = vector.shape_cast %44 : vector<1x128x128xbf16> to vector<128x128xbf16>
    %cst_40 = arith.constant dense<0.000000e+00> : vector<64x128xf32>
    %46 = tpu.matmul %43, %45, %cst_40 {dimension_numbers = #tpu.dot_dimension_numbers<[1], [0], [0], [1], [0, 0, 1, 1], [], []>} : vector<64x128xbf16>, vector<128x128xbf16>, vector<64x128xf32> -> vector<64x128xf32>
    %47 = arith.addf %38, %46 : vector<64x128xf32>
    %c0_i32_41 = arith.constant 0 : i32
    %48 = arith.addi %c0_i32_41, %3 : i32
    %c0_42 = arith.constant 0 : index
    %c2_43 = arith.constant 2 : index
    %49 = arith.index_cast %48 : i32 to index
    %c1_44 = arith.constant 1 : index
    %c0_45 = arith.constant 0 : index
    %50 = vector.load %arg1[%c0_42, %c2_43, %49, %c1_44, %c0_45] : memref<1x4x9x9x128xbf16, #tpu.memory_space<vmem>>, vector<1x1x8x8x128xbf16>
    %51 = vector.shape_cast %50 : vector<1x1x8x8x128xbf16> to vector<8x8x128xbf16>
    %52 = vector.shape_cast %51 : vector<8x8x128xbf16> to vector<64x128xbf16>
    %c5 = arith.constant 5 : index
    %c0_46 = arith.constant 0 : index
    %c0_47 = arith.constant 0 : index
    %53 = vector.load %arg2[%c5, %c0_46, %c0_47] : memref<9x128x128xbf16, #tpu.memory_space<vmem>>, vector<1x128x128xbf16>
    %54 = vector.shape_cast %53 : vector<1x128x128xbf16> to vector<128x128xbf16>
    %cst_48 = arith.constant dense<0.000000e+00> : vector<64x128xf32>
    %55 = tpu.matmul %52, %54, %cst_48 {dimension_numbers = #tpu.dot_dimension_numbers<[1], [0], [0], [1], [0, 0, 1, 1], [], []>} : vector<64x128xbf16>, vector<128x128xbf16>, vector<64x128xf32> -> vector<64x128xf32>
    %56 = arith.addf %47, %55 : vector<64x128xf32>
    %c1_i32 = arith.constant 1 : i32
    %57 = arith.addi %c1_i32, %3 : i32
    %c0_49 = arith.constant 0 : index
    %c0_50 = arith.constant 0 : index
    %58 = arith.index_cast %57 : i32 to index
    %c0_51 = arith.constant 0 : index
    %c0_52 = arith.constant 0 : index
    %59 = vector.load %arg1[%c0_49, %c0_50, %58, %c0_51, %c0_52] : memref<1x4x9x9x128xbf16, #tpu.memory_space<vmem>>, vector<1x1x8x8x128xbf16>
    %60 = vector.shape_cast %59 : vector<1x1x8x8x128xbf16> to vector<8x8x128xbf16>
    %61 = vector.shape_cast %60 : vector<8x8x128xbf16> to vector<64x128xbf16>
    %c6 = arith.constant 6 : index
    %c0_53 = arith.constant 0 : index
    %c0_54 = arith.constant 0 : index
    %62 = vector.load %arg2[%c6, %c0_53, %c0_54] : memref<9x128x128xbf16, #tpu.memory_space<vmem>>, vector<1x128x128xbf16>
    %63 = vector.shape_cast %62 : vector<1x128x128xbf16> to vector<128x128xbf16>
    %cst_55 = arith.constant dense<0.000000e+00> : vector<64x128xf32>
    %64 = tpu.matmul %61, %63, %cst_55 {dimension_numbers = #tpu.dot_dimension_numbers<[1], [0], [0], [1], [0, 0, 1, 1], [], []>} : vector<64x128xbf16>, vector<128x128xbf16>, vector<64x128xf32> -> vector<64x128xf32>
    %65 = arith.addf %56, %64 : vector<64x128xf32>
    %c1_i32_56 = arith.constant 1 : i32
    %66 = arith.addi %c1_i32_56, %3 : i32
    %c0_57 = arith.constant 0 : index
    %c1_58 = arith.constant 1 : index
    %67 = arith.index_cast %66 : i32 to index
    %c0_59 = arith.constant 0 : index
    %c0_60 = arith.constant 0 : index
    %68 = vector.load %arg1[%c0_57, %c1_58, %67, %c0_59, %c0_60] : memref<1x4x9x9x128xbf16, #tpu.memory_space<vmem>>, vector<1x1x8x8x128xbf16>
    %69 = vector.shape_cast %68 : vector<1x1x8x8x128xbf16> to vector<8x8x128xbf16>
    %70 = vector.shape_cast %69 : vector<8x8x128xbf16> to vector<64x128xbf16>
    %c7 = arith.constant 7 : index
    %c0_61 = arith.constant 0 : index
    %c0_62 = arith.constant 0 : index
    %71 = vector.load %arg2[%c7, %c0_61, %c0_62] : memref<9x128x128xbf16, #tpu.memory_space<vmem>>, vector<1x128x128xbf16>
    %72 = vector.shape_cast %71 : vector<1x128x128xbf16> to vector<128x128xbf16>
    %cst_63 = arith.constant dense<0.000000e+00> : vector<64x128xf32>
    %73 = tpu.matmul %70, %72, %cst_63 {dimension_numbers = #tpu.dot_dimension_numbers<[1], [0], [0], [1], [0, 0, 1, 1], [], []>} : vector<64x128xbf16>, vector<128x128xbf16>, vector<64x128xf32> -> vector<64x128xf32>
    %74 = arith.addf %65, %73 : vector<64x128xf32>
    %c1_i32_64 = arith.constant 1 : i32
    %75 = arith.addi %c1_i32_64, %3 : i32
    %c0_65 = arith.constant 0 : index
    %c0_66 = arith.constant 0 : index
    %76 = arith.index_cast %75 : i32 to index
    %c1_67 = arith.constant 1 : index
    %c0_68 = arith.constant 0 : index
    %77 = vector.load %arg1[%c0_65, %c0_66, %76, %c1_67, %c0_68] : memref<1x4x9x9x128xbf16, #tpu.memory_space<vmem>>, vector<1x1x8x8x128xbf16>
    %78 = vector.shape_cast %77 : vector<1x1x8x8x128xbf16> to vector<8x8x128xbf16>
    %79 = vector.shape_cast %78 : vector<8x8x128xbf16> to vector<64x128xbf16>
    %c8 = arith.constant 8 : index
    %c0_69 = arith.constant 0 : index
    %c0_70 = arith.constant 0 : index
    %80 = vector.load %arg2[%c8, %c0_69, %c0_70] : memref<9x128x128xbf16, #tpu.memory_space<vmem>>, vector<1x128x128xbf16>
    %81 = vector.shape_cast %80 : vector<1x128x128xbf16> to vector<128x128xbf16>
    %cst_71 = arith.constant dense<0.000000e+00> : vector<64x128xf32>
    %82 = tpu.matmul %79, %81, %cst_71 {dimension_numbers = #tpu.dot_dimension_numbers<[1], [0], [0], [1], [0, 0, 1, 1], [], []>} : vector<64x128xbf16>, vector<128x128xbf16>, vector<64x128xf32> -> vector<64x128xf32>
    %83 = arith.addf %74, %82 : vector<64x128xf32>
    %84 = vector.shape_cast %83 : vector<64x128xf32> to vector<8x8x128xf32>
    %85 = arith.truncf %84 : vector<8x8x128xf32> to vector<8x8x128xbf16>
    %c0_72 = arith.constant 0 : index
    %86 = arith.index_cast %3 : i32 to index
    %c0_73 = arith.constant 0 : index
    %c0_74 = arith.constant 0 : index
    %87 = vector.load %arg4[%c0_72, %86, %c0_73, %c0_74] : memref<1x8x8x128xbf16, #tpu.memory_space<vmem>>, vector<1x8x8x128xbf16>
    %88 = vector.shape_cast %87 : vector<1x8x8x128xbf16> to vector<8x8x128xbf16>
    %89 = vector.shape_cast %85 : vector<8x8x128xbf16> to vector<1x8x8x128xbf16>
    tpu.vector_store %arg4[%c0_72, %86, %c0_73, %c0_74], %89 {strides = array<i32>} : memref<1x8x8x128xbf16, #tpu.memory_space<vmem>>, vector<1x8x8x128xbf16>,
    %cst_75 = arith.constant dense<0.000000e+00> : vector<128xf32>
    %90 = vector.multi_reduction <add>, %83, %cst_75 [0] : vector<64x128xf32> to vector<128xf32>
    %91 = vector.shape_cast %90 : vector<128xf32> to vector<1x128xf32>
    %92 = arith.mulf %83, %83 : vector<64x128xf32>
    %cst_76 = arith.constant dense<0.000000e+00> : vector<128xf32>
    %93 = vector.multi_reduction <add>, %92, %cst_76 [0] : vector<64x128xf32> to vector<128xf32>
    %94 = vector.shape_cast %93 : vector<128xf32> to vector<1x128xf32>
    %95 = tpu.concatenate %91, %94 in 0 : vector<1x128xf32>, vector<1x128xf32> -> vector<2x128xf32>
    %c0_i32_77 = arith.constant 0 : i32
    %96 = arith.addi %c0_i32_77, %3 : i32
    %c0_78 = arith.constant 0 : index
    %c3_79 = arith.constant 3 : index
    %97 = arith.index_cast %96 : i32 to index
    %c0_80 = arith.constant 0 : index
    %c0_81 = arith.constant 0 : index
    %98 = vector.load %arg1[%c0_78, %c3_79, %97, %c0_80, %c0_81] : memref<1x4x9x9x128xbf16, #tpu.memory_space<vmem>>, vector<1x1x8x8x128xbf16>
    %99 = vector.shape_cast %98 : vector<1x1x8x8x128xbf16> to vector<8x8x128xbf16>
    %100 = vector.shape_cast %99 : vector<8x8x128xbf16> to vector<64x128xbf16>
    %c0_82 = arith.constant 0 : index
    %c0_83 = arith.constant 0 : index
    %101 = vector.load %arg3[%c0_82, %c0_83] : memref<128x128xbf16, #tpu.memory_space<vmem>>, vector<128x128xbf16>
    %cst_84 = arith.constant dense<0.000000e+00> : vector<64x128xf32>
    %102 = tpu.matmul %100, %101, %cst_84 {dimension_numbers = #tpu.dot_dimension_numbers<[1], [0], [0], [1], [0, 0, 1, 1], [], []>} : vector<64x128xbf16>, vector<128x128xbf16>, vector<64x128xf32> -> vector<64x128xf32>
    %103 = vector.shape_cast %102 : vector<64x128xf32> to vector<8x8x128xf32>
    %104 = arith.truncf %103 : vector<8x8x128xf32> to vector<8x8x128xbf16>
    %c0_85 = arith.constant 0 : index
    %105 = arith.index_cast %3 : i32 to index
    %c0_86 = arith.constant 0 : index
    %c0_87 = arith.constant 0 : index
    %106 = vector.load %arg6[%c0_85, %105, %c0_86, %c0_87] : memref<1x8x8x128xbf16, #tpu.memory_space<vmem>>, vector<1x8x8x128xbf16>
    %107 = vector.shape_cast %106 : vector<1x8x8x128xbf16> to vector<8x8x128xbf16>
    %108 = vector.shape_cast %104 : vector<8x8x128xbf16> to vector<1x8x8x128xbf16>
    tpu.vector_store %arg6[%c0_85, %105, %c0_86, %c0_87], %108 {strides = array<i32>} : memref<1x8x8x128xbf16, #tpu.memory_space<vmem>>, vector<1x8x8x128xbf16>,
    %cst_88 = arith.constant dense<0.000000e+00> : vector<128xf32>
    %109 = vector.multi_reduction <add>, %102, %cst_88 [0] : vector<64x128xf32> to vector<128xf32>
    %110 = vector.shape_cast %109 : vector<128xf32> to vector<1x128xf32>
    %111 = arith.mulf %102, %102 : vector<64x128xf32>
    %cst_89 = arith.constant dense<0.000000e+00> : vector<128xf32>
    %112 = vector.multi_reduction <add>, %111, %cst_89 [0] : vector<64x128xf32> to vector<128xf32>
    %113 = vector.shape_cast %112 : vector<128xf32> to vector<1x128xf32>
    %114 = tpu.concatenate %110, %113 in 0 : vector<1x128xf32>, vector<1x128xf32> -> vector<2x128xf32>
    %115 = arith.addf %0, %95 : vector<2x128xf32>
    %116 = arith.addf %1, %114 : vector<2x128xf32>
    %c1_i32_90 = arith.constant 1 : i32
    %c0_91 = arith.constant 0 : index
    %c0_92 = arith.constant 0 : index
    %c0_93 = arith.constant 0 : index
    %117 = vector.load %arg5[%c0_91, %c0_92, %c0_93] : memref<1x2x128xf32, #tpu.memory_space<vmem>>, vector<1x2x128xf32>
    %118 = vector.shape_cast %117 : vector<1x2x128xf32> to vector<2x128xf32>
    %119 = vector.shape_cast %115 : vector<2x128xf32> to vector<1x2x128xf32>
    tpu.vector_store %arg5[%c0_91, %c0_92, %c0_93], %119 {strides = array<i32>} : memref<1x2x128xf32, #tpu.memory_space<vmem>>, vector<1x2x128xf32>,
    %c0_94 = arith.constant 0 : index
    %c0_95 = arith.constant 0 : index
    %c0_96 = arith.constant 0 : index
    %120 = vector.load %arg7[%c0_94, %c0_95, %c0_96] : memref<1x2x128xf32, #tpu.memory_space<vmem>>, vector<1x2x128xf32>
    %121 = vector.shape_cast %120 : vector<1x2x128xf32> to vector<2x128xf32>
    %122 = vector.shape_cast %116 : vector<2x128xf32> to vector<1x2x128xf32>
    tpu.vector_store %arg7[%c0_94, %c0_95, %c0_96], %122 {strides = array<i32>} : memref<1x2x128xf32, #tpu.memory_space<vmem>>, vector<1x2x128xf32>,
    return
  }
  func.func @transform_0(%arg0: i32) -> (i32, i32, i32, i32, i32) {
    %c0_i32 = arith.constant 0 : i32
    %c0_i32_0 = arith.constant 0 : i32
    %c0_i32_1 = arith.constant 0 : i32
    %c0_i32_2 = arith.constant 0 : i32
    %c0_i32_3 = arith.constant 0 : i32
    return %arg0, %c0_i32, %c0_i32_0, %c0_i32_1, %c0_i32_2 : i32, i32, i32, i32, i32
  }
  func.func @transform_1(%arg0: i32) -> (i32, i32, i32) {
    %c0_i32 = arith.constant 0 : i32
    %c0_i32_0 = arith.constant 0 : i32
    %c0_i32_1 = arith.constant 0 : i32
    %c0_i32_2 = arith.constant 0 : i32
    return %c0_i32, %c0_i32_0, %c0_i32_1 : i32, i32, i32
  }
  func.func @transform_2(%arg0: i32) -> (i32, i32) {
    %c0_i32 = arith.constant 0 : i32
    %c0_i32_0 = arith.constant 0 : i32
    %c0_i32_1 = arith.constant 0 : i32
    return %c0_i32, %c0_i32_0 : i32, i32
  }
  func.func @transform_3(%arg0: i32) -> (i32, i32, i32, i32) {
    %c0_i32 = arith.constant 0 : i32
    %c0_i32_0 = arith.constant 0 : i32
    %c0_i32_1 = arith.constant 0 : i32
    %c0_i32_2 = arith.constant 0 : i32
    return %arg0, %c0_i32, %c0_i32_0, %c0_i32_1 : i32, i32, i32, i32
  }
  func.func @transform_4(%arg0: i32) -> (i32, i32, i32) {
    %c0_i32 = arith.constant 0 : i32
    %c0_i32_0 = arith.constant 0 : i32
    %c0_i32_1 = arith.constant 0 : i32
    return %arg0, %c0_i32, %c0_i32_0 : i32, i32, i32
  }
  func.func @transform_5(%arg0: i32) -> (i32, i32, i32, i32) {
    %c0_i32 = arith.constant 0 : i32
    %c0_i32_0 = arith.constant 0 : i32
    %c0_i32_1 = arith.constant 0 : i32
    %c0_i32_2 = arith.constant 0 : i32
    return %arg0, %c0_i32, %c0_i32_0, %c0_i32_1 : i32, i32, i32, i32
  }
  func.func @transform_6(%arg0: i32) -> (i32, i32, i32) {
    %c0_i32 = arith.constant 0 : i32
    %c0_i32_0 = arith.constant 0 : i32
    %c0_i32_1 = arith.constant 0 : i32
    return %arg0, %c0_i32, %c0_i32_0 : i32, i32, i32
  }
}

module attributes {stable_mosaic.version = 11 : i64} {
  func.func @_conv3x3_s1_kernel(%arg0: i32, %arg1: memref<1x8x8x128xbf16, #tpu.memory_space<vmem>>, %arg2: memref<1x128xf32, #tpu.memory_space<vmem>>, %arg3: memref<1x128xf32, #tpu.memory_space<vmem>>, %arg4: memref<3x384x128xbf16, #tpu.memory_space<vmem>>, %arg5: memref<1x8x8x128xbf16, #tpu.memory_space<vmem>>, %arg6: memref<1x2x128xf32, #tpu.memory_space<vmem>>, %arg7: memref<10x8x384xbf16, #tpu.memory_space<vmem>>) attributes {dimension_semantics = [#tpu.dimension_semantics<parallel>], iteration_bounds = array<i64: 2>, scalar_prefetch = 0 : i64, scratch_operands = 1 : i64, tpu.core_type = #tpu.core_type<tc>, window_params = [{transform_indices = @transform_0, window_bounds = array<i64: 1, 8, 8, 128>}, {pipeline_mode = #tpu.pipeline_mode<synchronous>, transform_indices = @transform_1, window_bounds = array<i64: 1, 128>}, {pipeline_mode = #tpu.pipeline_mode<synchronous>, transform_indices = @transform_2, window_bounds = array<i64: 1, 128>}, {pipeline_mode = #tpu.pipeline_mode<synchronous>, transform_indices = @transform_3, window_bounds = array<i64: 3, 384, 128>}, {transform_indices = @transform_4, window_bounds = array<i64: 1, 8, 8, 128>}, {transform_indices = @transform_5, window_bounds = array<i64: 1, 2, 128>}]} {
    %cst = arith.constant 0.000000e+00 : bf16
    %0 = vector.broadcast %cst : bf16 to vector<1x8x384xbf16>
    %c0 = arith.constant 0 : index
    %c0_0 = arith.constant 0 : index
    %c0_1 = arith.constant 0 : index
    %1 = vector.load %arg7[%c0, %c0_0, %c0_1] : memref<10x8x384xbf16, #tpu.memory_space<vmem>>, vector<1x8x384xbf16>
    tpu.vector_store %arg7[%c0, %c0_0, %c0_1], %0 {strides = array<i32>} : memref<10x8x384xbf16, #tpu.memory_space<vmem>>, vector<1x8x384xbf16>,
    %c9 = arith.constant 9 : index
    %c0_2 = arith.constant 0 : index
    %c0_3 = arith.constant 0 : index
    %2 = vector.load %arg7[%c9, %c0_2, %c0_3] : memref<10x8x384xbf16, #tpu.memory_space<vmem>>, vector<1x8x384xbf16>
    tpu.vector_store %arg7[%c9, %c0_2, %c0_3], %0 {strides = array<i32>} : memref<10x8x384xbf16, #tpu.memory_space<vmem>>, vector<1x8x384xbf16>,
    %cst_4 = arith.constant 0.000000e+00 : bf16
    %3 = vector.broadcast %cst_4 : bf16 to vector<8x1x128xbf16>
    %c1 = arith.constant 1 : index
    %c0_5 = arith.constant 0 : index
    %c0_6 = arith.constant 0 : index
    %4 = vector.load %arg7[%c1, %c0_5, %c0_6] : memref<10x8x384xbf16, #tpu.memory_space<vmem>>, vector<8x1x128xbf16>
    tpu.vector_store %arg7[%c1, %c0_5, %c0_6], %3 {strides = array<i32>} : memref<10x8x384xbf16, #tpu.memory_space<vmem>>, vector<8x1x128xbf16>,
    %c1_7 = arith.constant 1 : index
    %c7 = arith.constant 7 : index
    %c256 = arith.constant 256 : index
    %5 = vector.load %arg7[%c1_7, %c7, %c256] : memref<10x8x384xbf16, #tpu.memory_space<vmem>>, vector<8x1x128xbf16>
    tpu.vector_store %arg7[%c1_7, %c7, %c256], %3 {strides = array<i32>} : memref<10x8x384xbf16, #tpu.memory_space<vmem>>, vector<8x1x128xbf16>,
    %c0_8 = arith.constant 0 : index
    %c0_9 = arith.constant 0 : index
    %6 = vector.load %arg2[%c0_8, %c0_9] : memref<1x128xf32, #tpu.memory_space<vmem>>, vector<1x128xf32>
    %7 = vector.shape_cast %6 : vector<1x128xf32> to vector<1x1x128xf32>
    %c0_10 = arith.constant 0 : index
    %c0_11 = arith.constant 0 : index
    %8 = vector.load %arg3[%c0_10, %c0_11] : memref<1x128xf32, #tpu.memory_space<vmem>>, vector<1x128xf32>
    %9 = vector.shape_cast %8 : vector<1x128xf32> to vector<1x1x128xf32>
    %c0_i32 = arith.constant 0 : i32
    %c8_i32 = arith.constant 8 : i32
    %10 = arith.muli %c0_i32, %c8_i32 : i32
    %11 = tpu.assume_multiple %10, 8 : i32
    %c0_12 = arith.constant 0 : index
    %12 = arith.index_cast %11 : i32 to index
    %c0_13 = arith.constant 0 : index
    %c0_14 = arith.constant 0 : index
    %13 = vector.load %arg1[%c0_12, %12, %c0_13, %c0_14] : memref<1x8x8x128xbf16, #tpu.memory_space<vmem>>, vector<1x8x8x128xbf16>
    %14 = vector.shape_cast %13 : vector<1x8x8x128xbf16> to vector<8x8x128xbf16>
    %15 = arith.extf %14 : vector<8x8x128xbf16> to vector<8x8x128xf32>
    %16 = vector.broadcast %7 : vector<1x1x128xf32> to vector<8x8x128xf32>
    %17 = arith.mulf %15, %16 : vector<8x8x128xf32>
    %18 = vector.broadcast %9 : vector<1x1x128xf32> to vector<8x8x128xf32>
    %19 = arith.addf %17, %18 : vector<8x8x128xf32>
    %cst_15 = arith.constant 0.000000e+00 : f32
    %20 = vector.broadcast %cst_15 : f32 to vector<8x8x128xf32>
    %21 = arith.maximumf %19, %20 : vector<8x8x128xf32>
    %22 = arith.truncf %21 : vector<8x8x128xf32> to vector<8x8x128xbf16>
    %23 = vector.extract_strided_slice %22 {offsets = [0, 0, 0], sizes = [8, 7, 128], strides = [1, 1, 1]} : vector<8x8x128xbf16> to vector<8x7x128xbf16>
    %c1_i32 = arith.constant 1 : i32
    %24 = arith.addi %c1_i32, %11 : i32
    %25 = arith.index_cast %24 : i32 to index
    %c1_16 = arith.constant 1 : index
    %c0_17 = arith.constant 0 : index
    %26 = vector.load %arg7[%25, %c1_16, %c0_17] : memref<10x8x384xbf16, #tpu.memory_space<vmem>>, vector<8x7x128xbf16>
    tpu.vector_store %arg7[%25, %c1_16, %c0_17], %23 {strides = array<i32>} : memref<10x8x384xbf16, #tpu.memory_space<vmem>>, vector<8x7x128xbf16>,
    %c1_i32_18 = arith.constant 1 : i32
    %27 = arith.addi %c1_i32_18, %11 : i32
    %28 = arith.index_cast %27 : i32 to index
    %c0_19 = arith.constant 0 : index
    %c128 = arith.constant 128 : index
    %29 = vector.load %arg7[%28, %c0_19, %c128] : memref<10x8x384xbf16, #tpu.memory_space<vmem>>, vector<8x8x128xbf16>
    tpu.vector_store %arg7[%28, %c0_19, %c128], %22 {strides = array<i32>} : memref<10x8x384xbf16, #tpu.memory_space<vmem>>, vector<8x8x128xbf16>,
    %30 = vector.extract_strided_slice %22 {offsets = [0, 1, 0], sizes = [8, 7, 128], strides = [1, 1, 1]} : vector<8x8x128xbf16> to vector<8x7x128xbf16>
    %c1_i32_20 = arith.constant 1 : i32
    %31 = arith.addi %c1_i32_20, %11 : i32
    %32 = arith.index_cast %31 : i32 to index
    %c0_21 = arith.constant 0 : index
    %c256_22 = arith.constant 256 : index
    %33 = vector.load %arg7[%32, %c0_21, %c256_22] : memref<10x8x384xbf16, #tpu.memory_space<vmem>>, vector<8x7x128xbf16>
    tpu.vector_store %arg7[%32, %c0_21, %c256_22], %30 {strides = array<i32>} : memref<10x8x384xbf16, #tpu.memory_space<vmem>>, vector<8x7x128xbf16>,
    %c1_i32_23 = arith.constant 1 : i32
    %cst_24 = arith.constant 0.000000e+00 : f32
    %34 = vector.broadcast %cst_24 : f32 to vector<2x128xf32>
    %c0_i32_25 = arith.constant 0 : i32
    %c8_i32_26 = arith.constant 8 : i32
    %35 = arith.muli %c0_i32_25, %c8_i32_26 : i32
    %36 = tpu.assume_multiple %35, 8 : i32
    %c0_i32_27 = arith.constant 0 : i32
    %37 = arith.addi %36, %c0_i32_27 : i32
    %38 = arith.index_cast %37 : i32 to index
    %c0_28 = arith.constant 0 : index
    %c0_29 = arith.constant 0 : index
    %39 = vector.load %arg7[%38, %c0_28, %c0_29] : memref<10x8x384xbf16, #tpu.memory_space<vmem>>, vector<8x8x384xbf16>
    %40 = vector.shape_cast %39 : vector<8x8x384xbf16> to vector<64x384xbf16>
    %c0_30 = arith.constant 0 : index
    %c0_31 = arith.constant 0 : index
    %c0_32 = arith.constant 0 : index
    %41 = vector.load %arg4[%c0_30, %c0_31, %c0_32] : memref<3x384x128xbf16, #tpu.memory_space<vmem>>, vector<1x384x128xbf16>
    %42 = vector.shape_cast %41 : vector<1x384x128xbf16> to vector<384x128xbf16>
    %cst_33 = arith.constant dense<0.000000e+00> : vector<64x128xf32>
    %43 = tpu.matmul %40, %42, %cst_33 {dimension_numbers = #tpu.dot_dimension_numbers<[1], [0], [0], [1], [0, 0, 1, 1], [], []>} : vector<64x384xbf16>, vector<384x128xbf16>, vector<64x128xf32> -> vector<64x128xf32>
    %c1_i32_34 = arith.constant 1 : i32
    %44 = arith.addi %36, %c1_i32_34 : i32
    %45 = arith.index_cast %44 : i32 to index
    %c0_35 = arith.constant 0 : index
    %c0_36 = arith.constant 0 : index
    %46 = vector.load %arg7[%45, %c0_35, %c0_36] : memref<10x8x384xbf16, #tpu.memory_space<vmem>>, vector<8x8x384xbf16>
    %47 = vector.shape_cast %46 : vector<8x8x384xbf16> to vector<64x384xbf16>
    %c1_37 = arith.constant 1 : index
    %c0_38 = arith.constant 0 : index
    %c0_39 = arith.constant 0 : index
    %48 = vector.load %arg4[%c1_37, %c0_38, %c0_39] : memref<3x384x128xbf16, #tpu.memory_space<vmem>>, vector<1x384x128xbf16>
    %49 = vector.shape_cast %48 : vector<1x384x128xbf16> to vector<384x128xbf16>
    %cst_40 = arith.constant dense<0.000000e+00> : vector<64x128xf32>
    %50 = tpu.matmul %47, %49, %cst_40 {dimension_numbers = #tpu.dot_dimension_numbers<[1], [0], [0], [1], [0, 0, 1, 1], [], []>} : vector<64x384xbf16>, vector<384x128xbf16>, vector<64x128xf32> -> vector<64x128xf32>
    %51 = arith.addf %43, %50 : vector<64x128xf32>
    %c2_i32 = arith.constant 2 : i32
    %52 = arith.addi %36, %c2_i32 : i32
    %53 = arith.index_cast %52 : i32 to index
    %c0_41 = arith.constant 0 : index
    %c0_42 = arith.constant 0 : index
    %54 = vector.load %arg7[%53, %c0_41, %c0_42] : memref<10x8x384xbf16, #tpu.memory_space<vmem>>, vector<8x8x384xbf16>
    %55 = vector.shape_cast %54 : vector<8x8x384xbf16> to vector<64x384xbf16>
    %c2 = arith.constant 2 : index
    %c0_43 = arith.constant 0 : index
    %c0_44 = arith.constant 0 : index
    %56 = vector.load %arg4[%c2, %c0_43, %c0_44] : memref<3x384x128xbf16, #tpu.memory_space<vmem>>, vector<1x384x128xbf16>
    %57 = vector.shape_cast %56 : vector<1x384x128xbf16> to vector<384x128xbf16>
    %cst_45 = arith.constant dense<0.000000e+00> : vector<64x128xf32>
    %58 = tpu.matmul %55, %57, %cst_45 {dimension_numbers = #tpu.dot_dimension_numbers<[1], [0], [0], [1], [0, 0, 1, 1], [], []>} : vector<64x384xbf16>, vector<384x128xbf16>, vector<64x128xf32> -> vector<64x128xf32>
    %59 = arith.addf %51, %58 : vector<64x128xf32>
    %60 = vector.shape_cast %59 : vector<64x128xf32> to vector<8x8x128xf32>
    %61 = arith.truncf %60 : vector<8x8x128xf32> to vector<8x8x128xbf16>
    %c0_46 = arith.constant 0 : index
    %62 = arith.index_cast %36 : i32 to index
    %c0_47 = arith.constant 0 : index
    %c0_48 = arith.constant 0 : index
    %63 = vector.load %arg5[%c0_46, %62, %c0_47, %c0_48] : memref<1x8x8x128xbf16, #tpu.memory_space<vmem>>, vector<1x8x8x128xbf16>
    %64 = vector.shape_cast %63 : vector<1x8x8x128xbf16> to vector<8x8x128xbf16>
    %65 = vector.shape_cast %61 : vector<8x8x128xbf16> to vector<1x8x8x128xbf16>
    tpu.vector_store %arg5[%c0_46, %62, %c0_47, %c0_48], %65 {strides = array<i32>} : memref<1x8x8x128xbf16, #tpu.memory_space<vmem>>, vector<1x8x8x128xbf16>,
    %cst_49 = arith.constant dense<0.000000e+00> : vector<128xf32>
    %66 = vector.multi_reduction <add>, %59, %cst_49 [0] : vector<64x128xf32> to vector<128xf32>
    %67 = vector.shape_cast %66 : vector<128xf32> to vector<1x128xf32>
    %68 = arith.mulf %59, %59 : vector<64x128xf32>
    %cst_50 = arith.constant dense<0.000000e+00> : vector<128xf32>
    %69 = vector.multi_reduction <add>, %68, %cst_50 [0] : vector<64x128xf32> to vector<128xf32>
    %70 = vector.shape_cast %69 : vector<128xf32> to vector<1x128xf32>
    %71 = tpu.concatenate %67, %70 in 0 : vector<1x128xf32>, vector<1x128xf32> -> vector<2x128xf32>
    %72 = arith.addf %34, %71 : vector<2x128xf32>
    %c1_i32_51 = arith.constant 1 : i32
    %c0_52 = arith.constant 0 : index
    %c0_53 = arith.constant 0 : index
    %c0_54 = arith.constant 0 : index
    %73 = vector.load %arg6[%c0_52, %c0_53, %c0_54] : memref<1x2x128xf32, #tpu.memory_space<vmem>>, vector<1x2x128xf32>
    %74 = vector.shape_cast %73 : vector<1x2x128xf32> to vector<2x128xf32>
    %75 = vector.shape_cast %72 : vector<2x128xf32> to vector<1x2x128xf32>
    tpu.vector_store %arg6[%c0_52, %c0_53, %c0_54], %75 {strides = array<i32>} : memref<1x2x128xf32, #tpu.memory_space<vmem>>, vector<1x2x128xf32>,
    return
  }
  func.func @transform_0(%arg0: i32) -> (i32, i32, i32, i32) {
    %c0_i32 = arith.constant 0 : i32
    %c0_i32_0 = arith.constant 0 : i32
    %c0_i32_1 = arith.constant 0 : i32
    %c0_i32_2 = arith.constant 0 : i32
    return %arg0, %c0_i32, %c0_i32_0, %c0_i32_1 : i32, i32, i32, i32
  }
  func.func @transform_1(%arg0: i32) -> (i32, i32) {
    %c0_i32 = arith.constant 0 : i32
    %c0_i32_0 = arith.constant 0 : i32
    %c0_i32_1 = arith.constant 0 : i32
    return %c0_i32, %c0_i32_0 : i32, i32
  }
  func.func @transform_2(%arg0: i32) -> (i32, i32) {
    %c0_i32 = arith.constant 0 : i32
    %c0_i32_0 = arith.constant 0 : i32
    %c0_i32_1 = arith.constant 0 : i32
    return %c0_i32, %c0_i32_0 : i32, i32
  }
  func.func @transform_3(%arg0: i32) -> (i32, i32, i32) {
    %c0_i32 = arith.constant 0 : i32
    %c0_i32_0 = arith.constant 0 : i32
    %c0_i32_1 = arith.constant 0 : i32
    %c0_i32_2 = arith.constant 0 : i32
    return %c0_i32, %c0_i32_0, %c0_i32_1 : i32, i32, i32
  }
  func.func @transform_4(%arg0: i32) -> (i32, i32, i32, i32) {
    %c0_i32 = arith.constant 0 : i32
    %c0_i32_0 = arith.constant 0 : i32
    %c0_i32_1 = arith.constant 0 : i32
    %c0_i32_2 = arith.constant 0 : i32
    return %arg0, %c0_i32, %c0_i32_0, %c0_i32_1 : i32, i32, i32, i32
  }
  func.func @transform_5(%arg0: i32) -> (i32, i32, i32) {
    %c0_i32 = arith.constant 0 : i32
    %c0_i32_0 = arith.constant 0 : i32
    %c0_i32_1 = arith.constant 0 : i32
    return %arg0, %c0_i32, %c0_i32_0 : i32, i32, i32
  }
}

module attributes {stable_mosaic.version = 11 : i64} {
  func.func @_bn_add_relu_kernel(%arg0: i32, %arg1: memref<2x8x8x128xbf16, #tpu.memory_space<vmem>>, %arg2: memref<2x8x8x128xbf16, #tpu.memory_space<vmem>>, %arg3: memref<1x128xf32, #tpu.memory_space<vmem>>, %arg4: memref<1x128xf32, #tpu.memory_space<vmem>>, %arg5: memref<1x128xf32, #tpu.memory_space<vmem>>, %arg6: memref<1x128xf32, #tpu.memory_space<vmem>>, %arg7: memref<2x8x8x128xbf16, #tpu.memory_space<vmem>>) attributes {dimension_semantics = [#tpu.dimension_semantics<parallel>], iteration_bounds = array<i64: 1>, scalar_prefetch = 0 : i64, scratch_operands = 0 : i64, tpu.core_type = #tpu.core_type<tc>, window_params = [{transform_indices = @transform_0, window_bounds = array<i64: 2, 8, 8, 128>}, {transform_indices = @transform_1, window_bounds = array<i64: 2, 8, 8, 128>}, {pipeline_mode = #tpu.pipeline_mode<synchronous>, transform_indices = @transform_2, window_bounds = array<i64: 1, 128>}, {pipeline_mode = #tpu.pipeline_mode<synchronous>, transform_indices = @transform_3, window_bounds = array<i64: 1, 128>}, {pipeline_mode = #tpu.pipeline_mode<synchronous>, transform_indices = @transform_4, window_bounds = array<i64: 1, 128>}, {pipeline_mode = #tpu.pipeline_mode<synchronous>, transform_indices = @transform_5, window_bounds = array<i64: 1, 128>}, {transform_indices = @transform_6, window_bounds = array<i64: 2, 8, 8, 128>}]} {
    %c0 = arith.constant 0 : index
    %c0_0 = arith.constant 0 : index
    %0 = vector.load %arg3[%c0, %c0_0] : memref<1x128xf32, #tpu.memory_space<vmem>>, vector<1x128xf32>
    %1 = vector.shape_cast %0 : vector<1x128xf32> to vector<1x1x1x128xf32>
    %c0_1 = arith.constant 0 : index
    %c0_2 = arith.constant 0 : index
    %2 = vector.load %arg4[%c0_1, %c0_2] : memref<1x128xf32, #tpu.memory_space<vmem>>, vector<1x128xf32>
    %3 = vector.shape_cast %2 : vector<1x128xf32> to vector<1x1x1x128xf32>
    %c0_3 = arith.constant 0 : index
    %c0_4 = arith.constant 0 : index
    %4 = vector.load %arg5[%c0_3, %c0_4] : memref<1x128xf32, #tpu.memory_space<vmem>>, vector<1x128xf32>
    %5 = vector.shape_cast %4 : vector<1x128xf32> to vector<1x1x1x128xf32>
    %c0_5 = arith.constant 0 : index
    %c0_6 = arith.constant 0 : index
    %6 = vector.load %arg6[%c0_5, %c0_6] : memref<1x128xf32, #tpu.memory_space<vmem>>, vector<1x128xf32>
    %7 = vector.shape_cast %6 : vector<1x128xf32> to vector<1x1x1x128xf32>
    %c0_7 = arith.constant 0 : index
    %c0_8 = arith.constant 0 : index
    %c0_9 = arith.constant 0 : index
    %c0_10 = arith.constant 0 : index
    %8 = vector.load %arg1[%c0_7, %c0_8, %c0_9, %c0_10] : memref<2x8x8x128xbf16, #tpu.memory_space<vmem>>, vector<2x8x8x128xbf16>
    %9 = arith.extf %8 : vector<2x8x8x128xbf16> to vector<2x8x8x128xf32>
    %10 = vector.broadcast %1 : vector<1x1x1x128xf32> to vector<2x8x8x128xf32>
    %11 = arith.mulf %9, %10 : vector<2x8x8x128xf32>
    %12 = vector.broadcast %3 : vector<1x1x1x128xf32> to vector<2x8x8x128xf32>
    %13 = arith.addf %11, %12 : vector<2x8x8x128xf32>
    %c0_11 = arith.constant 0 : index
    %c0_12 = arith.constant 0 : index
    %c0_13 = arith.constant 0 : index
    %c0_14 = arith.constant 0 : index
    %14 = vector.load %arg2[%c0_11, %c0_12, %c0_13, %c0_14] : memref<2x8x8x128xbf16, #tpu.memory_space<vmem>>, vector<2x8x8x128xbf16>
    %15 = arith.extf %14 : vector<2x8x8x128xbf16> to vector<2x8x8x128xf32>
    %16 = vector.broadcast %5 : vector<1x1x1x128xf32> to vector<2x8x8x128xf32>
    %17 = arith.mulf %15, %16 : vector<2x8x8x128xf32>
    %18 = vector.broadcast %7 : vector<1x1x1x128xf32> to vector<2x8x8x128xf32>
    %19 = arith.addf %17, %18 : vector<2x8x8x128xf32>
    %20 = arith.addf %13, %19 : vector<2x8x8x128xf32>
    %cst = arith.constant 0.000000e+00 : f32
    %21 = vector.broadcast %cst : f32 to vector<2x8x8x128xf32>
    %22 = arith.maximumf %20, %21 : vector<2x8x8x128xf32>
    %23 = arith.truncf %22 : vector<2x8x8x128xf32> to vector<2x8x8x128xbf16>
    %c0_15 = arith.constant 0 : index
    %c0_16 = arith.constant 0 : index
    %c0_17 = arith.constant 0 : index
    %c0_18 = arith.constant 0 : index
    %24 = vector.load %arg7[%c0_15, %c0_16, %c0_17, %c0_18] : memref<2x8x8x128xbf16, #tpu.memory_space<vmem>>, vector<2x8x8x128xbf16>
    tpu.vector_store %arg7[%c0_15, %c0_16, %c0_17, %c0_18], %23 {strides = array<i32>} : memref<2x8x8x128xbf16, #tpu.memory_space<vmem>>, vector<2x8x8x128xbf16>,
    return
  }
  func.func @transform_0(%arg0: i32) -> (i32, i32, i32, i32) {
    %c0_i32 = arith.constant 0 : i32
    %c0_i32_0 = arith.constant 0 : i32
    %c0_i32_1 = arith.constant 0 : i32
    %c0_i32_2 = arith.constant 0 : i32
    return %arg0, %c0_i32, %c0_i32_0, %c0_i32_1 : i32, i32, i32, i32
  }
  func.func @transform_1(%arg0: i32) -> (i32, i32, i32, i32) {
    %c0_i32 = arith.constant 0 : i32
    %c0_i32_0 = arith.constant 0 : i32
    %c0_i32_1 = arith.constant 0 : i32
    %c0_i32_2 = arith.constant 0 : i32
    return %arg0, %c0_i32, %c0_i32_0, %c0_i32_1 : i32, i32, i32, i32
  }
  func.func @transform_2(%arg0: i32) -> (i32, i32) {
    %c0_i32 = arith.constant 0 : i32
    %c0_i32_0 = arith.constant 0 : i32
    %c0_i32_1 = arith.constant 0 : i32
    return %c0_i32, %c0_i32_0 : i32, i32
  }
  func.func @transform_3(%arg0: i32) -> (i32, i32) {
    %c0_i32 = arith.constant 0 : i32
    %c0_i32_0 = arith.constant 0 : i32
    %c0_i32_1 = arith.constant 0 : i32
    return %c0_i32, %c0_i32_0 : i32, i32
  }
  func.func @transform_4(%arg0: i32) -> (i32, i32) {
    %c0_i32 = arith.constant 0 : i32
    %c0_i32_0 = arith.constant 0 : i32
    %c0_i32_1 = arith.constant 0 : i32
    return %c0_i32, %c0_i32_0 : i32, i32
  }
  func.func @transform_5(%arg0: i32) -> (i32, i32) {
    %c0_i32 = arith.constant 0 : i32
    %c0_i32_0 = arith.constant 0 : i32
    %c0_i32_1 = arith.constant 0 : i32
    return %c0_i32, %c0_i32_0 : i32, i32
  }
  func.func @transform_6(%arg0: i32) -> (i32, i32, i32, i32) {
    %c0_i32 = arith.constant 0 : i32
    %c0_i32_0 = arith.constant 0 : i32
    %c0_i32_1 = arith.constant 0 : i32
    %c0_i32_2 = arith.constant 0 : i32
    return %arg0, %c0_i32, %c0_i32_0, %c0_i32_1 : i32, i32, i32, i32
  }
}

</mosaic_0001>

<llo_original>
// kernel: basic_block_forward.5
$region0: #{basic_block_forward.5}
  #allocation0 [shape = 'u32[]', space=smem, size = 0x4, offset = 0x4, fixed_abs, tag = 'smem constant byte address 0x4 - core index']
  #allocation1 [shape = 'u32[144,128]{1,0:T(1,128)}', space=vmem, size = 0x12000, scoped, tag = 'internal scratch']
  %s0 = inlined_call_operand.vmem [shape: bf16[2,8,8,128], index: 0, kind: input, shape index: {}]
  %s1 = inlined_call_operand.vmem [shape: bf16[2,8,8,128], index: 1, kind: input, shape index: {}]
  %s2 = inlined_call_operand.vmem [shape: f32[1,128], index: 2, kind: input, shape index: {}]
  %s3 = inlined_call_operand.vmem [shape: f32[1,128], index: 3, kind: input, shape index: {}]
  %s4 = inlined_call_operand.vmem [shape: f32[1,128], index: 4, kind: input, shape index: {}]
  %s5 = inlined_call_operand.vmem [shape: f32[1,128], index: 5, kind: input, shape index: {}]
  %s6 = inlined_call_operand.vmem [shape: bf16[2,8,8,128], index: 6, kind: output, shape index: {}]
  %s7 = sld [smem:[#allocation0]]
  $region34: #{basic_block_forward.5} parent=0
    _
  %s9 = ssub.s32 1, %s7
  %s10 = scalar_select 0, %s9, %s7
  // Predicated region
  $region2: #{basic_block_forward.5} parent=0 // pred_check
    _
  $region3: #{basic_block_forward.5} parent=0 // pred_check_branch
    %12 = sbr.rel (0) target = $region5
  $region4: #{basic_block_forward.5} parent=0 // pred_region
    _
  $region5: #{basic_block_forward.5} parent=0 // pred_fallthru
    _
  // Predicated region
  $region6: #{basic_block_forward.5} parent=0 // pred_check
    _
  $region7: #{basic_block_forward.5} parent=0 // pred_check_branch
    %14 = sbr.rel (0) target = $region9
  $region8: #{basic_block_forward.5} parent=0 // pred_region
    _
  $region9: #{basic_block_forward.5} parent=0 // pred_fallthru
    _
  // Predicated region
  $region10: #{basic_block_forward.5} parent=0 // pred_check
    _
  $region11: #{basic_block_forward.5} parent=0 // pred_check_branch
    %16 = sbr.rel (0) target = $region13
  $region12: #{basic_block_forward.5} parent=0 // pred_region
    _
  $region13: #{basic_block_forward.5} parent=0 // pred_fallthru
    _
  // Predicated region
  $region14: #{basic_block_forward.5} parent=0 // pred_check
    _
  $region15: #{basic_block_forward.5} parent=0 // pred_check_branch
    %18 = sbr.rel (0) target = $region17
  $region16: #{basic_block_forward.5} parent=0 // pred_region
    _
  $region17: #{basic_block_forward.5} parent=0 // pred_fallthru
    _
  // Predicated region
  $region18: #{basic_block_forward.5} parent=0 // pred_check
    _
  $region19: #{basic_block_forward.5} parent=0 // pred_check_branch
    %20 = sbr.rel (0) target = $region21
  $region20: #{basic_block_forward.5} parent=0 // pred_region
    _
  $region21: #{basic_block_forward.5} parent=0 // pred_fallthru
    _
  // Predicated region
  $region22: #{basic_block_forward.5} parent=0 // pred_check
    _
  $region23: #{basic_block_forward.5} parent=0 // pred_check_branch
    %22 = sbr.rel (0) target = $region25
  $region24: #{basic_block_forward.5} parent=0 // pred_region
    _
  $region25: #{basic_block_forward.5} parent=0 // pred_fallthru
    _
  %v23 = vld [vmem:[%s2] sm:$0x1]
  %v24 = vld [vmem:[%s3] sm:$0x1]
  %v25 = vld [vmem:[%s4] sm:$0x1]
  %v26 = vld [vmem:[%s5] sm:$0x1]
  %v27 = vld [vmem:[%s0] sm:$0xf]
  %v28 = vld [vmem:[%s0 + $0x4] sm:$0xf]
  %v29 = vld [vmem:[%s0 + $0x8] sm:$0xf]
  %v30 = vld [vmem:[%s0 + $0xc] sm:$0xf]
  %v31 = vld [vmem:[%s0 + $0x10] sm:$0xf]
  %v32 = vld [vmem:[%s0 + $0x14] sm:$0xf]
  %v33 = vld [vmem:[%s0 + $0x18] sm:$0xf]
  %v34 = vld [vmem:[%s0 + $0x1c] sm:$0xf]
  %v35 = vld [vmem:[%s0 + $0x20] sm:$0xf]
  %v36 = vld [vmem:[%s0 + $0x24] sm:$0xf]
  %v37 = vld [vmem:[%s0 + $0x28] sm:$0xf]
  %v38 = vld [vmem:[%s0 + $0x2c] sm:$0xf]
  %v39 = vld [vmem:[%s0 + $0x30] sm:$0xf]
  %v40 = vld [vmem:[%s0 + $0x34] sm:$0xf]
  %v41 = vld [vmem:[%s0 + $0x38] sm:$0xf]
  %v42 = vld [vmem:[%s0 + $0x3c] sm:$0xf]
  %v43 = vunpack.c.l.bf16 %v27
  %v44 = vunpack.c.l.bf16 %v28
  %v45 = vunpack.c.l.bf16 %v29
  %v46 = vunpack.c.l.bf16 %v30
  %v47 = vunpack.c.l.bf16 %v31
  %v48 = vunpack.c.l.bf16 %v32
  %v49 = vunpack.c.l.bf16 %v33
  %v50 = vunpack.c.l.bf16 %v34
  %v51 = vunpack.c.l.bf16 %v35
  %v52 = vunpack.c.l.bf16 %v36
  %v53 = vunpack.c.l.bf16 %v37
  %v54 = vunpack.c.l.bf16 %v38
  %v55 = vunpack.c.l.bf16 %v39
  %v56 = vunpack.c.l.bf16 %v40
  %v57 = vunpack.c.l.bf16 %v41
  %v58 = vunpack.c.l.bf16 %v42
  %v60 = vlaneseq
  %v61 = vshrl.u32 %v60, 7
  %v62 = vsub.s32 0, %v61
  %v63 = vrot.slane %v23, %v62
  %v65 = vmul.f32 %v43, %v63
  %v66 = vmul.f32 %v44, %v63
  %v67 = vmul.f32 %v45, %v63
  %v68 = vmul.f32 %v46, %v63
  %v69 = vmul.f32 %v47, %v63
  %v70 = vmul.f32 %v48, %v63
  %v71 = vmul.f32 %v49, %v63
  %v72 = vmul.f32 %v50, %v63
  %v73 = vmul.f32 %v51, %v63
  %v74 = vmul.f32 %v52, %v63
  %v75 = vmul.f32 %v53, %v63
  %v76 = vmul.f32 %v54, %v63
  %v77 = vmul.f32 %v55, %v63
  %v78 = vmul.f32 %v56, %v63
  %v79 = vmul.f32 %v57, %v63
  %v80 = vmul.f32 %v58, %v63
  %v82 = vlaneseq
  %v83 = vshrl.u32 %v82, 7
  %v84 = vsub.s32 0, %v83
  %v85 = vrot.slane %v24, %v84
  %v87 = vadd.f32 %v65, %v85
  %v88 = vadd.f32 %v66, %v85
  %v89 = vadd.f32 %v67, %v85
  %v90 = vadd.f32 %v68, %v85
  %v91 = vadd.f32 %v69, %v85
  %v92 = vadd.f32 %v70, %v85
  %v93 = vadd.f32 %v71, %v85
  %v94 = vadd.f32 %v72, %v85
  %v95 = vadd.f32 %v73, %v85
  %v96 = vadd.f32 %v74, %v85
  %v97 = vadd.f32 %v75, %v85
  %v98 = vadd.f32 %v76, %v85
  %v99 = vadd.f32 %v77, %v85
  %v100 = vadd.f32 %v78, %v85
  %v101 = vadd.f32 %v79, %v85
  %v102 = vadd.f32 %v80, %v85
  %v103 = vld [vmem:[%s1] sm:$0xf]
  %v104 = vld [vmem:[%s1 + $0x4] sm:$0xf]
  %v105 = vld [vmem:[%s1 + $0x8] sm:$0xf]
  %v106 = vld [vmem:[%s1 + $0xc] sm:$0xf]
  %v107 = vld [vmem:[%s1 + $0x10] sm:$0xf]
  %v108 = vld [vmem:[%s1 + $0x14] sm:$0xf]
  %v109 = vld [vmem:[%s1 + $0x18] sm:$0xf]
  %v110 = vld [vmem:[%s1 + $0x1c] sm:$0xf]
  %v111 = vld [vmem:[%s1 + $0x20] sm:$0xf]
  %v112 = vld [vmem:[%s1 + $0x24] sm:$0xf]
  %v113 = vld [vmem:[%s1 + $0x28] sm:$0xf]
  %v114 = vld [vmem:[%s1 + $0x2c] sm:$0xf]
  %v115 = vld [vmem:[%s1 + $0x30] sm:$0xf]
  %v116 = vld [vmem:[%s1 + $0x34] sm:$0xf]
  %v117 = vld [vmem:[%s1 + $0x38] sm:$0xf]
  %v118 = vld [vmem:[%s1 + $0x3c] sm:$0xf]
  %v119 = vunpack.c.l.bf16 %v103
  %v120 = vunpack.c.l.bf16 %v104
  %v121 = vunpack.c.l.bf16 %v105
  %v122 = vunpack.c.l.bf16 %v106
  %v123 = vunpack.c.l.bf16 %v107
  %v124 = vunpack.c.l.bf16 %v108
  %v125 = vunpack.c.l.bf16 %v109
  %v126 = vunpack.c.l.bf16 %v110
  %v127 = vunpack.c.l.bf16 %v111
  %v128 = vunpack.c.l.bf16 %v112
  %v129 = vunpack.c.l.bf16 %v113
  %v130 = vunpack.c.l.bf16 %v114
  %v131 = vunpack.c.l.bf16 %v115
  %v132 = vunpack.c.l.bf16 %v116
  %v133 = vunpack.c.l.bf16 %v117
  %v134 = vunpack.c.l.bf16 %v118
  %v136 = vlaneseq
  %v137 = vshrl.u32 %v136, 7
  %v138 = vsub.s32 0, %v137
  %v139 = vrot.slane %v25, %v138
  %v141 = vmul.f32 %v119, %v139
  %v142 = vmul.f32 %v120, %v139
  %v143 = vmul.f32 %v121, %v139
  %v144 = vmul.f32 %v122, %v139
  %v145 = vmul.f32 %v123, %v139
  %v146 = vmul.f32 %v124, %v139
  %v147 = vmul.f32 %v125, %v139
  %v148 = vmul.f32 %v126, %v139
  %v149 = vmul.f32 %v127, %v139
  %v150 = vmul.f32 %v128, %v139
  %v151 = vmul.f32 %v129, %v139
  %v152 = vmul.f32 %v130, %v139
  %v153 = vmul.f32 %v131, %v139
  %v154 = vmul.f32 %v132, %v139
  %v155 = vmul.f32 %v133, %v139
  %v156 = vmul.f32 %v134, %v139
  %v158 = vlaneseq
  %v159 = vshrl.u32 %v158, 7
  %v160 = vsub.s32 0, %v159
  %v161 = vrot.slane %v26, %v160
  %v163 = vadd.f32 %v141, %v161
  %v164 = vadd.f32 %v142, %v161
  %v165 = vadd.f32 %v143, %v161
  %v166 = vadd.f32 %v144, %v161
  %v167 = vadd.f32 %v145, %v161
  %v168 = vadd.f32 %v146, %v161
  %v169 = vadd.f32 %v147, %v161
  %v170 = vadd.f32 %v148, %v161
  %v171 = vadd.f32 %v149, %v161
  %v172 = vadd.f32 %v150, %v161
  %v173 = vadd.f32 %v151, %v161
  %v174 = vadd.f32 %v152, %v161
  %v175 = vadd.f32 %v153, %v161
  %v176 = vadd.f32 %v154, %v161
  %v177 = vadd.f32 %v155, %v161
  %v178 = vadd.f32 %v156, %v161
  %v179 = vadd.f32 %v87, %v163
  %v180 = vadd.f32 %v88, %v164
  %v181 = vadd.f32 %v89, %v165
  %v182 = vadd.f32 %v90, %v166
  %v183 = vadd.f32 %v91, %v167
  %v184 = vadd.f32 %v92, %v168
  %v185 = vadd.f32 %v93, %v169
  %v186 = vadd.f32 %v94, %v170
  %v187 = vadd.f32 %v95, %v171
  %v188 = vadd.f32 %v96, %v172
  %v189 = vadd.f32 %v97, %v173
  %v190 = vadd.f32 %v98, %v174
  %v191 = vadd.f32 %v99, %v175
  %v192 = vadd.f32 %v100, %v176
  %v193 = vadd.f32 %v101, %v177
  %v194 = vadd.f32 %v102, %v178
  %v195 = vmax.f32 %v179, 0.0
  %v196 = vmax.f32 %v180, 0.0
  %v197 = vmax.f32 %v181, 0.0
  %v198 = vmax.f32 %v182, 0.0
  %v199 = vmax.f32 %v183, 0.0
  %v200 = vmax.f32 %v184, 0.0
  %v201 = vmax.f32 %v185, 0.0
  %v202 = vmax.f32 %v186, 0.0
  %v203 = vmax.f32 %v187, 0.0
  %v204 = vmax.f32 %v188, 0.0
  %v205 = vmax.f32 %v189, 0.0
  %v206 = vmax.f32 %v190, 0.0
  %v207 = vmax.f32 %v191, 0.0
  %v208 = vmax.f32 %v192, 0.0
  %v209 = vmax.f32 %v193, 0.0
  %v210 = vmax.f32 %v194, 0.0
  %v211 = vpack.c.bf16 %v195, %v195
  %v212 = vpack.c.bf16 %v196, %v196
  %v213 = vpack.c.bf16 %v197, %v197
  %v214 = vpack.c.bf16 %v198, %v198
  %v215 = vpack.c.bf16 %v199, %v199
  %v216 = vpack.c.bf16 %v200, %v200
  %v217 = vpack.c.bf16 %v201, %v201
  %v218 = vpack.c.bf16 %v202, %v202
  %v219 = vpack.c.bf16 %v203, %v203
  %v220 = vpack.c.bf16 %v204, %v204
  %v221 = vpack.c.bf16 %v205, %v205
  %v222 = vpack.c.bf16 %v206, %v206
  %v223 = vpack.c.bf16 %v207, %v207
  %v224 = vpack.c.bf16 %v208, %v208
  %v225 = vpack.c.bf16 %v209, %v209
  %v226 = vpack.c.bf16 %v210, %v210
  %227 = vst [vmem:[%s6] sm:$0xf] %v211
  %228 = vst [vmem:[%s6 + $0x4] sm:$0xf] %v212
  %229 = vst [vmem:[%s6 + $0x8] sm:$0xf] %v213
  %230 = vst [vmem:[%s6 + $0xc] sm:$0xf] %v214
  %231 = vst [vmem:[%s6 + $0x10] sm:$0xf] %v215
  %232 = vst [vmem:[%s6 + $0x14] sm:$0xf] %v216
  %233 = vst [vmem:[%s6 + $0x18] sm:$0xf] %v217
  %234 = vst [vmem:[%s6 + $0x1c] sm:$0xf] %v218
  %235 = vst [vmem:[%s6 + $0x20] sm:$0xf] %v219
  %236 = vst [vmem:[%s6 + $0x24] sm:$0xf] %v220
  %237 = vst [vmem:[%s6 + $0x28] sm:$0xf] %v221
  %238 = vst [vmem:[%s6 + $0x2c] sm:$0xf] %v222
  %239 = vst [vmem:[%s6 + $0x30] sm:$0xf] %v223
  %240 = vst [vmem:[%s6 + $0x34] sm:$0xf] %v224
  %241 = vst [vmem:[%s6 + $0x38] sm:$0xf] %v225
  %242 = vst [vmem:[%s6 + $0x3c] sm:$0xf] %v226
  // Predicated region
  $region26: #{basic_block_forward.5} parent=0 // pred_check
    _
  $region27: #{basic_block_forward.5} parent=0 // pred_check_branch
    %244 = sbr.rel (0) target = $region29
  $region28: #{basic_block_forward.5} parent=0 // pred_region
    _
  $region29: #{basic_block_forward.5} parent=0 // pred_fallthru
    _
  // Predicated region
  $region30: #{basic_block_forward.5} parent=0 // pred_check
    _
  $region31: #{basic_block_forward.5} parent=0 // pred_check_branch
    %246 = sbr.rel (0) target = $region33
  $region32: #{basic_block_forward.5} parent=0 // pred_region
    _
  $region33: #{basic_block_forward.5} parent=0 // pred_fallthru
    _

// kernel: basic_block_forward.4
$region0: #{basic_block_forward.4}
  #allocation0 [shape = 'u32[]', space=smem, size = 0x4, offset = 0x4, fixed_abs, tag = 'smem constant byte address 0x4 - core index']
  #allocation1 [shape = 'u32[144,128]{1,0:T(1,128)}', space=vmem, size = 0x12000, scoped, tag = 'internal scratch']
  #allocation2 [shape = 'bf16[10,8,384]{2,1,0:T(8,128)(2,1)}', space=vmem, size = 0xf000, scoped, tag = 'scratch operand']
  %s0 = inlined_call_operand.vmem [shape: bf16[2,8,8,128], index: 0, kind: input, shape index: {}]
  %s1 = inlined_call_operand.vmem [shape: f32[1,128], index: 1, kind: input, shape index: {}]
  %s2 = inlined_call_operand.vmem [shape: f32[1,128], index: 2, kind: input, shape index: {}]
  %s3 = inlined_call_operand.vmem [shape: bf16[3,384,128], index: 3, kind: input, shape index: {}]
  %s4 = inlined_call_operand.vmem [shape: bf16[2,8,8,128], index: 4, kind: output, shape index: {0}]
  %s5 = inlined_call_operand.vmem [shape: f32[2,2,128], index: 5, kind: output, shape index: {1}]
  %6 = xla_tuple %s4, %s5
  %s7 = sld [smem:[#allocation0]]
  $region57: #{basic_block_forward.4} parent=0
    _
  %s9 = ssub.s32 1, %s7
  %s10 = scalar_select 0, %s9, %s7
  loop: start=0, step=1, limit=4
  $region2: #{basic_block_forward.4} parent=0 // loop_pre_header
    _
  $region3: #{basic_block_forward.4} parent=0 // loop_header
    %s12 = sphi 0, %s16
    %p13 = scmp.ge.s32.totalorder %s12, 4
    %s22 = sphi 0, %s24
    %s25 = sphi 0, %s22
    %s26 = sphi 0, %s25
    %s42 = sphi 0, %s26
    %s46 = sphi 0, %s46
    %s48 = sphi 0, %s46
    %s49 = sphi 0, %s48
    %s63 = sphi 0, %s49
    %s67 = sphi 0, %s67
    %s69 = sphi 0, %s67
    %s70 = sphi 0, %s69
    %s84 = sphi 0, %s70
    %s88 = sphi 0, %s88
    %s90 = sphi 0, %s88
    %s91 = sphi 0, %s90
    %s105 = sphi 0, %s91
    %s111 = sphi 0, %s113
    %s114 = sphi 0, %s111
    %s115 = sphi 0, %s114
    %s131 = sphi 0, %s115
    %s137 = sphi 0, %s139
    %s140 = sphi 0, %s137
    %s141 = sphi 0, %s140
    %s157 = sphi 0, %s141
  $region4: #{basic_block_forward.4} parent=0 // loop_header_branch
    %15 = sbr.rel (%p13) target = $region8
  $region5: #{basic_block_forward.4} parent=0 // loop_body
    %s17 = ssub.s32 %s12, 1
    %s18 = ssub.s32 %s12, 2
    %s19 = sadd.s32 %s12, 1
    %s20 = ssub.s32 %s12, %s19
    %p21 = scmp.eq.s32.totalorder %s20, 0
    %s23 = sadd.s32 %s22, 1
    %s24 = scalar_select %p21, %s22, %s23
    %p27 = pneg %p21
    %p28 = scmp.eq.s32.totalorder %s12, 1
    %p29 = por %p27, %p28
    %p30 = scmp.ne.s32.totalorder %s22, %s25
    %p31 = scmp.eq.s32.totalorder %s12, 0
    %p32 = por %p30, %p31
    %p33 = scmp.ne.s32.totalorder %s22, %s25
    %p34 = scmp.eq.s32.totalorder %s17, 1
    %p35 = por %p33, %p34
    %p36 = scmp.ne.s32.totalorder %s25, %s26
    %p37 = scmp.eq.s32.totalorder %s17, 0
    %p38 = por %p36, %p37
    %p39 = scmp.ne.s32.totalorder %s25, %s26
    %p40 = scmp.eq.s32.totalorder %s18, 1
    %p41 = por %p39, %p40
    %p43 = scmp.ne.s32.totalorder %s26, %s42
    %p44 = scmp.eq.s32.totalorder %s18, 0
    %p45 = por %p43, %p44
    %s47 = sadd.s32 %s46, 1
    %p50 = scmp.eq.s32.totalorder %s12, 1
    %p51 = scmp.ne.s32.totalorder %s46, %s48
    %p52 = scmp.eq.s32.totalorder %s12, 0
    %p53 = por %p51, %p52
    %p54 = scmp.ne.s32.totalorder %s46, %s48
    %p55 = scmp.eq.s32.totalorder %s17, 1
    %p56 = por %p54, %p55
    %p57 = scmp.ne.s32.totalorder %s48, %s49
    %p58 = scmp.eq.s32.totalorder %s17, 0
    %p59 = por %p57, %p58
    %p60 = scmp.ne.s32.totalorder %s48, %s49
    %p61 = scmp.eq.s32.totalorder %s18, 1
    %p62 = por %p60, %p61
    %p64 = scmp.ne.s32.totalorder %s49, %s63
    %p65 = scmp.eq.s32.totalorder %s18, 0
    %p66 = por %p64, %p65
    %s68 = sadd.s32 %s67, 1
    %p71 = scmp.eq.s32.totalorder %s12, 1
    %p72 = scmp.ne.s32.totalorder %s67, %s69
    %p73 = scmp.eq.s32.totalorder %s12, 0
    %p74 = por %p72, %p73
    %p75 = scmp.ne.s32.totalorder %s67, %s69
    %p76 = scmp.eq.s32.totalorder %s17, 1
    %p77 = por %p75, %p76
    %p78 = scmp.ne.s32.totalorder %s69, %s70
    %p79 = scmp.eq.s32.totalorder %s17, 0
    %p80 = por %p78, %p79
    %p81 = scmp.ne.s32.totalorder %s69, %s70
    %p82 = scmp.eq.s32.totalorder %s18, 1
    %p83 = por %p81, %p82
    %p85 = scmp.ne.s32.totalorder %s70, %s84
    %p86 = scmp.eq.s32.totalorder %s18, 0
    %p87 = por %p85, %p86
    %s89 = sadd.s32 %s88, 1
    %p92 = scmp.eq.s32.totalorder %s12, 1
    %p93 = scmp.ne.s32.totalorder %s88, %s90
    %p94 = scmp.eq.s32.totalorder %s12, 0
    %p95 = por %p93, %p94
    %p96 = scmp.ne.s32.totalorder %s88, %s90
    %p97 = scmp.eq.s32.totalorder %s17, 1
    %p98 = por %p96, %p97
    %p99 = scmp.ne.s32.totalorder %s90, %s91
    %p100 = scmp.eq.s32.totalorder %s17, 0
    %p101 = por %p99, %p100
    %p102 = scmp.ne.s32.totalorder %s90, %s91
    %p103 = scmp.eq.s32.totalorder %s18, 1
    %p104 = por %p102, %p103
    %p106 = scmp.ne.s32.totalorder %s91, %s105
    %p107 = scmp.eq.s32.totalorder %s18, 0
    %p108 = por %p106, %p107
    %s109 = ssub.s32 %s12, %s19
    %p110 = scmp.eq.s32.totalorder %s109, 0
    %s112 = sadd.s32 %s111, 1
    %s113 = scalar_select %p110, %s111, %s112
    %p116 = pneg %p110
    %p117 = scmp.eq.s32.totalorder %s12, 1
    %p118 = por %p116, %p117
    %p119 = scmp.ne.s32.totalorder %s111, %s114
    %p120 = scmp.eq.s32.totalorder %s12, 0
    %p121 = por %p119, %p120
    %p122 = scmp.ne.s32.totalorder %s111, %s114
    %p123 = scmp.eq.s32.totalorder %s17, 1
    %p124 = por %p122, %p123
    %p125 = scmp.ne.s32.totalorder %s114, %s115
    %p126 = scmp.eq.s32.totalorder %s17, 0
    %p127 = por %p125, %p126
    %p128 = scmp.ne.s32.totalorder %s114, %s115
    %p129 = scmp.eq.s32.totalorder %s18, 1
    %p130 = por %p128, %p129
    %p132 = scmp.ne.s32.totalorder %s115, %s131
    %p133 = scmp.eq.s32.totalorder %s18, 0
    %p134 = por %p132, %p133
    %s135 = ssub.s32 %s12, %s19
    %p136 = scmp.eq.s32.totalorder %s135, 0
    %s138 = sadd.s32 %s137, 1
    %s139 = scalar_select %p136, %s137, %s138
    %p142 = pneg %p136
    %p143 = scmp.eq.s32.totalorder %s12, 1
    %p144 = por %p142, %p143
    %p145 = scmp.ne.s32.totalorder %s137, %s140
    %p146 = scmp.eq.s32.totalorder %s12, 0
    %p147 = por %p145, %p146
    %p148 = scmp.ne.s32.totalorder %s137, %s140
    %p149 = scmp.eq.s32.totalorder %s17, 1
    %p150 = por %p148, %p149
    %p151 = scmp.ne.s32.totalorder %s140, %s141
    %p152 = scmp.eq.s32.totalorder %s17, 0
    %p153 = por %p151, %p152
    %p154 = scmp.ne.s32.totalorder %s140, %s141
    %p155 = scmp.eq.s32.totalorder %s18, 1
    %p156 = por %p154, %p155
    %p158 = scmp.ne.s32.totalorder %s141, %s157
    %p159 = scmp.eq.s32.totalorder %s18, 0
    %p160 = por %p158, %p159
    %p161 = scmp.le.s32.totalorder 1, %s12
    %p162 = scmp.lt.s32.totalorder %s12, 3
    %p163 = pnand %p161, %p162
    %p164 = pneg %p163
    // Predicated region
    $region9: #{basic_block_forward.4} parent=5 // pred_check
      _
    $region10: #{basic_block_forward.4} parent=5 // pred_check_branch
      %166 = sbr.rel (%p163) target = $region12
    $region11: #{basic_block_forward.4} parent=5 // pred_region
      %s167 = ssub.s32 %s12, 1
      // Predicated region
      $region13: #{basic_block_forward.4} parent=11 // pred_check
        %p168 = pneg %p59
      $region14: #{basic_block_forward.4} parent=11 // pred_check_branch
        %170 = sbr.rel (%p168) target = $region16
      $region15: #{basic_block_forward.4} parent=11 // pred_region
        _
      $region16: #{basic_block_forward.4} parent=11 // pred_fallthru
        _
      // Predicated region
      $region17: #{basic_block_forward.4} parent=11 // pred_check
        %p171 = pneg %p80
      $region18: #{basic_block_forward.4} parent=11 // pred_check_branch
        %173 = sbr.rel (%p171) target = $region20
      $region19: #{basic_block_forward.4} parent=11 // pred_region
        _
      $region20: #{basic_block_forward.4} parent=11 // pred_fallthru
        _
      // Predicated region
      $region21: #{basic_block_forward.4} parent=11 // pred_check
        %p174 = pneg %p101
      $region22: #{basic_block_forward.4} parent=11 // pred_check_branch
        %176 = sbr.rel (%p174) target = $region24
      $region23: #{basic_block_forward.4} parent=11 // pred_region
        _
      $region24: #{basic_block_forward.4} parent=11 // pred_fallthru
        _
    $region12: #{basic_block_forward.4} parent=5 // pred_fallthru
      _
    %p177 = scmp.lt.s32.totalorder %s12, 2
    // Predicated region
    $region25: #{basic_block_forward.4} parent=5 // pred_check
      %p178 = pneg %p177
    $region26: #{basic_block_forward.4} parent=5 // pred_check_branch
      %180 = sbr.rel (%p178) target = $region28
    $region27: #{basic_block_forward.4} parent=5 // pred_region
      // Predicated region
      $region29: #{basic_block_forward.4} parent=27 // pred_check
        %p181 = pneg %p32
      $region30: #{basic_block_forward.4} parent=27 // pred_check_branch
        %183 = sbr.rel (%p181) target = $region32
      $region31: #{basic_block_forward.4} parent=27 // pred_region
        %p184 = scmp.lt.s32.totalorder %s12, 1
        %s185 = scalar_select %p184, %s12, 1
        %s186 = smul.addr %s185, 8
        %s187 = smul.addr %s186, 4
        %s188 = scalar_lea.vmem %s0, %s187
      $region32: #{basic_block_forward.4} parent=27 // pred_fallthru
        _
    $region28: #{basic_block_forward.4} parent=5 // pred_fallthru
      _
    %p189 = scmp.le.s32.totalorder 1, %s12
    %p190 = scmp.lt.s32.totalorder %s12, 3
    %p191 = pnand %p189, %p190
    %p192 = pneg %p191
    // Predicated region
    $region33: #{basic_block_forward.4} parent=5 // pred_check
      _
    $region34: #{basic_block_forward.4} parent=5 // pred_check_branch
      %194 = sbr.rel (%p191) target = $region36
    $region35: #{basic_block_forward.4} parent=5 // pred_region
      %s195 = ssub.s32 %s12, 1
      %p196 = scmp.lt.s32.totalorder %s17, 1
      %s197 = scalar_select %p196, %s17, 1
      %s198 = smul.addr %s197, 8
      %s199 = smul.addr %s198, 4
      %s200 = scalar_lea.vmem %s0, %s199
      %p201 = pneg %p38
      %p202 = pneg %p35
      %p203 = pneg %p59
      %p204 = pneg %p56
      %p205 = pneg %p80
      %p206 = pneg %p77
      %p207 = pneg %p101
      %p208 = pneg %p98
      %p209 = pneg %p127
      %p210 = pneg %p124
      %p211 = scmp.lt.s32.totalorder %s17, 1
      %s212 = scalar_select %p211, %s17, 1
      %s213 = smul.addr %s212, 8
      %s214 = smul.addr %s213, 4
      %s215 = scalar_lea.vmem %s4, %s214
      %p216 = pneg %p153
      %p217 = pneg %p150
      %p218 = scmp.lt.s32.totalorder %s17, 1
      %s219 = scalar_select %p218, %s17, 1
      %s220 = smul.addr %s219, 2
      %s221 = scalar_lea.vmem %s5, %s220
      %p222 = scmp.lt.s32.totalorder %s17, 1
      %s223 = scalar_select %p222, %s17, 1
      %s224 = smul.addr %s223, 8
      %s225 = smul.addr %s224, 4
      %s226 = scalar_lea.vmem %s0, %s225
      %p227 = scmp.lt.s32.totalorder %s17, 1
      %s228 = scalar_select %p227, %s17, 1
      %s229 = smul.addr %s228, 8
      %s230 = smul.addr %s229, 4
      %s231 = scalar_lea.vmem %s4, %s230
      %p232 = scmp.lt.s32.totalorder %s17, 1
      %s233 = scalar_select %p232, %s17, 1
      %s234 = smul.addr %s233, 2
      %s235 = scalar_lea.vmem %s5, %s234
      %237 = vst [vmem:[#allocation2] sm:$0xff] 0
      %238 = vst [vmem:[#allocation2 + $0x8] sm:$0xf] 0
      %s239 = scalar_lea.vmem [#allocation2], 108
      %240 = vst [vmem:[%s239] sm:$0xff] 0
      %241 = vst [vmem:[%s239 + $0x8] sm:$0xf] 0
      %s242 = scalar_lea.vmem [#allocation2], 12
      %vm243 = vcmask 1040384
      %vm244 = vsmask.f32 256
      %vm245 = vmand %vm243, %vm244
      %v246 = vld [vmem:[%s242] sm:$0x1]
      %v247 = vsel %vm245, 0, %v246
      %248 = vst [vmem:[%s242] sm:$0x1] %v247
      %v249 = vld [vmem:[%s242 + $0xc] sm:$0x1]
      %v250 = vsel %vm245, 0, %v249
      %251 = vst [vmem:[%s242 + $0xc] sm:$0x1] %v250
      %v252 = vld [vmem:[%s242 + $0x18] sm:$0x1]
      %v253 = vsel %vm245, 0, %v252
      %254 = vst [vmem:[%s242 + $0x18] sm:$0x1] %v253
      %v255 = vld [vmem:[%s242 + $0x24] sm:$0x1]
      %v256 = vsel %vm245, 0, %v255
      %257 = vst [vmem:[%s242 + $0x24] sm:$0x1] %v256
      %v258 = vld [vmem:[%s242 + $0x30] sm:$0x1]
      %v259 = vsel %vm245, 0, %v258
      %260 = vst [vmem:[%s242 + $0x30] sm:$0x1] %v259
      %v261 = vld [vmem:[%s242 + $0x3c] sm:$0x1]
      %v262 = vsel %vm245, 0, %v261
      %263 = vst [vmem:[%s242 + $0x3c] sm:$0x1] %v262
      %v264 = vld [vmem:[%s242 + $0x48] sm:$0x1]
      %v265 = vsel %vm245, 0, %v264
      %266 = vst [vmem:[%s242 + $0x48] sm:$0x1] %v265
      %v267 = vld [vmem:[%s242 + $0x54] sm:$0x1]
      %v268 = vsel %vm245, 0, %v267
      %269 = vst [vmem:[%s242 + $0x54] sm:$0x1] %v268
      %vm270 = vcmask 1043459
      %vm271 = vsmask.f32 7950
      %vm272 = vmand %vm270, %vm271
      %v273 = vld [vmem:[%s242 + $0x8] sm:$0x8]
      %v274 = vsel %vm272, 0, %v273
      %275 = vst [vmem:[%s242 + $0x8] sm:$0x8] %v274
      %v276 = vld [vmem:[%s242 + $0x14] sm:$0x8]
      %v277 = vsel %vm272, 0, %v276
      %278 = vst [vmem:[%s242 + $0x14] sm:$0x8] %v277
      %v279 = vld [vmem:[%s242 + $0x20] sm:$0x8]
      %v280 = vsel %vm272, 0, %v279
      %281 = vst [vmem:[%s242 + $0x20] sm:$0x8] %v280
      %v282 = vld [vmem:[%s242 + $0x2c] sm:$0x8]
      %v283 = vsel %vm272, 0, %v282
      %284 = vst [vmem:[%s242 + $0x2c] sm:$0x8] %v283
      %v285 = vld [vmem:[%s242 + $0x38] sm:$0x8]
      %v286 = vsel %vm272, 0, %v285
      %287 = vst [vmem:[%s242 + $0x38] sm:$0x8] %v286
      %v288 = vld [vmem:[%s242 + $0x44] sm:$0x8]
      %v289 = vsel %vm272, 0, %v288
      %290 = vst [vmem:[%s242 + $0x44] sm:$0x8] %v289
      %v291 = vld [vmem:[%s242 + $0x50] sm:$0x8]
      %v292 = vsel %vm272, 0, %v291
      %293 = vst [vmem:[%s242 + $0x50] sm:$0x8] %v292
      %v294 = vld [vmem:[%s242 + $0x5c] sm:$0x8]
      %v295 = vsel %vm272, 0, %v294
      %296 = vst [vmem:[%s242 + $0x5c] sm:$0x8] %v295
      %v297 = vld [vmem:[%s1] sm:$0x1]
      %v298 = vld [vmem:[%s2] sm:$0x1]
      %v299 = vld [vmem:[%s226] sm:$0xf]
      %v300 = vld [vmem:[%s226 + $0x4] sm:$0xf]
      %v301 = vld [vmem:[%s226 + $0x8] sm:$0xf]
      %v302 = vld [vmem:[%s226 + $0xc] sm:$0xf]
      %v303 = vld [vmem:[%s226 + $0x10] sm:$0xf]
      %v304 = vld [vmem:[%s226 + $0x14] sm:$0xf]
      %v305 = vld [vmem:[%s226 + $0x18] sm:$0xf]
      %v306 = vld [vmem:[%s226 + $0x1c] sm:$0xf]
      %v307 = vunpack.c.l.bf16 %v299
      %v308 = vunpack.c.l.bf16 %v300
      %v309 = vunpack.c.l.bf16 %v301
      %v310 = vunpack.c.l.bf16 %v302
      %v311 = vunpack.c.l.bf16 %v303
      %v312 = vunpack.c.l.bf16 %v304
      %v313 = vunpack.c.l.bf16 %v305
      %v314 = vunpack.c.l.bf16 %v306
      %v316 = vlaneseq
      %v317 = vshrl.u32 %v316, 7
      %v318 = vsub.s32 0, %v317
      %v319 = vrot.slane %v297, %v318
      %v321 = vmul.f32 %v307, %v319
      %v322 = vmul.f32 %v308, %v319
      %v323 = vmul.f32 %v309, %v319
      %v324 = vmul.f32 %v310, %v319
      %v325 = vmul.f32 %v311, %v319
      %v326 = vmul.f32 %v312, %v319
      %v327 = vmul.f32 %v313, %v319
      %v328 = vmul.f32 %v314, %v319
      %v330 = vlaneseq
      %v331 = vshrl.u32 %v330, 7
      %v332 = vsub.s32 0, %v331
      %v333 = vrot.slane %v298, %v332
      %v335 = vadd.f32 %v321, %v333
      %v336 = vadd.f32 %v322, %v333
      %v337 = vadd.f32 %v323, %v333
      %v338 = vadd.f32 %v324, %v333
      %v339 = vadd.f32 %v325, %v333
      %v340 = vadd.f32 %v326, %v333
      %v341 = vadd.f32 %v327, %v333
      %v342 = vadd.f32 %v328, %v333
      %v343 = vmax.f32 %v335, 0.0
      %v344 = vmax.f32 %v336, 0.0
      %v345 = vmax.f32 %v337, 0.0
      %v346 = vmax.f32 %v338, 0.0
      %v347 = vmax.f32 %v339, 0.0
      %v348 = vmax.f32 %v340, 0.0
      %v349 = vmax.f32 %v341, 0.0
      %v350 = vmax.f32 %v342, 0.0
      %v351 = vpack.c.bf16 %v343, %v343
      %v352 = vpack.c.bf16 %v344, %v344
      %v353 = vpack.c.bf16 %v345, %v345
      %v354 = vpack.c.bf16 %v346, %v346
      %v355 = vpack.c.bf16 %v347, %v347
      %v356 = vpack.c.bf16 %v348, %v348
      %v357 = vpack.c.bf16 %v349, %v349
      %v358 = vpack.c.bf16 %v350, %v350
      %s359 = sadd.s32 0, 1
      %v368 = vunpack.c.l.b16 %v351
      %v369 = vunpack.c.l.b16 %v352
      %v370 = vunpack.c.l.b16 %v353
      %v371 = vunpack.c.l.b16 %v354
      %v372 = vunpack.c.l.b16 %v355
      %v373 = vunpack.c.l.b16 %v356
      %v374 = vunpack.c.l.b16 %v357
      %v375 = vunpack.c.l.b16 %v358
      %v376 = vpack.c.b16 %v368, %v368
      %v377 = vpack.c.b16 %v369, %v369
      %v378 = vpack.c.b16 %v370, %v370
      %v379 = vpack.c.b16 %v371, %v371
      %v380 = vpack.c.b16 %v372, %v372
      %v381 = vpack.c.b16 %v373, %v373
      %v382 = vpack.c.b16 %v374, %v374
      %v383 = vpack.c.b16 %v375, %v375
      %v385 = vshrl.u32 %v376, 16
      %v387 = vrot.slane %v385, 7
      %v388 = vshll.u32 %v376, 16
      %v390 = vor.u32 %v387, %v388
      %v392 = vshrl.u32 %v377, 16
      %v394 = vrot.slane %v392, 7
      %v395 = vshll.u32 %v377, 16
      %v397 = vor.u32 %v394, %v395
      %v399 = vshrl.u32 %v378, 16
      %v401 = vrot.slane %v399, 7
      %v402 = vshll.u32 %v378, 16
      %v404 = vor.u32 %v401, %v402
      %v406 = vshrl.u32 %v379, 16
      %v408 = vrot.slane %v406, 7
      %v409 = vshll.u32 %v379, 16
      %v411 = vor.u32 %v408, %v409
      %v413 = vshrl.u32 %v380, 16
      %v415 = vrot.slane %v413, 7
      %v416 = vshll.u32 %v380, 16
      %v418 = vor.u32 %v415, %v416
      %v420 = vshrl.u32 %v381, 16
      %v422 = vrot.slane %v420, 7
      %v423 = vshll.u32 %v381, 16
      %v425 = vor.u32 %v422, %v423
      %v427 = vshrl.u32 %v382, 16
      %v429 = vrot.slane %v427, 7
      %v430 = vshll.u32 %v382, 16
      %v432 = vor.u32 %v429, %v430
      %v434 = vshrl.u32 %v383, 16
      %v436 = vrot.slane %v434, 7
      %v437 = vshll.u32 %v383, 16
      %v439 = vor.u32 %v436, %v437
      %s448 = smul.u32 %s359, 3
      %s449 = smul.addr %s448, 4
      %s450 = scalar_lea.vmem [#allocation2], %s449
      %vm451 = vcmask 1043456
      %vm452 = vsmask.f32 7938
      %vm453 = vmand %vm451, %vm452
      %v454 = vld [vmem:[%s450] sm:$0xf]
      %v455 = vsel %vm453, %v390, %v454
      %456 = vst [vmem:[%s450] sm:$0xf] %v455
      %v457 = vld [vmem:[%s450 + $0xc] sm:$0xf]
      %v458 = vsel %vm453, %v397, %v457
      %459 = vst [vmem:[%s450 + $0xc] sm:$0xf] %v458
      %v460 = vld [vmem:[%s450 + $0x18] sm:$0xf]
      %v461 = vsel %vm453, %v404, %v460
      %462 = vst [vmem:[%s450 + $0x18] sm:$0xf] %v461
      %v463 = vld [vmem:[%s450 + $0x24] sm:$0xf]
      %v464 = vsel %vm453, %v411, %v463
      %465 = vst [vmem:[%s450 + $0x24] sm:$0xf] %v464
      %v466 = vld [vmem:[%s450 + $0x30] sm:$0xf]
      %v467 = vsel %vm453, %v418, %v466
      %468 = vst [vmem:[%s450 + $0x30] sm:$0xf] %v467
      %v469 = vld [vmem:[%s450 + $0x3c] sm:$0xf]
      %v470 = vsel %vm453, %v425, %v469
      %471 = vst [vmem:[%s450 + $0x3c] sm:$0xf] %v470
      %v472 = vld [vmem:[%s450 + $0x48] sm:$0xf]
      %v473 = vsel %vm453, %v432, %v472
      %474 = vst [vmem:[%s450 + $0x48] sm:$0xf] %v473
      %v475 = vld [vmem:[%s450 + $0x54] sm:$0xf]
      %v476 = vsel %vm453, %v439, %v475
      %477 = vst [vmem:[%s450 + $0x54] sm:$0xf] %v476
      %478 = vst [vmem:[%s450 + $0x4] sm:$0xf] %v351
      %479 = vst [vmem:[%s450 + $0x10] sm:$0xf] %v352
      %480 = vst [vmem:[%s450 + $0x1c] sm:$0xf] %v353
      %481 = vst [vmem:[%s450 + $0x28] sm:$0xf] %v354
      %482 = vst [vmem:[%s450 + $0x34] sm:$0xf] %v355
      %483 = vst [vmem:[%s450 + $0x40] sm:$0xf] %v356
      %484 = vst [vmem:[%s450 + $0x4c] sm:$0xf] %v357
      %485 = vst [vmem:[%s450 + $0x58] sm:$0xf] %v358
      %v486 = vrot.slane %v385, 4
      %v487 = vrot.slane %v388, 5
      %v488 = vor.u32 %v486, %v487
      %v489 = vrot.slane %v488, 4
      %v490 = vrot.slane %v392, 4
      %v491 = vrot.slane %v395, 5
      %v492 = vor.u32 %v490, %v491
      %v493 = vrot.slane %v492, 4
      %v494 = vrot.slane %v399, 4
      %v495 = vrot.slane %v402, 5
      %v496 = vor.u32 %v494, %v495
      %v497 = vrot.slane %v496, 4
      %v498 = vrot.slane %v406, 4
      %v499 = vrot.slane %v409, 5
      %v500 = vor.u32 %v498, %v499
      %v501 = vrot.slane %v500, 4
      %v502 = vrot.slane %v413, 4
      %v503 = vrot.slane %v416, 5
      %v504 = vor.u32 %v502, %v503
      %v505 = vrot.slane %v504, 4
      %v506 = vrot.slane %v420, 4
      %v507 = vrot.slane %v423, 5
      %v508 = vor.u32 %v506, %v507
      %v509 = vrot.slane %v508, 4
      %v510 = vrot.slane %v427, 4
      %v511 = vrot.slane %v430, 5
      %v512 = vor.u32 %v510, %v511
      %v513 = vrot.slane %v512, 4
      %v514 = vrot.slane %v434, 4
      %v515 = vrot.slane %v437, 5
      %v516 = vor.u32 %v514, %v515
      %v517 = vrot.slane %v516, 4
      %vm526 = vsmask.f32 3328
      %vm527 = vmand %vm451, %vm526
      %v528 = vld [vmem:[%s450 + $0x8] sm:$0xf]
      %v529 = vsel %vm527, %v489, %v528
      %530 = vst [vmem:[%s450 + $0x8] sm:$0xf] %v529
      %v531 = vld [vmem:[%s450 + $0x14] sm:$0xf]
      %v532 = vsel %vm527, %v493, %v531
      %533 = vst [vmem:[%s450 + $0x14] sm:$0xf] %v532
      %v534 = vld [vmem:[%s450 + $0x20] sm:$0xf]
      %v535 = vsel %vm527, %v497, %v534
      %536 = vst [vmem:[%s450 + $0x20] sm:$0xf] %v535
      %v537 = vld [vmem:[%s450 + $0x2c] sm:$0xf]
      %v538 = vsel %vm527, %v501, %v537
      %539 = vst [vmem:[%s450 + $0x2c] sm:$0xf] %v538
      %v540 = vld [vmem:[%s450 + $0x38] sm:$0xf]
      %v541 = vsel %vm527, %v505, %v540
      %542 = vst [vmem:[%s450 + $0x38] sm:$0xf] %v541
      %v543 = vld [vmem:[%s450 + $0x44] sm:$0xf]
      %v544 = vsel %vm527, %v509, %v543
      %545 = vst [vmem:[%s450 + $0x44] sm:$0xf] %v544
      %v546 = vld [vmem:[%s450 + $0x50] sm:$0xf]
      %v547 = vsel %vm527, %v513, %v546
      %548 = vst [vmem:[%s450 + $0x50] sm:$0xf] %v547
      %v549 = vld [vmem:[%s450 + $0x5c] sm:$0xf]
      %v550 = vsel %vm527, %v517, %v549
      %551 = vst [vmem:[%s450 + $0x5c] sm:$0xf] %v550
      %s552 = smul.u32 0, 3
      %s553 = smul.addr %s552, 4
      %s554 = scalar_lea.vmem [#allocation2], %s553
      %v555 = vld [vmem:[%s554] sm:$0xff]
      %v556 = vld [vmem:[%s554 + $0x8] sm:$0xf]
      %v557 = vld [vmem:[%s554 + $0xc] sm:$0xff]
      %v558 = vld [vmem:[%s554 + $0x14] sm:$0xf]
      %v559 = vld [vmem:[%s554 + $0x18] sm:$0xff]
      %v560 = vld [vmem:[%s554 + $0x20] sm:$0xf]
      %v561 = vld [vmem:[%s554 + $0x24] sm:$0xff]
      %v562 = vld [vmem:[%s554 + $0x2c] sm:$0xf]
      %v563 = vld [vmem:[%s554 + $0x30] sm:$0xff]
      %v564 = vld [vmem:[%s554 + $0x38] sm:$0xf]
      %v565 = vld [vmem:[%s554 + $0x3c] sm:$0xff]
      %v566 = vld [vmem:[%s554 + $0x44] sm:$0xf]
      %v567 = vld [vmem:[%s554 + $0x48] sm:$0xff]
      %v568 = vld [vmem:[%s554 + $0x50] sm:$0xf]
      %v569 = vld [vmem:[%s554 + $0x54] sm:$0xff]
      %v570 = vld [vmem:[%s554 + $0x5c] sm:$0xf]
      %v571 = vld [vmem:[%s3] sm:$0xf]
      %v572 = vld [vmem:[%s3 + $0x4] sm:$0xf]
      %v573 = vld [vmem:[%s3 + $0x8] sm:$0xf]
      %v574 = vld [vmem:[%s3 + $0xc] sm:$0xf]
      %v575 = vld [vmem:[%s3 + $0x10] sm:$0xf]
      %v576 = vld [vmem:[%s3 + $0x14] sm:$0xf]
      %v577 = vld [vmem:[%s3 + $0x18] sm:$0xf]
      %v578 = vld [vmem:[%s3 + $0x1c] sm:$0xf]
      %v579 = vld [vmem:[%s3 + $0x20] sm:$0xf]
      %v580 = vld [vmem:[%s3 + $0x24] sm:$0xf]
      %v581 = vld [vmem:[%s3 + $0x28] sm:$0xf]
      %v582 = vld [vmem:[%s3 + $0x2c] sm:$0xf]
      %v583 = vld [vmem:[%s3 + $0x30] sm:$0xf]
      %v584 = vld [vmem:[%s3 + $0x34] sm:$0xf]
      %v585 = vld [vmem:[%s3 + $0x38] sm:$0xf]
      %v586 = vld [vmem:[%s3 + $0x3c] sm:$0xf]
      %v587 = vld [vmem:[%s3 + $0x40] sm:$0xf]
      %v588 = vld [vmem:[%s3 + $0x44] sm:$0xf]
      %v589 = vld [vmem:[%s3 + $0x48] sm:$0xf]
      %v590 = vld [vmem:[%s3 + $0x4c] sm:$0xf]
      %v591 = vld [vmem:[%s3 + $0x50] sm:$0xf]
      %v592 = vld [vmem:[%s3 + $0x54] sm:$0xf]
      %v593 = vld [vmem:[%s3 + $0x58] sm:$0xf]
      %v594 = vld [vmem:[%s3 + $0x5c] sm:$0xf]
      %v595 = vld [vmem:[%s3 + $0x60] sm:$0xf]
      %v596 = vld [vmem:[%s3 + $0x64] sm:$0xf]
      %v597 = vld [vmem:[%s3 + $0x68] sm:$0xf]
      %v598 = vld [vmem:[%s3 + $0x6c] sm:$0xf]
      %v599 = vld [vmem:[%s3 + $0x70] sm:$0xf]
      %v600 = vld [vmem:[%s3 + $0x74] sm:$0xf]
      %v601 = vld [vmem:[%s3 + $0x78] sm:$0xf]
      %v602 = vld [vmem:[%s3 + $0x7c] sm:$0xf]
      %v603 = vld [vmem:[%s3 + $0x80] sm:$0xf]
      %v604 = vld [vmem:[%s3 + $0x84] sm:$0xf]
      %v605 = vld [vmem:[%s3 + $0x88] sm:$0xf]
      %v606 = vld [vmem:[%s3 + $0x8c] sm:$0xf]
      %v607 = vld [vmem:[%s3 + $0x90] sm:$0xf]
      %v608 = vld [vmem:[%s3 + $0x94] sm:$0xf]
      %v609 = vld [vmem:[%s3 + $0x98] sm:$0xf]
      %v610 = vld [vmem:[%s3 + $0x9c] sm:$0xf]
      %v611 = vld [vmem:[%s3 + $0xa0] sm:$0xf]
      %v612 = vld [vmem:[%s3 + $0xa4] sm:$0xf]
      %v613 = vld [vmem:[%s3 + $0xa8] sm:$0xf]
      %v614 = vld [vmem:[%s3 + $0xac] sm:$0xf]
      %v615 = vld [vmem:[%s3 + $0xb0] sm:$0xf]
      %v616 = vld [vmem:[%s3 + $0xb4] sm:$0xf]
      %v617 = vld [vmem:[%s3 + $0xb8] sm:$0xf]
      %v618 = vld [vmem:[%s3 + $0xbc] sm:$0xf]
      %v619 = vld [vmem:[%s450] sm:$0xff]
      %v620 = vld [vmem:[%s450 + $0x8] sm:$0xf]
      %v621 = vld [vmem:[%s450 + $0xc] sm:$0xff]
      %v622 = vld [vmem:[%s450 + $0x14] sm:$0xf]
      %v623 = vld [vmem:[%s450 + $0x18] sm:$0xff]
      %v624 = vld [vmem:[%s450 + $0x20] sm:$0xf]
      %v625 = vld [vmem:[%s450 + $0x24] sm:$0xff]
      %v626 = vld [vmem:[%s450 + $0x2c] sm:$0xf]
      %v627 = vld [vmem:[%s450 + $0x30] sm:$0xff]
      %v628 = vld [vmem:[%s450 + $0x38] sm:$0xf]
      %v629 = vld [vmem:[%s450 + $0x3c] sm:$0xff]
      %v630 = vld [vmem:[%s450 + $0x44] sm:$0xf]
      %v631 = vld [vmem:[%s450 + $0x48] sm:$0xff]
      %v632 = vld [vmem:[%s450 + $0x50] sm:$0xf]
      %v633 = vld [vmem:[%s450 + $0x54] sm:$0xff]
      %v634 = vld [vmem:[%s450 + $0x5c] sm:$0xf]
      %s635 = scalar_lea.vmem %s3, 192
      %v636 = vld [vmem:[%s635] sm:$0xf]
      %v637 = vld [vmem:[%s635 + $0x4] sm:$0xf]
      %v638 = vld [vmem:[%s635 + $0x8] sm:$0xf]
      %v639 = vld [vmem:[%s635 + $0xc] sm:$0xf]
      %v640 = vld [vmem:[%s635 + $0x10] sm:$0xf]
      %v641 = vld [vmem:[%s635 + $0x14] sm:$0xf]
      %v642 = vld [vmem:[%s635 + $0x18] sm:$0xf]
      %v643 = vld [vmem:[%s635 + $0x1c] sm:$0xf]
      %v644 = vld [vmem:[%s635 + $0x20] sm:$0xf]
      %v645 = vld [vmem:[%s635 + $0x24] sm:$0xf]
      %v646 = vld [vmem:[%s635 + $0x28] sm:$0xf]
      %v647 = vld [vmem:[%s635 + $0x2c] sm:$0xf]
      %v648 = vld [vmem:[%s635 + $0x30] sm:$0xf]
      %v649 = vld [vmem:[%s635 + $0x34] sm:$0xf]
      %v650 = vld [vmem:[%s635 + $0x38] sm:$0xf]
      %v651 = vld [vmem:[%s635 + $0x3c] sm:$0xf]
      %v652 = vld [vmem:[%s635 + $0x40] sm:$0xf]
      %v653 = vld [vmem:[%s635 + $0x44] sm:$0xf]
      %v654 = vld [vmem:[%s635 + $0x48] sm:$0xf]
      %v655 = vld [vmem:[%s635 + $0x4c] sm:$0xf]
      %v656 = vld [vmem:[%s635 + $0x50] sm:$0xf]
      %v657 = vld [vmem:[%s635 + $0x54] sm:$0xf]
      %v658 = vld [vmem:[%s635 + $0x58] sm:$0xf]
      %v659 = vld [vmem:[%s635 + $0x5c] sm:$0xf]
      %v660 = vld [vmem:[%s635 + $0x60] sm:$0xf]
      %v661 = vld [vmem:[%s635 + $0x64] sm:$0xf]
      %v662 = vld [vmem:[%s635 + $0x68] sm:$0xf]
      %v663 = vld [vmem:[%s635 + $0x6c] sm:$0xf]
      %v664 = vld [vmem:[%s635 + $0x70] sm:$0xf]
      %v665 = vld [vmem:[%s635 + $0x74] sm:$0xf]
      %v666 = vld [vmem:[%s635 + $0x78] sm:$0xf]
      %v667 = vld [vmem:[%s635 + $0x7c] sm:$0xf]
      %v668 = vld [vmem:[%s635 + $0x80] sm:$0xf]
      %v669 = vld [vmem:[%s635 + $0x84] sm:$0xf]
      %v670 = vld [vmem:[%s635 + $0x88] sm:$0xf]
      %v671 = vld [vmem:[%s635 + $0x8c] sm:$0xf]
      %v672 = vld [vmem:[%s635 + $0x90] sm:$0xf]
      %v673 = vld [vmem:[%s635 + $0x94] sm:$0xf]
      %v674 = vld [vmem:[%s635 + $0x98] sm:$0xf]
      %v675 = vld [vmem:[%s635 + $0x9c] sm:$0xf]
      %v676 = vld [vmem:[%s635 + $0xa0] sm:$0xf]
      %v677 = vld [vmem:[%s635 + $0xa4] sm:$0xf]
      %v678 = vld [vmem:[%s635 + $0xa8] sm:$0xf]
      %v679 = vld [vmem:[%s635 + $0xac] sm:$0xf]
      %v680 = vld [vmem:[%s635 + $0xb0] sm:$0xf]
      %v681 = vld [vmem:[%s635 + $0xb4] sm:$0xf]
      %v682 = vld [vmem:[%s635 + $0xb8] sm:$0xf]
      %v683 = vld [vmem:[%s635 + $0xbc] sm:$0xf]
      %v700 = vunpack.c.l.b16 %v619
      %v701 = vunpack.c.h.b16 %v619
      %v702 = vunpack.c.l.b16 %v620
      %v703 = vunpack.c.l.b16 %v621
      %v704 = vunpack.c.h.b16 %v621
      %v705 = vunpack.c.l.b16 %v622
      %v706 = vunpack.c.l.b16 %v623
      %v707 = vunpack.c.h.b16 %v623
      %v708 = vunpack.c.l.b16 %v624
      %v709 = vunpack.c.l.b16 %v625
      %v710 = vunpack.c.h.b16 %v625
      %v711 = vunpack.c.l.b16 %v626
      %v712 = vunpack.c.l.b16 %v627
      %v713 = vunpack.c.h.b16 %v627
      %v714 = vunpack.c.l.b16 %v628
      %v715 = vunpack.c.l.b16 %v629
      %v716 = vunpack.c.h.b16 %v629
      %v717 = vunpack.c.l.b16 %v630
      %v718 = vunpack.c.l.b16 %v631
      %v719 = vunpack.c.h.b16 %v631
      %v720 = vunpack.c.l.b16 %v632
      %v721 = vunpack.c.l.b16 %v633
      %v722 = vunpack.c.h.b16 %v633
      %v723 = vunpack.c.l.b16 %v634
      %v724 = vpack.c.b16 %v703, %v700
      %v725 = vpack.c.b16 %v704, %v701
      %v726 = vpack.c.b16 %v705, %v702
      %v727 = vpack.c.b16 %v709, %v706
      %v728 = vpack.c.b16 %v710, %v707
      %v729 = vpack.c.b16 %v711, %v708
      %v730 = vpack.c.b16 %v715, %v712
      %v731 = vpack.c.b16 %v716, %v713
      %v732 = vpack.c.b16 %v717, %v714
      %v733 = vpack.c.b16 %v721, %v718
      %v734 = vpack.c.b16 %v722, %v719
      %v735 = vpack.c.b16 %v723, %v720
      %v796 = vunpack.c.l.b16 %v636
      %v797 = vunpack.c.l.b16 %v637
      %v798 = vunpack.c.l.b16 %v638
      %v799 = vunpack.c.l.b16 %v639
      %v800 = vunpack.c.l.b16 %v640
      %v801 = vunpack.c.l.b16 %v641
      %v802 = vunpack.c.l.b16 %v642
      %v803 = vunpack.c.l.b16 %v643
      %v804 = vunpack.c.l.b16 %v644
      %v805 = vunpack.c.l.b16 %v645
      %v806 = vunpack.c.l.b16 %v646
      %v807 = vunpack.c.l.b16 %v647
      %v808 = vunpack.c.l.b16 %v648
      %v809 = vunpack.c.l.b16 %v649
      %v810 = vunpack.c.l.b16 %v650
      %v811 = vunpack.c.l.b16 %v651
      %v812 = vunpack.c.l.b16 %v652
      %v813 = vunpack.c.l.b16 %v653
      %v814 = vunpack.c.l.b16 %v654
      %v815 = vunpack.c.l.b16 %v655
      %v816 = vunpack.c.l.b16 %v656
      %v817 = vunpack.c.l.b16 %v657
      %v818 = vunpack.c.l.b16 %v658
      %v819 = vunpack.c.l.b16 %v659
      %v820 = vunpack.c.l.b16 %v660
      %v821 = vunpack.c.l.b16 %v661
      %v822 = vunpack.c.l.b16 %v662
      %v823 = vunpack.c.l.b16 %v663
      %v824 = vunpack.c.l.b16 %v664
      %v825 = vunpack.c.l.b16 %v665
      %v826 = vunpack.c.l.b16 %v666
      %v827 = vunpack.c.l.b16 %v667
      %v828 = vunpack.c.l.b16 %v668
      %v829 = vunpack.c.l.b16 %v669
      %v830 = vunpack.c.l.b16 %v670
      %v831 = vunpack.c.l.b16 %v671
      %v832 = vunpack.c.l.b16 %v672
      %v833 = vunpack.c.l.b16 %v673
      %v834 = vunpack.c.l.b16 %v674
      %v835 = vunpack.c.l.b16 %v675
      %v836 = vunpack.c.l.b16 %v676
      %v837 = vunpack.c.l.b16 %v677
      %v838 = vunpack.c.l.b16 %v678
      %v839 = vunpack.c.l.b16 %v679
      %v840 = vunpack.c.l.b16 %v680
      %v841 = vunpack.c.l.b16 %v681
      %v842 = vunpack.c.l.b16 %v682
      %v843 = vunpack.c.l.b16 %v683
      %v844 = vpack.c.b16 %v797, %v796
      %v845 = vpack.c.b16 %v799, %v798
      %v846 = vpack.c.b16 %v801, %v800
      %v847 = vpack.c.b16 %v803, %v802
      %v848 = vpack.c.b16 %v805, %v804
      %v849 = vpack.c.b16 %v807, %v806
      %v850 = vpack.c.b16 %v809, %v808
      %v851 = vpack.c.b16 %v811, %v810
      %v852 = vpack.c.b16 %v813, %v812
      %v853 = vpack.c.b16 %v815, %v814
      %v854 = vpack.c.b16 %v817, %v816
      %v855 = vpack.c.b16 %v819, %v818
      %v856 = vpack.c.b16 %v821, %v820
      %v857 = vpack.c.b16 %v823, %v822
      %v858 = vpack.c.b16 %v825, %v824
      %v859 = vpack.c.b16 %v827, %v826
      %v860 = vpack.c.b16 %v829, %v828
      %v861 = vpack.c.b16 %v831, %v830
      %v862 = vpack.c.b16 %v833, %v832
      %v863 = vpack.c.b16 %v835, %v834
      %v864 = vpack.c.b16 %v837, %v836
      %v865 = vpack.c.b16 %v839, %v838
      %v866 = vpack.c.b16 %v841, %v840
      %v867 = vpack.c.b16 %v843, %v842
      %892 = vmatprep.subr.bf16.mxu0 0
      %893 = vmatpush1.bf16.msra.mxu0 %v844
      %894 = vmatprep.subr.bf16.mxu0 0
      %895 = vmatpush1.bf16.msra.mxu0 %v845
      %896 = vmatprep.subr.bf16.mxu0 0
      %897 = vmatpush1.bf16.msra.mxu0 %v846
      %898 = vmatprep.subr.bf16.mxu0 0
      %899 = vmatpush1.bf16.msra.mxu0 %v847
      %900 = vmatprep.subr.bf16.mxu0 0
      %901 = vmatpush1.bf16.msra.mxu0 %v848
      %902 = vmatprep.subr.bf16.mxu0 0
      %903 = vmatpush1.bf16.msra.mxu0 %v849
      %904 = vmatprep.subr.bf16.mxu0 0
      %905 = vmatpush1.bf16.msra.mxu0 %v850
      %906 = vmatprep.subr.bf16.mxu0 0
      %907 = vmatpush1.bf16.msra.mxu0 %v851
      %908 = vmatprep.subr.bf16.mxu0 0
      %909 = vmatpush1.bf16.msra.mxu0 %v852
      %910 = vmatprep.subr.bf16.mxu0 0
      %911 = vmatpush1.bf16.msra.mxu0 %v853
      %912 = vmatprep.subr.bf16.mxu0 0
      %913 = vmatpush1.bf16.msra.mxu0 %v854
      %914 = vmatprep.subr.bf16.mxu0 0
      %915 = vmatpush1.bf16.msra.mxu0 %v855
      %916 = vmatprep.subr.bf16.mxu0 0
      %917 = vmatpush1.bf16.msra.mxu0 %v856
      %918 = vmatprep.subr.bf16.mxu0 0
      %919 = vmatpush1.bf16.msra.mxu0 %v857
      %920 = vmatprep.subr.bf16.mxu0 0
      %921 = vmatpush1.bf16.msra.mxu0 %v858
      %922 = vmatprep.subr.bf16.mxu0 0
      %923 = vmatpush1.bf16.msra.mxu0 %v859
      %924 = vmatprep.mubr.bf16.mxu0 %v725
      %925 = vmatmul.mubr.bf16.gmra.mrb[0].mxu0 %v724
      %v926 = vpop.f32.mrb[0].mxu0
      %v927 = vadd.f32 0.0, %v926
      %v928 = vpop.f32.mrb[0].mxu0
      %v929 = vpop.f32.mrb[0].mxu0
      %v930 = vadd.f32 0.0, %v929
      %v931 = vpop.f32.mrb[0].mxu0
      %932 = vmatprep.mubr.bf16.mxu0 %v728
      %933 = vmatmul.mubr.bf16.gmra.mrb[0].mxu0 %v727
      %v934 = vpop.f32.mrb[0].mxu0
      %v935 = vadd.f32 0.0, %v934
      %v936 = vpop.f32.mrb[0].mxu0
      %v937 = vpop.f32.mrb[0].mxu0
      %v938 = vadd.f32 0.0, %v937
      %v939 = vpop.f32.mrb[0].mxu0
      %940 = vmatprep.mubr.bf16.mxu0 %v731
      %941 = vmatmul.mubr.bf16.gmra.mrb[0].mxu0 %v730
      %v942 = vpop.f32.mrb[0].mxu0
      %v943 = vadd.f32 0.0, %v942
      %v944 = vpop.f32.mrb[0].mxu0
      %v945 = vpop.f32.mrb[0].mxu0
      %v946 = vadd.f32 0.0, %v945
      %v947 = vpop.f32.mrb[0].mxu0
      %948 = vmatprep.mubr.bf16.mxu0 %v734
      %949 = vmatmul.mubr.bf16.gmra.mrb[0].mxu0 %v733
      %v950 = vpop.f32.mrb[0].mxu0
      %v951 = vadd.f32 0.0, %v950
      %v952 = vpop.f32.mrb[0].mxu0
      %v953 = vpop.f32.mrb[0].mxu0
      %v954 = vadd.f32 0.0, %v953
      %v955 = vpop.f32.mrb[0].mxu0
      %956 = vdwg.mxu0
      %957 = vmatprep.subr.bf16.mxu0 0
      %958 = vmatpush1.bf16.msra.mxu0 %v860
      %959 = vmatprep.subr.bf16.mxu0 0
      %960 = vmatpush1.bf16.msra.mxu0 %v861
      %961 = vmatprep.subr.bf16.mxu0 0
      %962 = vmatpush1.bf16.msra.mxu0 %v862
      %963 = vmatprep.subr.bf16.mxu0 0
      %964 = vmatpush1.bf16.msra.mxu0 %v863
      %965 = vmatprep.subr.bf16.mxu0 0
      %966 = vmatpush1.bf16.msra.mxu0 %v864
      %967 = vmatprep.subr.bf16.mxu0 0
      %968 = vmatpush1.bf16.msra.mxu0 %v865
      %969 = vmatprep.subr.bf16.mxu0 0
      %970 = vmatpush1.bf16.msra.mxu0 %v866
      %971 = vmatprep.subr.bf16.mxu0 0
      %972 = vmatpush1.bf16.msra.mxu0 %v867
      %973 = vmatprep.subr.bf16.mxu0 0
      %974 = vmatpush1.bf16.msra.mxu0 0
      %975 = vmatprep.subr.bf16.mxu0 0
      %976 = vmatpush1.bf16.msra.mxu0 0
      %977 = vmatprep.subr.bf16.mxu0 0
      %978 = vmatpush1.bf16.msra.mxu0 0
      %979 = vmatprep.subr.bf16.mxu0 0
      %980 = vmatpush1.bf16.msra.mxu0 0
      %981 = vmatprep.subr.bf16.mxu0 0
      %982 = vmatpush1.bf16.msra.mxu0 0
      %983 = vmatprep.subr.bf16.mxu0 0
      %984 = vmatpush1.bf16.msra.mxu0 0
      %985 = vmatprep.subr.bf16.mxu0 0
      %986 = vmatpush1.bf16.msra.mxu0 0
      %987 = vmatprep.subr.bf16.mxu0 0
      %988 = vmatpush1.bf16.msra.mxu0 0
      %989 = vmatprep.mubr.bf16.mxu0 0
      %990 = vmatmul.mubr.bf16.gmra.mrb[0].mxu0 %v726
      %v991 = vpop.f32.mrb[0].mxu0
      %v992 = vadd.f32 %v927, %v991
      %v993 = vpop.f32.mrb[0].mxu0
      %v994 = vpop.f32.mrb[0].mxu0
      %v995 = vadd.f32 %v930, %v994
      %v996 = vpop.f32.mrb[0].mxu0
      %997 = vmatprep.mubr.bf16.mxu0 0
      %998 = vmatmul.mubr.bf16.gmra.mrb[0].mxu0 %v729
      %v999 = vpop.f32.mrb[0].mxu0
      %v1000 = vadd.f32 %v935, %v999
      %v1001 = vpop.f32.mrb[0].mxu0
      %v1002 = vpop.f32.mrb[0].mxu0
      %v1003 = vadd.f32 %v938, %v1002
      %v1004 = vpop.f32.mrb[0].mxu0
      %1005 = vmatprep.mubr.bf16.mxu0 0
      %1006 = vmatmul.mubr.bf16.gmra.mrb[0].mxu0 %v732
      %v1007 = vpop.f32.mrb[0].mxu0
      %v1008 = vadd.f32 %v943, %v1007
      %v1009 = vpop.f32.mrb[0].mxu0
      %v1010 = vpop.f32.mrb[0].mxu0
      %v1011 = vadd.f32 %v946, %v1010
      %v1012 = vpop.f32.mrb[0].mxu0
      %1013 = vmatprep.mubr.bf16.mxu0 0
      %1014 = vmatmul.mubr.bf16.gmra.mrb[0].mxu0 %v735
      %v1015 = vpop.f32.mrb[0].mxu0
      %v1016 = vadd.f32 %v951, %v1015
      %v1017 = vpop.f32.mrb[0].mxu0
      %v1018 = vpop.f32.mrb[0].mxu0
      %v1019 = vadd.f32 %v954, %v1018
      %v1020 = vpop.f32.mrb[0].mxu0
      %1021 = vdwg.mxu0
      %v1038 = vunpack.c.l.b16 %v555
      %v1039 = vunpack.c.h.b16 %v555
      %v1040 = vunpack.c.l.b16 %v556
      %v1041 = vunpack.c.l.b16 %v557
      %v1042 = vunpack.c.h.b16 %v557
      %v1043 = vunpack.c.l.b16 %v558
      %v1044 = vunpack.c.l.b16 %v559
      %v1045 = vunpack.c.h.b16 %v559
      %v1046 = vunpack.c.l.b16 %v560
      %v1047 = vunpack.c.l.b16 %v561
      %v1048 = vunpack.c.h.b16 %v561
      %v1049 = vunpack.c.l.b16 %v562
      %v1050 = vunpack.c.l.b16 %v563
      %v1051 = vunpack.c.h.b16 %v563
      %v1052 = vunpack.c.l.b16 %v564
      %v1053 = vunpack.c.l.b16 %v565
      %v1054 = vunpack.c.h.b16 %v565
      %v1055 = vunpack.c.l.b16 %v566
      %v1056 = vunpack.c.l.b16 %v567
      %v1057 = vunpack.c.h.b16 %v567
      %v1058 = vunpack.c.l.b16 %v568
      %v1059 = vunpack.c.l.b16 %v569
      %v1060 = vunpack.c.h.b16 %v569
      %v1061 = vunpack.c.l.b16 %v570
      %v1062 = vpack.c.b16 %v1041, %v1038
      %v1063 = vpack.c.b16 %v1042, %v1039
      %v1064 = vpack.c.b16 %v1043, %v1040
      %v1065 = vpack.c.b16 %v1047, %v1044
      %v1066 = vpack.c.b16 %v1048, %v1045
      %v1067 = vpack.c.b16 %v1049, %v1046
      %v1068 = vpack.c.b16 %v1053, %v1050
      %v1069 = vpack.c.b16 %v1054, %v1051
      %v1070 = vpack.c.b16 %v1055, %v1052
      %v1071 = vpack.c.b16 %v1059, %v1056
      %v1072 = vpack.c.b16 %v1060, %v1057
      %v1073 = vpack.c.b16 %v1061, %v1058
      %v1134 = vunpack.c.l.b16 %v571
      %v1135 = vunpack.c.l.b16 %v572
      %v1136 = vunpack.c.l.b16 %v573
      %v1137 = vunpack.c.l.b16 %v574
      %v1138 = vunpack.c.l.b16 %v575
      %v1139 = vunpack.c.l.b16 %v576
      %v1140 = vunpack.c.l.b16 %v577
      %v1141 = vunpack.c.l.b16 %v578
      %v1142 = vunpack.c.l.b16 %v579
      %v1143 = vunpack.c.l.b16 %v580
      %v1144 = vunpack.c.l.b16 %v581
      %v1145 = vunpack.c.l.b16 %v582
      %v1146 = vunpack.c.l.b16 %v583
      %v1147 = vunpack.c.l.b16 %v584
      %v1148 = vunpack.c.l.b16 %v585
      %v1149 = vunpack.c.l.b16 %v586
      %v1150 = vunpack.c.l.b16 %v587
      %v1151 = vunpack.c.l.b16 %v588
      %v1152 = vunpack.c.l.b16 %v589
      %v1153 = vunpack.c.l.b16 %v590
      %v1154 = vunpack.c.l.b16 %v591
      %v1155 = vunpack.c.l.b16 %v592
      %v1156 = vunpack.c.l.b16 %v593
      %v1157 = vunpack.c.l.b16 %v594
      %v1158 = vunpack.c.l.b16 %v595
      %v1159 = vunpack.c.l.b16 %v596
      %v1160 = vunpack.c.l.b16 %v597
      %v1161 = vunpack.c.l.b16 %v598
      %v1162 = vunpack.c.l.b16 %v599
      %v1163 = vunpack.c.l.b16 %v600
      %v1164 = vunpack.c.l.b16 %v601
      %v1165 = vunpack.c.l.b16 %v602
      %v1166 = vunpack.c.l.b16 %v603
      %v1167 = vunpack.c.l.b16 %v604
      %v1168 = vunpack.c.l.b16 %v605
      %v1169 = vunpack.c.l.b16 %v606
      %v1170 = vunpack.c.l.b16 %v607
      %v1171 = vunpack.c.l.b16 %v608
      %v1172 = vunpack.c.l.b16 %v609
      %v1173 = vunpack.c.l.b16 %v610
      %v1174 = vunpack.c.l.b16 %v611
      %v1175 = vunpack.c.l.b16 %v612
      %v1176 = vunpack.c.l.b16 %v613
      %v1177 = vunpack.c.l.b16 %v614
      %v1178 = vunpack.c.l.b16 %v615
      %v1179 = vunpack.c.l.b16 %v616
      %v1180 = vunpack.c.l.b16 %v617
      %v1181 = vunpack.c.l.b16 %v618
      %v1182 = vpack.c.b16 %v1135, %v1134
      %v1183 = vpack.c.b16 %v1137, %v1136
      %v1184 = vpack.c.b16 %v1139, %v1138
      %v1185 = vpack.c.b16 %v1141, %v1140
      %v1186 = vpack.c.b16 %v1143, %v1142
      %v1187 = vpack.c.b16 %v1145, %v1144
      %v1188 = vpack.c.b16 %v1147, %v1146
      %v1189 = vpack.c.b16 %v1149, %v1148
      %v1190 = vpack.c.b16 %v1151, %v1150
      %v1191 = vpack.c.b16 %v1153, %v1152
      %v1192 = vpack.c.b16 %v1155, %v1154
      %v1193 = vpack.c.b16 %v1157, %v1156
      %v1194 = vpack.c.b16 %v1159, %v1158
      %v1195 = vpack.c.b16 %v1161, %v1160
      %v1196 = vpack.c.b16 %v1163, %v1162
      %v1197 = vpack.c.b16 %v1165, %v1164
      %v1198 = vpack.c.b16 %v1167, %v1166
      %v1199 = vpack.c.b16 %v1169, %v1168
      %v1200 = vpack.c.b16 %v1171, %v1170
      %v1201 = vpack.c.b16 %v1173, %v1172
      %v1202 = vpack.c.b16 %v1175, %v1174
      %v1203 = vpack.c.b16 %v1177, %v1176
      %v1204 = vpack.c.b16 %v1179, %v1178
      %v1205 = vpack.c.b16 %v1181, %v1180
      %1230 = vmatprep.subr.bf16.mxu0 0
      %1231 = vmatpush1.bf16.msra.mxu0 %v1182
      %1232 = vmatprep.subr.bf16.mxu0 0
      %1233 = vmatpush1.bf16.msra.mxu0 %v1183
      %1234 = vmatprep.subr.bf16.mxu0 0
      %1235 = vmatpush1.bf16.msra.mxu0 %v1184
      %1236 = vmatprep.subr.bf16.mxu0 0
      %1237 = vmatpush1.bf16.msra.mxu0 %v1185
      %1238 = vmatprep.subr.bf16.mxu0 0
      %1239 = vmatpush1.bf16.msra.mxu0 %v1186
      %1240 = vmatprep.subr.bf16.mxu0 0
      %1241 = vmatpush1.bf16.msra.mxu0 %v1187
      %1242 = vmatprep.subr.bf16.mxu0 0
      %1243 = vmatpush1.bf16.msra.mxu0 %v1188
      %1244 = vmatprep.subr.bf16.mxu0 0
      %1245 = vmatpush1.bf16.msra.mxu0 %v1189
      %1246 = vmatprep.subr.bf16.mxu0 0
      %1247 = vmatpush1.bf16.msra.mxu0 %v1190
      %1248 = vmatprep.subr.bf16.mxu0 0
      %1249 = vmatpush1.bf16.msra.mxu0 %v1191
      %1250 = vmatprep.subr.bf16.mxu0 0
      %1251 = vmatpush1.bf16.msra.mxu0 %v1192
      %1252 = vmatprep.subr.bf16.mxu0 0
      %1253 = vmatpush1.bf16.msra.mxu0 %v1193
      %1254 = vmatprep.subr.bf16.mxu0 0
      %1255 = vmatpush1.bf16.msra.mxu0 %v1194
      %1256 = vmatprep.subr.bf16.mxu0 0
      %1257 = vmatpush1.bf16.msra.mxu0 %v1195
      %1258 = vmatprep.subr.bf16.mxu0 0
      %1259 = vmatpush1.bf16.msra.mxu0 %v1196
      %1260 = vmatprep.subr.bf16.mxu0 0
      %1261 = vmatpush1.bf16.msra.mxu0 %v1197
      %1262 = vmatprep.mubr.bf16.mxu0 %v1063
      %1263 = vmatmul.mubr.bf16.gmra.mrb[0].mxu0 %v1062
      %v1264 = vpop.f32.mrb[0].mxu0
      %v1265 = vadd.f32 %v992, %v1264
      %v1266 = vpop.f32.mrb[0].mxu0
      %v1267 = vpop.f32.mrb[0].mxu0
      %v1268 = vadd.f32 %v995, %v1267
      %v1269 = vpop.f32.mrb[0].mxu0
      %1270 = vmatprep.mubr.bf16.mxu0 %v1066
      %1271 = vmatmul.mubr.bf16.gmra.mrb[0].mxu0 %v1065
      %v1272 = vpop.f32.mrb[0].mxu0
      %v1273 = vadd.f32 %v1000, %v1272
      %v1274 = vpop.f32.mrb[0].mxu0
      %v1275 = vpop.f32.mrb[0].mxu0
      %v1276 = vadd.f32 %v1003, %v1275
      %v1277 = vpop.f32.mrb[0].mxu0
      %1278 = vmatprep.mubr.bf16.mxu0 %v1069
      %1279 = vmatmul.mubr.bf16.gmra.mrb[0].mxu0 %v1068
      %v1280 = vpop.f32.mrb[0].mxu0
      %v1281 = vadd.f32 %v1008, %v1280
      %v1282 = vpop.f32.mrb[0].mxu0
      %v1283 = vpop.f32.mrb[0].mxu0
      %v1284 = vadd.f32 %v1011, %v1283
      %v1285 = vpop.f32.mrb[0].mxu0
      %1286 = vmatprep.mubr.bf16.mxu0 %v1072
      %1287 = vmatmul.mubr.bf16.gmra.mrb[0].mxu0 %v1071
      %v1288 = vpop.f32.mrb[0].mxu0
      %v1289 = vadd.f32 %v1016, %v1288
      %v1290 = vpop.f32.mrb[0].mxu0
      %v1291 = vpop.f32.mrb[0].mxu0
      %v1292 = vadd.f32 %v1019, %v1291
      %v1293 = vpop.f32.mrb[0].mxu0
      %1294 = vdwg.mxu0
      %1295 = vmatprep.subr.bf16.mxu0 0
      %1296 = vmatpush1.bf16.msra.mxu0 %v1198
      %1297 = vmatprep.subr.bf16.mxu0 0
      %1298 = vmatpush1.bf16.msra.mxu0 %v1199
      %1299 = vmatprep.subr.bf16.mxu0 0
      %1300 = vmatpush1.bf16.msra.mxu0 %v1200
      %1301 = vmatprep.subr.bf16.mxu0 0
      %1302 = vmatpush1.bf16.msra.mxu0 %v1201
      %1303 = vmatprep.subr.bf16.mxu0 0
      %1304 = vmatpush1.bf16.msra.mxu0 %v1202
      %1305 = vmatprep.subr.bf16.mxu0 0
      %1306 = vmatpush1.bf16.msra.mxu0 %v1203
      %1307 = vmatprep.subr.bf16.mxu0 0
      %1308 = vmatpush1.bf16.msra.mxu0 %v1204
      %1309 = vmatprep.subr.bf16.mxu0 0
      %1310 = vmatpush1.bf16.msra.mxu0 %v1205
      %1311 = vmatprep.subr.bf16.mxu0 0
      %1312 = vmatpush1.bf16.msra.mxu0 0
      %1313 = vmatprep.subr.bf16.mxu0 0
      %1314 = vmatpush1.bf16.msra.mxu0 0
      %1315 = vmatprep.subr.bf16.mxu0 0
      %1316 = vmatpush1.bf16.msra.mxu0 0
      %1317 = vmatprep.subr.bf16.mxu0 0
      %1318 = vmatpush1.bf16.msra.mxu0 0
      %1319 = vmatprep.subr.bf16.mxu0 0
      %1320 = vmatpush1.bf16.msra.mxu0 0
      %1321 = vmatprep.subr.bf16.mxu0 0
      %1322 = vmatpush1.bf16.msra.mxu0 0
      %1323 = vmatprep.subr.bf16.mxu0 0
      %1324 = vmatpush1.bf16.msra.mxu0 0
      %1325 = vmatprep.subr.bf16.mxu0 0
      %1326 = vmatpush1.bf16.msra.mxu0 0
      %1327 = vmatprep.mubr.bf16.mxu0 0
      %1328 = vmatmul.mubr.bf16.gmra.mrb[0].mxu0 %v1064
      %v1329 = vpop.f32.mrb[0].mxu0
      %v1330 = vadd.f32 %v1265, %v1329
      %v1331 = vpop.f32.mrb[0].mxu0
      %v1332 = vpop.f32.mrb[0].mxu0
      %v1333 = vadd.f32 %v1268, %v1332
      %v1334 = vpop.f32.mrb[0].mxu0
      %1335 = vmatprep.mubr.bf16.mxu0 0
      %1336 = vmatmul.mubr.bf16.gmra.mrb[0].mxu0 %v1067
      %v1337 = vpop.f32.mrb[0].mxu0
      %v1338 = vadd.f32 %v1273, %v1337
      %v1339 = vpop.f32.mrb[0].mxu0
      %v1340 = vpop.f32.mrb[0].mxu0
      %v1341 = vadd.f32 %v1276, %v1340
      %v1342 = vpop.f32.mrb[0].mxu0
      %1343 = vmatprep.mubr.bf16.mxu0 0
      %1344 = vmatmul.mubr.bf16.gmra.mrb[0].mxu0 %v1070
      %v1345 = vpop.f32.mrb[0].mxu0
      %v1346 = vadd.f32 %v1281, %v1345
      %v1347 = vpop.f32.mrb[0].mxu0
      %v1348 = vpop.f32.mrb[0].mxu0
      %v1349 = vadd.f32 %v1284, %v1348
      %v1350 = vpop.f32.mrb[0].mxu0
      %1351 = vmatprep.mubr.bf16.mxu0 0
      %1352 = vmatmul.mubr.bf16.gmra.mrb[0].mxu0 %v1073
      %v1353 = vpop.f32.mrb[0].mxu0
      %v1354 = vadd.f32 %v1289, %v1353
      %v1355 = vpop.f32.mrb[0].mxu0
      %v1356 = vpop.f32.mrb[0].mxu0
      %v1357 = vadd.f32 %v1292, %v1356
      %v1358 = vpop.f32.mrb[0].mxu0
      %1359 = vdwg.mxu0
      %s1360 = sadd.s32 0, 2
      %s1361 = smul.u32 %s1360, 3
      %s1362 = smul.addr %s1361, 4
      %s1363 = scalar_lea.vmem [#allocation2], %s1362
      %v1364 = vld [vmem:[%s1363] sm:$0xff]
      %v1365 = vld [vmem:[%s1363 + $0x8] sm:$0xf]
      %v1366 = vld [vmem:[%s1363 + $0xc] sm:$0xff]
      %v1367 = vld [vmem:[%s1363 + $0x14] sm:$0xf]
      %v1368 = vld [vmem:[%s1363 + $0x18] sm:$0xff]
      %v1369 = vld [vmem:[%s1363 + $0x20] sm:$0xf]
      %v1370 = vld [vmem:[%s1363 + $0x24] sm:$0xff]
      %v1371 = vld [vmem:[%s1363 + $0x2c] sm:$0xf]
      %v1372 = vld [vmem:[%s1363 + $0x30] sm:$0xff]
      %v1373 = vld [vmem:[%s1363 + $0x38] sm:$0xf]
      %v1374 = vld [vmem:[%s1363 + $0x3c] sm:$0xff]
      %v1375 = vld [vmem:[%s1363 + $0x44] sm:$0xf]
      %v1376 = vld [vmem:[%s1363 + $0x48] sm:$0xff]
      %v1377 = vld [vmem:[%s1363 + $0x50] sm:$0xf]
      %v1378 = vld [vmem:[%s1363 + $0x54] sm:$0xff]
      %v1379 = vld [vmem:[%s1363 + $0x5c] sm:$0xf]
      %s1380 = scalar_lea.vmem %s3, 384
      %v1381 = vld [vmem:[%s1380] sm:$0xf]
      %v1382 = vld [vmem:[%s1380 + $0x4] sm:$0xf]
      %v1383 = vld [vmem:[%s1380 + $0x8] sm:$0xf]
      %v1384 = vld [vmem:[%s1380 + $0xc] sm:$0xf]
      %v1385 = vld [vmem:[%s1380 + $0x10] sm:$0xf]
      %v1386 = vld [vmem:[%s1380 + $0x14] sm:$0xf]
      %v1387 = vld [vmem:[%s1380 + $0x18] sm:$0xf]
      %v1388 = vld [vmem:[%s1380 + $0x1c] sm:$0xf]
      %v1389 = vld [vmem:[%s1380 + $0x20] sm:$0xf]
      %v1390 = vld [vmem:[%s1380 + $0x24] sm:$0xf]
      %v1391 = vld [vmem:[%s1380 + $0x28] sm:$0xf]
      %v1392 = vld [vmem:[%s1380 + $0x2c] sm:$0xf]
      %v1393 = vld [vmem:[%s1380 + $0x30] sm:$0xf]
      %v1394 = vld [vmem:[%s1380 + $0x34] sm:$0xf]
      %v1395 = vld [vmem:[%s1380 + $0x38] sm:$0xf]
      %v1396 = vld [vmem:[%s1380 + $0x3c] sm:$0xf]
      %v1397 = vld [vmem:[%s1380 + $0x40] sm:$0xf]
      %v1398 = vld [vmem:[%s1380 + $0x44] sm:$0xf]
      %v1399 = vld [vmem:[%s1380 + $0x48] sm:$0xf]
      %v1400 = vld [vmem:[%s1380 + $0x4c] sm:$0xf]
      %v1401 = vld [vmem:[%s1380 + $0x50] sm:$0xf]
      %v1402 = vld [vmem:[%s1380 + $0x54] sm:$0xf]
      %v1403 = vld [vmem:[%s1380 + $0x58] sm:$0xf]
      %v1404 = vld [vmem:[%s1380 + $0x5c] sm:$0xf]
      %v1405 = vld [vmem:[%s1380 + $0x60] sm:$0xf]
      %v1406 = vld [vmem:[%s1380 + $0x64] sm:$0xf]
      %v1407 = vld [vmem:[%s1380 + $0x68] sm:$0xf]
      %v1408 = vld [vmem:[%s1380 + $0x6c] sm:$0xf]
      %v1409 = vld [vmem:[%s1380 + $0x70] sm:$0xf]
      %v1410 = vld [vmem:[%s1380 + $0x74] sm:$0xf]
      %v1411 = vld [vmem:[%s1380 + $0x78] sm:$0xf]
      %v1412 = vld [vmem:[%s1380 + $0x7c] sm:$0xf]
      %v1413 = vld [vmem:[%s1380 + $0x80] sm:$0xf]
      %v1414 = vld [vmem:[%s1380 + $0x84] sm:$0xf]
      %v1415 = vld [vmem:[%s1380 + $0x88] sm:$0xf]
      %v1416 = vld [vmem:[%s1380 + $0x8c] sm:$0xf]
      %v1417 = vld [vmem:[%s1380 + $0x90] sm:$0xf]
      %v1418 = vld [vmem:[%s1380 + $0x94] sm:$0xf]
      %v1419 = vld [vmem:[%s1380 + $0x98] sm:$0xf]
      %v1420 = vld [vmem:[%s1380 + $0x9c] sm:$0xf]
      %v1421 = vld [vmem:[%s1380 + $0xa0] sm:$0xf]
      %v1422 = vld [vmem:[%s1380 + $0xa4] sm:$0xf]
      %v1423 = vld [vmem:[%s1380 + $0xa8] sm:$0xf]
      %v1424 = vld [vmem:[%s1380 + $0xac] sm:$0xf]
      %v1425 = vld [vmem:[%s1380 + $0xb0] sm:$0xf]
      %v1426 = vld [vmem:[%s1380 + $0xb4] sm:$0xf]
      %v1427 = vld [vmem:[%s1380 + $0xb8] sm:$0xf]
      %v1428 = vld [vmem:[%s1380 + $0xbc] sm:$0xf]
      %v1445 = vunpack.c.l.b16 %v1364
      %v1446 = vunpack.c.h.b16 %v1364
      %v1447 = vunpack.c.l.b16 %v1365
      %v1448 = vunpack.c.l.b16 %v1366
      %v1449 = vunpack.c.h.b16 %v1366
      %v1450 = vunpack.c.l.b16 %v1367
      %v1451 = vunpack.c.l.b16 %v1368
      %v1452 = vunpack.c.h.b16 %v1368
      %v1453 = vunpack.c.l.b16 %v1369
      %v1454 = vunpack.c.l.b16 %v1370
      %v1455 = vunpack.c.h.b16 %v1370
      %v1456 = vunpack.c.l.b16 %v1371
      %v1457 = vunpack.c.l.b16 %v1372
      %v1458 = vunpack.c.h.b16 %v1372
      %v1459 = vunpack.c.l.b16 %v1373
      %v1460 = vunpack.c.l.b16 %v1374
      %v1461 = vunpack.c.h.b16 %v1374
      %v1462 = vunpack.c.l.b16 %v1375
      %v1463 = vunpack.c.l.b16 %v1376
      %v1464 = vunpack.c.h.b16 %v1376
      %v1465 = vunpack.c.l.b16 %v1377
      %v1466 = vunpack.c.l.b16 %v1378
      %v1467 = vunpack.c.h.b16 %v1378
      %v1468 = vunpack.c.l.b16 %v1379
      %v1469 = vpack.c.b16 %v1448, %v1445
      %v1470 = vpack.c.b16 %v1449, %v1446
      %v1471 = vpack.c.b16 %v1450, %v1447
      %v1472 = vpack.c.b16 %v1454, %v1451
      %v1473 = vpack.c.b16 %v1455, %v1452
      %v1474 = vpack.c.b16 %v1456, %v1453
      %v1475 = vpack.c.b16 %v1460, %v1457
      %v1476 = vpack.c.b16 %v1461, %v1458
      %v1477 = vpack.c.b16 %v1462, %v1459
      %v1478 = vpack.c.b16 %v1466, %v1463
      %v1479 = vpack.c.b16 %v1467, %v1464
      %v1480 = vpack.c.b16 %v1468, %v1465
      %v1541 = vunpack.c.l.b16 %v1381
      %v1542 = vunpack.c.l.b16 %v1382
      %v1543 = vunpack.c.l.b16 %v1383
      %v1544 = vunpack.c.l.b16 %v1384
      %v1545 = vunpack.c.l.b16 %v1385
      %v1546 = vunpack.c.l.b16 %v1386
      %v1547 = vunpack.c.l.b16 %v1387
      %v1548 = vunpack.c.l.b16 %v1388
      %v1549 = vunpack.c.l.b16 %v1389
      %v1550 = vunpack.c.l.b16 %v1390
      %v1551 = vunpack.c.l.b16 %v1391
      %v1552 = vunpack.c.l.b16 %v1392
      %v1553 = vunpack.c.l.b16 %v1393
      %v1554 = vunpack.c.l.b16 %v1394
      %v1555 = vunpack.c.l.b16 %v1395
      %v1556 = vunpack.c.l.b16 %v1396
      %v1557 = vunpack.c.l.b16 %v1397
      %v1558 = vunpack.c.l.b16 %v1398
      %v1559 = vunpack.c.l.b16 %v1399
      %v1560 = vunpack.c.l.b16 %v1400
      %v1561 = vunpack.c.l.b16 %v1401
      %v1562 = vunpack.c.l.b16 %v1402
      %v1563 = vunpack.c.l.b16 %v1403
      %v1564 = vunpack.c.l.b16 %v1404
      %v1565 = vunpack.c.l.b16 %v1405
      %v1566 = vunpack.c.l.b16 %v1406
      %v1567 = vunpack.c.l.b16 %v1407
      %v1568 = vunpack.c.l.b16 %v1408
      %v1569 = vunpack.c.l.b16 %v1409
      %v1570 = vunpack.c.l.b16 %v1410
      %v1571 = vunpack.c.l.b16 %v1411
      %v1572 = vunpack.c.l.b16 %v1412
      %v1573 = vunpack.c.l.b16 %v1413
      %v1574 = vunpack.c.l.b16 %v1414
      %v1575 = vunpack.c.l.b16 %v1415
      %v1576 = vunpack.c.l.b16 %v1416
      %v1577 = vunpack.c.l.b16 %v1417
      %v1578 = vunpack.c.l.b16 %v1418
      %v1579 = vunpack.c.l.b16 %v1419
      %v1580 = vunpack.c.l.b16 %v1420
      %v1581 = vunpack.c.l.b16 %v1421
      %v1582 = vunpack.c.l.b16 %v1422
      %v1583 = vunpack.c.l.b16 %v1423
      %v1584 = vunpack.c.l.b16 %v1424
      %v1585 = vunpack.c.l.b16 %v1425
      %v1586 = vunpack.c.l.b16 %v1426
      %v1587 = vunpack.c.l.b16 %v1427
      %v1588 = vunpack.c.l.b16 %v1428
      %v1589 = vpack.c.b16 %v1542, %v1541
      %v1590 = vpack.c.b16 %v1544, %v1543
      %v1591 = vpack.c.b16 %v1546, %v1545
      %v1592 = vpack.c.b16 %v1548, %v1547
      %v1593 = vpack.c.b16 %v1550, %v1549
      %v1594 = vpack.c.b16 %v1552, %v1551
      %v1595 = vpack.c.b16 %v1554, %v1553
      %v1596 = vpack.c.b16 %v1556, %v1555
      %v1597 = vpack.c.b16 %v1558, %v1557
      %v1598 = vpack.c.b16 %v1560, %v1559
      %v1599 = vpack.c.b16 %v1562, %v1561
      %v1600 = vpack.c.b16 %v1564, %v1563
      %v1601 = vpack.c.b16 %v1566, %v1565
      %v1602 = vpack.c.b16 %v1568, %v1567
      %v1603 = vpack.c.b16 %v1570, %v1569
      %v1604 = vpack.c.b16 %v1572, %v1571
      %v1605 = vpack.c.b16 %v1574, %v1573
      %v1606 = vpack.c.b16 %v1576, %v1575
      %v1607 = vpack.c.b16 %v1578, %v1577
      %v1608 = vpack.c.b16 %v1580, %v1579
      %v1609 = vpack.c.b16 %v1582, %v1581
      %v1610 = vpack.c.b16 %v1584, %v1583
      %v1611 = vpack.c.b16 %v1586, %v1585
      %v1612 = vpack.c.b16 %v1588, %v1587
      %1637 = vmatprep.subr.bf16.mxu0 0
      %1638 = vmatpush1.bf16.msra.mxu0 %v1589
      %1639 = vmatprep.subr.bf16.mxu0 0
      %1640 = vmatpush1.bf16.msra.mxu0 %v1590
      %1641 = vmatprep.subr.bf16.mxu0 0
      %1642 = vmatpush1.bf16.msra.mxu0 %v1591
      %1643 = vmatprep.subr.bf16.mxu0 0
      %1644 = vmatpush1.bf16.msra.mxu0 %v1592
      %1645 = vmatprep.subr.bf16.mxu0 0
      %1646 = vmatpush1.bf16.msra.mxu0 %v1593
      %1647 = vmatprep.subr.bf16.mxu0 0
      %1648 = vmatpush1.bf16.msra.mxu0 %v1594
      %1649 = vmatprep.subr.bf16.mxu0 0
      %1650 = vmatpush1.bf16.msra.mxu0 %v1595
      %1651 = vmatprep.subr.bf16.mxu0 0
      %1652 = vmatpush1.bf16.msra.mxu0 %v1596
      %1653 = vmatprep.subr.bf16.mxu0 0
      %1654 = vmatpush1.bf16.msra.mxu0 %v1597
      %1655 = vmatprep.subr.bf16.mxu0 0
      %1656 = vmatpush1.bf16.msra.mxu0 %v1598
      %1657 = vmatprep.subr.bf16.mxu0 0
      %1658 = vmatpush1.bf16.msra.mxu0 %v1599
      %1659 = vmatprep.subr.bf16.mxu0 0
      %1660 = vmatpush1.bf16.msra.mxu0 %v1600
      %1661 = vmatprep.subr.bf16.mxu0 0
      %1662 = vmatpush1.bf16.msra.mxu0 %v1601
      %1663 = vmatprep.subr.bf16.mxu0 0
      %1664 = vmatpush1.bf16.msra.mxu0 %v1602
      %1665 = vmatprep.subr.bf16.mxu0 0
      %1666 = vmatpush1.bf16.msra.mxu0 %v1603
      %1667 = vmatprep.subr.bf16.mxu0 0
      %1668 = vmatpush1.bf16.msra.mxu0 %v1604
      %1669 = vmatprep.mubr.bf16.mxu0 %v1470
      %1670 = vmatmul.mubr.bf16.gmra.mrb[0].mxu0 %v1469
      %v1671 = vpop.f32.mrb[0].mxu0
      %v1672 = vadd.f32 0.0, %v1671
      %v1673 = vpop.f32.mrb[0].mxu0
      %v1674 = vpop.f32.mrb[0].mxu0
      %v1675 = vadd.f32 0.0, %v1674
      %v1676 = vpop.f32.mrb[0].mxu0
      %1677 = vmatprep.mubr.bf16.mxu0 %v1473
      %1678 = vmatmul.mubr.bf16.gmra.mrb[0].mxu0 %v1472
      %v1679 = vpop.f32.mrb[0].mxu0
      %v1680 = vadd.f32 0.0, %v1679
      %v1681 = vpop.f32.mrb[0].mxu0
      %v1682 = vpop.f32.mrb[0].mxu0
      %v1683 = vadd.f32 0.0, %v1682
      %v1684 = vpop.f32.mrb[0].mxu0
      %1685 = vmatprep.mubr.bf16.mxu0 %v1476
      %1686 = vmatmul.mubr.bf16.gmra.mrb[0].mxu0 %v1475
      %v1687 = vpop.f32.mrb[0].mxu0
      %v1688 = vadd.f32 0.0, %v1687
      %v1689 = vpop.f32.mrb[0].mxu0
      %v1690 = vpop.f32.mrb[0].mxu0
      %v1691 = vadd.f32 0.0, %v1690
      %v1692 = vpop.f32.mrb[0].mxu0
      %1693 = vmatprep.mubr.bf16.mxu0 %v1479
      %1694 = vmatmul.mubr.bf16.gmra.mrb[0].mxu0 %v1478
      %v1695 = vpop.f32.mrb[0].mxu0
      %v1696 = vadd.f32 0.0, %v1695
      %v1697 = vpop.f32.mrb[0].mxu0
      %v1698 = vpop.f32.mrb[0].mxu0
      %v1699 = vadd.f32 0.0, %v1698
      %v1700 = vpop.f32.mrb[0].mxu0
      %1701 = vdwg.mxu0
      %1702 = vmatprep.subr.bf16.mxu0 0
      %1703 = vmatpush1.bf16.msra.mxu0 %v1605
      %1704 = vmatprep.subr.bf16.mxu0 0
      %1705 = vmatpush1.bf16.msra.mxu0 %v1606
      %1706 = vmatprep.subr.bf16.mxu0 0
      %1707 = vmatpush1.bf16.msra.mxu0 %v1607
      %1708 = vmatprep.subr.bf16.mxu0 0
      %1709 = vmatpush1.bf16.msra.mxu0 %v1608
      %1710 = vmatprep.subr.bf16.mxu0 0
      %1711 = vmatpush1.bf16.msra.mxu0 %v1609
      %1712 = vmatprep.subr.bf16.mxu0 0
      %1713 = vmatpush1.bf16.msra.mxu0 %v1610
      %1714 = vmatprep.subr.bf16.mxu0 0
      %1715 = vmatpush1.bf16.msra.mxu0 %v1611
      %1716 = vmatprep.subr.bf16.mxu0 0
      %1717 = vmatpush1.bf16.msra.mxu0 %v1612
      %1718 = vmatprep.subr.bf16.mxu0 0
      %1719 = vmatpush1.bf16.msra.mxu0 0
      %1720 = vmatprep.subr.bf16.mxu0 0
      %1721 = vmatpush1.bf16.msra.mxu0 0
      %1722 = vmatprep.subr.bf16.mxu0 0
      %1723 = vmatpush1.bf16.msra.mxu0 0
      %1724 = vmatprep.subr.bf16.mxu0 0
      %1725 = vmatpush1.bf16.msra.mxu0 0
      %1726 = vmatprep.subr.bf16.mxu0 0
      %1727 = vmatpush1.bf16.msra.mxu0 0
      %1728 = vmatprep.subr.bf16.mxu0 0
      %1729 = vmatpush1.bf16.msra.mxu0 0
      %1730 = vmatprep.subr.bf16.mxu0 0
      %1731 = vmatpush1.bf16.msra.mxu0 0
      %1732 = vmatprep.subr.bf16.mxu0 0
      %1733 = vmatpush1.bf16.msra.mxu0 0
      %1734 = vmatprep.mubr.bf16.mxu0 0
      %1735 = vmatmul.mubr.bf16.gmra.mrb[0].mxu0 %v1471
      %v1736 = vpop.f32.mrb[0].mxu0
      %v1737 = vadd.f32 %v1672, %v1736
      %v1738 = vpop.f32.mrb[0].mxu0
      %v1739 = vpop.f32.mrb[0].mxu0
      %v1740 = vadd.f32 %v1675, %v1739
      %v1741 = vpop.f32.mrb[0].mxu0
      %1742 = vmatprep.mubr.bf16.mxu0 0
      %1743 = vmatmul.mubr.bf16.gmra.mrb[0].mxu0 %v1474
      %v1744 = vpop.f32.mrb[0].mxu0
      %v1745 = vadd.f32 %v1680, %v1744
      %v1746 = vpop.f32.mrb[0].mxu0
      %v1747 = vpop.f32.mrb[0].mxu0
      %v1748 = vadd.f32 %v1683, %v1747
      %v1749 = vpop.f32.mrb[0].mxu0
      %1750 = vmatprep.mubr.bf16.mxu0 0
      %1751 = vmatmul.mubr.bf16.gmra.mrb[0].mxu0 %v1477
      %v1752 = vpop.f32.mrb[0].mxu0
      %v1753 = vadd.f32 %v1688, %v1752
      %v1754 = vpop.f32.mrb[0].mxu0
      %v1755 = vpop.f32.mrb[0].mxu0
      %v1756 = vadd.f32 %v1691, %v1755
      %v1757 = vpop.f32.mrb[0].mxu0
      %1758 = vmatprep.mubr.bf16.mxu0 0
      %1759 = vmatmul.mubr.bf16.gmra.mrb[0].mxu0 %v1480
      %v1760 = vpop.f32.mrb[0].mxu0
      %v1761 = vadd.f32 %v1696, %v1760
      %v1762 = vpop.f32.mrb[0].mxu0
      %v1763 = vpop.f32.mrb[0].mxu0
      %v1764 = vadd.f32 %v1699, %v1763
      %v1765 = vpop.f32.mrb[0].mxu0
      %1766 = vdwg.mxu0
      %v1767 = vadd.f32 %v1330, %v1737
      %v1768 = vadd.f32 %v1333, %v1740
      %v1769 = vadd.f32 %v1338, %v1745
      %v1770 = vadd.f32 %v1341, %v1748
      %v1771 = vadd.f32 %v1346, %v1753
      %v1772 = vadd.f32 %v1349, %v1756
      %v1773 = vadd.f32 %v1354, %v1761
      %v1774 = vadd.f32 %v1357, %v1764
      %v1775 = vpack.c.bf16 %v1767, %v1767
      %v1776 = vpack.c.bf16 %v1768, %v1768
      %v1777 = vpack.c.bf16 %v1769, %v1769
      %v1778 = vpack.c.bf16 %v1770, %v1770
      %v1779 = vpack.c.bf16 %v1771, %v1771
      %v1780 = vpack.c.bf16 %v1772, %v1772
      %v1781 = vpack.c.bf16 %v1773, %v1773
      %v1782 = vpack.c.bf16 %v1774, %v1774
      %1783 = vst [vmem:[%s231] sm:$0xf] %v1775
      %1784 = vst [vmem:[%s231 + $0x4] sm:$0xf] %v1776
      %1785 = vst [vmem:[%s231 + $0x8] sm:$0xf] %v1777
      %1786 = vst [vmem:[%s231 + $0xc] sm:$0xf] %v1778
      %1787 = vst [vmem:[%s231 + $0x10] sm:$0xf] %v1779
      %1788 = vst [vmem:[%s231 + $0x14] sm:$0xf] %v1780
      %1789 = vst [vmem:[%s231 + $0x18] sm:$0xf] %v1781
      %1790 = vst [vmem:[%s231 + $0x1c] sm:$0xf] %v1782
      %v1791 = vadd.f32 %v1767, %v1768
      %v1792 = vadd.f32 %v1791, %v1769
      %v1793 = vadd.f32 %v1792, %v1770
      %v1794 = vadd.f32 %v1793, %v1771
      %v1795 = vadd.f32 %v1794, %v1772
      %v1796 = vadd.f32 %v1795, %v1773
      %v1797 = vadd.f32 %v1796, %v1774
      %v1798 = vrot.slane %v1797, 4
      %v1799 = vadd.f32 %v1797, %v1798
      %v1800 = vrot.slane %v1799, 2
      %v1801 = vadd.f32 %v1799, %v1800
      %v1802 = vrot.slane %v1801, 1
      %v1803 = vadd.f32 %v1801, %v1802
      %v1804 = vmul.f32 %v1767, %v1767
      %v1805 = vmul.f32 %v1768, %v1768
      %v1806 = vmul.f32 %v1769, %v1769
      %v1807 = vmul.f32 %v1770, %v1770
      %v1808 = vmul.f32 %v1771, %v1771
      %v1809 = vmul.f32 %v1772, %v1772
      %v1810 = vmul.f32 %v1773, %v1773
      %v1811 = vmul.f32 %v1774, %v1774
      %v1812 = vadd.f32 %v1804, %v1805
      %v1813 = vadd.f32 %v1812, %v1806
      %v1814 = vadd.f32 %v1813, %v1807
      %v1815 = vadd.f32 %v1814, %v1808
      %v1816 = vadd.f32 %v1815, %v1809
      %v1817 = vadd.f32 %v1816, %v1810
      %v1818 = vadd.f32 %v1817, %v1811
      %v1819 = vrot.slane %v1818, 4
      %v1820 = vadd.f32 %v1818, %v1819
      %v1821 = vrot.slane %v1820, 2
      %v1822 = vadd.f32 %v1820, %v1821
      %v1823 = vrot.slane %v1822, 1
      %v1824 = vadd.f32 %v1822, %v1823
      %vm1825 = vcmask 1040384
      %v1826 = vsel %vm1825, %v1803, %v1824
      %v1827 = vadd.f32 %v1826, 0.0
      %1828 = vst [vmem:[%s235] sm:$0x3] %v1827
      %p1829 = scmp.lt.s32.totalorder %s17, 1
      %s1830 = scalar_select %p1829, %s17, 1
      %s1831 = smul.addr %s1830, 8
      %s1832 = smul.addr %s1831, 4
      %s1833 = scalar_lea.vmem %s4, %s1832
      %p1834 = scmp.lt.s32.totalorder %s17, 1
      %s1835 = scalar_select %p1834, %s17, 1
      %s1836 = smul.addr %s1835, 2
      %s1837 = scalar_lea.vmem %s5, %s1836
      // Predicated region
      $region37: #{basic_block_forward.4} parent=35 // pred_check
        %p1838 = pneg %p124
      $region38: #{basic_block_forward.4} parent=35 // pred_check_branch
        %1840 = sbr.rel (%p1838) target = $region40
      $region39: #{basic_block_forward.4} parent=35 // pred_region
        _
      $region40: #{basic_block_forward.4} parent=35 // pred_fallthru
        _
      // Predicated region
      $region41: #{basic_block_forward.4} parent=35 // pred_check
        %p1841 = pneg %p150
      $region42: #{basic_block_forward.4} parent=35 // pred_check_branch
        %1843 = sbr.rel (%p1841) target = $region44
      $region43: #{basic_block_forward.4} parent=35 // pred_region
        _
      $region44: #{basic_block_forward.4} parent=35 // pred_fallthru
        _
    $region36: #{basic_block_forward.4} parent=5 // pred_fallthru
      _
    %p1844 = scmp.le.s32.totalorder 2, %s12
    // Predicated region
    $region45: #{basic_block_forward.4} parent=5 // pred_check
      %p1845 = pneg %p1844
    $region46: #{basic_block_forward.4} parent=5 // pred_check_branch
      %1847 = sbr.rel (%p1845) target = $region48
    $region47: #{basic_block_forward.4} parent=5 // pred_region
      %s1848 = ssub.s32 %s12, 2
      // Predicated region
      $region49: #{basic_block_forward.4} parent=47 // pred_check
        %p1849 = pneg %p130
      $region50: #{basic_block_forward.4} parent=47 // pred_check_branch
        %1851 = sbr.rel (%p1849) target = $region52
      $region51: #{basic_block_forward.4} parent=47 // pred_region
        %p1852 = scmp.lt.s32.totalorder %s18, 1
        %s1853 = scalar_select %p1852, %s18, 1
        %s1854 = smul.addr %s1853, 8
        %s1855 = smul.addr %s1854, 4
        %s1856 = scalar_lea.vmem %s4, %s1855
      $region52: #{basic_block_forward.4} parent=47 // pred_fallthru
        _
      // Predicated region
      $region53: #{basic_block_forward.4} parent=47 // pred_check
        %p1857 = pneg %p156
      $region54: #{basic_block_forward.4} parent=47 // pred_check_branch
        %1859 = sbr.rel (%p1857) target = $region56
      $region55: #{basic_block_forward.4} parent=47 // pred_region
        %p1860 = scmp.lt.s32.totalorder %s18, 1
        %s1861 = scalar_select %p1860, %s18, 1
        %s1862 = smul.addr %s1861, 2
        %s1863 = scalar_lea.vmem %s5, %s1862
      $region56: #{basic_block_forward.4} parent=47 // pred_fallthru
        _
    $region48: #{basic_block_forward.4} parent=5 // pred_fallthru
      _
  $region6: #{basic_block_forward.4} parent=0 // loop_footer
    %s16 = sadd.s32 1, %s12
  $region7: #{basic_block_forward.4} parent=0 // loop_footer_branch
    %11 = sbr.rel target = $region3
  $region8: #{basic_block_forward.4} parent=0 // loop_exit
    _

// kernel: basic_block_forward.3
$region0: #{basic_block_forward.3}
  #allocation0 [shape = 'u32[]', space=smem, size = 0x4, offset = 0x4, fixed_abs, tag = 'smem constant byte address 0x4 - core index']
  #allocation1 [shape = 'u32[144,128]{1,0:T(1,128)}', space=vmem, size = 0x12000, scoped, tag = 'internal scratch']
  %s0 = inlined_call_operand.vmem [shape: bf16[2,4,9,9,128], index: 0, kind: input, shape index: {}]
  %s1 = inlined_call_operand.vmem [shape: bf16[9,128,128], index: 1, kind: input, shape index: {}]
  %s2 = inlined_call_operand.vmem [shape: bf16[128,128], index: 2, kind: input, shape index: {}]
  %s3 = inlined_call_operand.vmem [shape: bf16[2,8,8,128], index: 3, kind: output, shape index: {0}]
  %s4 = inlined_call_operand.vmem [shape: f32[2,2,128], index: 4, kind: output, shape index: {1}]
  %s5 = inlined_call_operand.vmem [shape: bf16[2,8,8,128], index: 5, kind: output, shape index: {2}]
  %s6 = inlined_call_operand.vmem [shape: f32[2,2,128], index: 6, kind: output, shape index: {3}]
  %7 = xla_tuple %s3, %s4, %s5, %s6
  %s8 = sld [smem:[#allocation0]]
  $region69: #{basic_block_forward.3} parent=0
    _
  %s10 = ssub.s32 1, %s8
  %s11 = scalar_select 0, %s10, %s8
  loop: start=0, step=1, limit=4
  $region2: #{basic_block_forward.3} parent=0 // loop_pre_header
    _
  $region3: #{basic_block_forward.3} parent=0 // loop_header
    %s13 = sphi 0, %s17
    %p14 = scmp.ge.s32.totalorder %s13, 4
    %s23 = sphi 0, %s25
    %s26 = sphi 0, %s23
    %s27 = sphi 0, %s26
    %s43 = sphi 0, %s27
    %s47 = sphi 0, %s47
    %s49 = sphi 0, %s47
    %s50 = sphi 0, %s49
    %s64 = sphi 0, %s50
    %s68 = sphi 0, %s68
    %s70 = sphi 0, %s68
    %s71 = sphi 0, %s70
    %s85 = sphi 0, %s71
    %s91 = sphi 0, %s93
    %s94 = sphi 0, %s91
    %s95 = sphi 0, %s94
    %s111 = sphi 0, %s95
    %s117 = sphi 0, %s119
    %s120 = sphi 0, %s117
    %s121 = sphi 0, %s120
    %s137 = sphi 0, %s121
    %s143 = sphi 0, %s145
    %s146 = sphi 0, %s143
    %s147 = sphi 0, %s146
    %s163 = sphi 0, %s147
    %s169 = sphi 0, %s171
    %s172 = sphi 0, %s169
    %s173 = sphi 0, %s172
    %s189 = sphi 0, %s173
  $region4: #{basic_block_forward.3} parent=0 // loop_header_branch
    %16 = sbr.rel (%p14) target = $region8
  $region5: #{basic_block_forward.3} parent=0 // loop_body
    %s18 = ssub.s32 %s13, 1
    %s19 = ssub.s32 %s13, 2
    %s20 = sadd.s32 %s13, 1
    %s21 = ssub.s32 %s13, %s20
    %p22 = scmp.eq.s32.totalorder %s21, 0
    %s24 = sadd.s32 %s23, 1
    %s25 = scalar_select %p22, %s23, %s24
    %p28 = pneg %p22
    %p29 = scmp.eq.s32.totalorder %s13, 1
    %p30 = por %p28, %p29
    %p31 = scmp.ne.s32.totalorder %s23, %s26
    %p32 = scmp.eq.s32.totalorder %s13, 0
    %p33 = por %p31, %p32
    %p34 = scmp.ne.s32.totalorder %s23, %s26
    %p35 = scmp.eq.s32.totalorder %s18, 1
    %p36 = por %p34, %p35
    %p37 = scmp.ne.s32.totalorder %s26, %s27
    %p38 = scmp.eq.s32.totalorder %s18, 0
    %p39 = por %p37, %p38
    %p40 = scmp.ne.s32.totalorder %s26, %s27
    %p41 = scmp.eq.s32.totalorder %s19, 1
    %p42 = por %p40, %p41
    %p44 = scmp.ne.s32.totalorder %s27, %s43
    %p45 = scmp.eq.s32.totalorder %s19, 0
    %p46 = por %p44, %p45
    %s48 = sadd.s32 %s47, 1
    %p51 = scmp.eq.s32.totalorder %s13, 1
    %p52 = scmp.ne.s32.totalorder %s47, %s49
    %p53 = scmp.eq.s32.totalorder %s13, 0
    %p54 = por %p52, %p53
    %p55 = scmp.ne.s32.totalorder %s47, %s49
    %p56 = scmp.eq.s32.totalorder %s18, 1
    %p57 = por %p55, %p56
    %p58 = scmp.ne.s32.totalorder %s49, %s50
    %p59 = scmp.eq.s32.totalorder %s18, 0
    %p60 = por %p58, %p59
    %p61 = scmp.ne.s32.totalorder %s49, %s50
    %p62 = scmp.eq.s32.totalorder %s19, 1
    %p63 = por %p61, %p62
    %p65 = scmp.ne.s32.totalorder %s50, %s64
    %p66 = scmp.eq.s32.totalorder %s19, 0
    %p67 = por %p65, %p66
    %s69 = sadd.s32 %s68, 1
    %p72 = scmp.eq.s32.totalorder %s13, 1
    %p73 = scmp.ne.s32.totalorder %s68, %s70
    %p74 = scmp.eq.s32.totalorder %s13, 0
    %p75 = por %p73, %p74
    %p76 = scmp.ne.s32.totalorder %s68, %s70
    %p77 = scmp.eq.s32.totalorder %s18, 1
    %p78 = por %p76, %p77
    %p79 = scmp.ne.s32.totalorder %s70, %s71
    %p80 = scmp.eq.s32.totalorder %s18, 0
    %p81 = por %p79, %p80
    %p82 = scmp.ne.s32.totalorder %s70, %s71
    %p83 = scmp.eq.s32.totalorder %s19, 1
    %p84 = por %p82, %p83
    %p86 = scmp.ne.s32.totalorder %s71, %s85
    %p87 = scmp.eq.s32.totalorder %s19, 0
    %p88 = por %p86, %p87
    %s89 = ssub.s32 %s13, %s20
    %p90 = scmp.eq.s32.totalorder %s89, 0
    %s92 = sadd.s32 %s91, 1
    %s93 = scalar_select %p90, %s91, %s92
    %p96 = pneg %p90
    %p97 = scmp.eq.s32.totalorder %s13, 1
    %p98 = por %p96, %p97
    %p99 = scmp.ne.s32.totalorder %s91, %s94
    %p100 = scmp.eq.s32.totalorder %s13, 0
    %p101 = por %p99, %p100
    %p102 = scmp.ne.s32.totalorder %s91, %s94
    %p103 = scmp.eq.s32.totalorder %s18, 1
    %p104 = por %p102, %p103
    %p105 = scmp.ne.s32.totalorder %s94, %s95
    %p106 = scmp.eq.s32.totalorder %s18, 0
    %p107 = por %p105, %p106
    %p108 = scmp.ne.s32.totalorder %s94, %s95
    %p109 = scmp.eq.s32.totalorder %s19, 1
    %p110 = por %p108, %p109
    %p112 = scmp.ne.s32.totalorder %s95, %s111
    %p113 = scmp.eq.s32.totalorder %s19, 0
    %p114 = por %p112, %p113
    %s115 = ssub.s32 %s13, %s20
    %p116 = scmp.eq.s32.totalorder %s115, 0
    %s118 = sadd.s32 %s117, 1
    %s119 = scalar_select %p116, %s117, %s118
    %p122 = pneg %p116
    %p123 = scmp.eq.s32.totalorder %s13, 1
    %p124 = por %p122, %p123
    %p125 = scmp.ne.s32.totalorder %s117, %s120
    %p126 = scmp.eq.s32.totalorder %s13, 0
    %p127 = por %p125, %p126
    %p128 = scmp.ne.s32.totalorder %s117, %s120
    %p129 = scmp.eq.s32.totalorder %s18, 1
    %p130 = por %p128, %p129
    %p131 = scmp.ne.s32.totalorder %s120, %s121
    %p132 = scmp.eq.s32.totalorder %s18, 0
    %p133 = por %p131, %p132
    %p134 = scmp.ne.s32.totalorder %s120, %s121
    %p135 = scmp.eq.s32.totalorder %s19, 1
    %p136 = por %p134, %p135
    %p138 = scmp.ne.s32.totalorder %s121, %s137
    %p139 = scmp.eq.s32.totalorder %s19, 0
    %p140 = por %p138, %p139
    %s141 = ssub.s32 %s13, %s20
    %p142 = scmp.eq.s32.totalorder %s141, 0
    %s144 = sadd.s32 %s143, 1
    %s145 = scalar_select %p142, %s143, %s144
    %p148 = pneg %p142
    %p149 = scmp.eq.s32.totalorder %s13, 1
    %p150 = por %p148, %p149
    %p151 = scmp.ne.s32.totalorder %s143, %s146
    %p152 = scmp.eq.s32.totalorder %s13, 0
    %p153 = por %p151, %p152
    %p154 = scmp.ne.s32.totalorder %s143, %s146
    %p155 = scmp.eq.s32.totalorder %s18, 1
    %p156 = por %p154, %p155
    %p157 = scmp.ne.s32.totalorder %s146, %s147
    %p158 = scmp.eq.s32.totalorder %s18, 0
    %p159 = por %p157, %p158
    %p160 = scmp.ne.s32.totalorder %s146, %s147
    %p161 = scmp.eq.s32.totalorder %s19, 1
    %p162 = por %p160, %p161
    %p164 = scmp.ne.s32.totalorder %s147, %s163
    %p165 = scmp.eq.s32.totalorder %s19, 0
    %p166 = por %p164, %p165
    %s167 = ssub.s32 %s13, %s20
    %p168 = scmp.eq.s32.totalorder %s167, 0
    %s170 = sadd.s32 %s169, 1
    %s171 = scalar_select %p168, %s169, %s170
    %p174 = pneg %p168
    %p175 = scmp.eq.s32.totalorder %s13, 1
    %p176 = por %p174, %p175
    %p177 = scmp.ne.s32.totalorder %s169, %s172
    %p178 = scmp.eq.s32.totalorder %s13, 0
    %p179 = por %p177, %p178
    %p180 = scmp.ne.s32.totalorder %s169, %s172
    %p181 = scmp.eq.s32.totalorder %s18, 1
    %p182 = por %p180, %p181
    %p183 = scmp.ne.s32.totalorder %s172, %s173
    %p184 = scmp.eq.s32.totalorder %s18, 0
    %p185 = por %p183, %p184
    %p186 = scmp.ne.s32.totalorder %s172, %s173
    %p187 = scmp.eq.s32.totalorder %s19, 1
    %p188 = por %p186, %p187
    %p190 = scmp.ne.s32.totalorder %s173, %s189
    %p191 = scmp.eq.s32.totalorder %s19, 0
    %p192 = por %p190, %p191
    %p193 = scmp.le.s32.totalorder 1, %s13
    %p194 = scmp.lt.s32.totalorder %s13, 3
    %p195 = pnand %p193, %p194
    %p196 = pneg %p195
    // Predicated region
    $region9: #{basic_block_forward.3} parent=5 // pred_check
      _
    $region10: #{basic_block_forward.3} parent=5 // pred_check_branch
      %198 = sbr.rel (%p195) target = $region12
    $region11: #{basic_block_forward.3} parent=5 // pred_region
      %s199 = ssub.s32 %s13, 1
      // Predicated region
      $region13: #{basic_block_forward.3} parent=11 // pred_check
        %p200 = pneg %p60
      $region14: #{basic_block_forward.3} parent=11 // pred_check_branch
        %202 = sbr.rel (%p200) target = $region16
      $region15: #{basic_block_forward.3} parent=11 // pred_region
        _
      $region16: #{basic_block_forward.3} parent=11 // pred_fallthru
        _
      // Predicated region
      $region17: #{basic_block_forward.3} parent=11 // pred_check
        %p203 = pneg %p81
      $region18: #{basic_block_forward.3} parent=11 // pred_check_branch
        %205 = sbr.rel (%p203) target = $region20
      $region19: #{basic_block_forward.3} parent=11 // pred_region
        _
      $region20: #{basic_block_forward.3} parent=11 // pred_fallthru
        _
    $region12: #{basic_block_forward.3} parent=5 // pred_fallthru
      _
    %p206 = scmp.lt.s32.totalorder %s13, 2
    // Predicated region
    $region21: #{basic_block_forward.3} parent=5 // pred_check
      %p207 = pneg %p206
    $region22: #{basic_block_forward.3} parent=5 // pred_check_branch
      %209 = sbr.rel (%p207) target = $region24
    $region23: #{basic_block_forward.3} parent=5 // pred_region
      // Predicated region
      $region25: #{basic_block_forward.3} parent=23 // pred_check
        %p210 = pneg %p33
      $region26: #{basic_block_forward.3} parent=23 // pred_check_branch
        %212 = sbr.rel (%p210) target = $region28
      $region27: #{basic_block_forward.3} parent=23 // pred_region
        %p213 = scmp.lt.s32.totalorder %s13, 1
        %s214 = scalar_select %p213, %s13, 1
        %s215 = smul.addr %s214, 72
        %s216 = smul.addr %s215, 4
        %s217 = scalar_lea.vmem %s0, %s216
      $region28: #{basic_block_forward.3} parent=23 // pred_fallthru
        _
    $region24: #{basic_block_forward.3} parent=5 // pred_fallthru
      _
    %p218 = scmp.le.s32.totalorder 1, %s13
    %p219 = scmp.lt.s32.totalorder %s13, 3
    %p220 = pnand %p218, %p219
    %p221 = pneg %p220
    // Predicated region
    $region29: #{basic_block_forward.3} parent=5 // pred_check
      _
    $region30: #{basic_block_forward.3} parent=5 // pred_check_branch
      %223 = sbr.rel (%p220) target = $region32
    $region31: #{basic_block_forward.3} parent=5 // pred_region
      %s224 = ssub.s32 %s13, 1
      %p225 = scmp.lt.s32.totalorder %s18, 1
      %s226 = scalar_select %p225, %s18, 1
      %s227 = smul.addr %s226, 72
      %s228 = smul.addr %s227, 4
      %s229 = scalar_lea.vmem %s0, %s228
      %p230 = pneg %p39
      %p231 = pneg %p36
      %p232 = pneg %p60
      %p233 = pneg %p57
      %p234 = pneg %p81
      %p235 = pneg %p78
      %p236 = pneg %p107
      %p237 = pneg %p104
      %p238 = scmp.lt.s32.totalorder %s18, 1
      %s239 = scalar_select %p238, %s18, 1
      %s240 = smul.addr %s239, 8
      %s241 = smul.addr %s240, 4
      %s242 = scalar_lea.vmem %s3, %s241
      %p243 = pneg %p133
      %p244 = pneg %p130
      %p245 = scmp.lt.s32.totalorder %s18, 1
      %s246 = scalar_select %p245, %s18, 1
      %s247 = smul.addr %s246, 2
      %s248 = scalar_lea.vmem %s4, %s247
      %p249 = pneg %p159
      %p250 = pneg %p156
      %p251 = scmp.lt.s32.totalorder %s18, 1
      %s252 = scalar_select %p251, %s18, 1
      %s253 = smul.addr %s252, 8
      %s254 = smul.addr %s253, 4
      %s255 = scalar_lea.vmem %s5, %s254
      %p256 = pneg %p185
      %p257 = pneg %p182
      %p258 = scmp.lt.s32.totalorder %s18, 1
      %s259 = scalar_select %p258, %s18, 1
      %s260 = smul.addr %s259, 2
      %s261 = scalar_lea.vmem %s6, %s260
      %p262 = scmp.lt.s32.totalorder %s18, 1
      %s263 = scalar_select %p262, %s18, 1
      %s264 = smul.addr %s263, 72
      %s265 = smul.addr %s264, 4
      %s266 = scalar_lea.vmem %s0, %s265
      %p267 = scmp.lt.s32.totalorder %s18, 1
      %s268 = scalar_select %p267, %s18, 1
      %s269 = smul.addr %s268, 8
      %s270 = smul.addr %s269, 4
      %s271 = scalar_lea.vmem %s3, %s270
      %p272 = scmp.lt.s32.totalorder %s18, 1
      %s273 = scalar_select %p272, %s18, 1
      %s274 = smul.addr %s273, 2
      %s275 = scalar_lea.vmem %s4, %s274
      %p276 = scmp.lt.s32.totalorder %s18, 1
      %s277 = scalar_select %p276, %s18, 1
      %s278 = smul.addr %s277, 8
      %s279 = smul.addr %s278, 4
      %s280 = scalar_lea.vmem %s5, %s279
      %p281 = scmp.lt.s32.totalorder %s18, 1
      %s282 = scalar_select %p281, %s18, 1
      %s283 = smul.addr %s282, 2
      %s284 = scalar_lea.vmem %s6, %s283
      %s286 = smul.u32 0, 2
      %s287 = smul.addr %s286, 4
      %s288 = scalar_lea.vmem %s266, %s287
      %v289 = vld [vmem:[%s288] sm:$0xf]
      %v290 = vld [vmem:[%s288 + $0x8] sm:$0xf]
      %v291 = vld [vmem:[%s288 + $0x10] sm:$0xf]
      %v292 = vld [vmem:[%s288 + $0x18] sm:$0xf]
      %v293 = vld [vmem:[%s288 + $0x20] sm:$0xf]
      %v294 = vld [vmem:[%s288 + $0x28] sm:$0xf]
      %v295 = vld [vmem:[%s288 + $0x30] sm:$0xf]
      %v296 = vld [vmem:[%s288 + $0x38] sm:$0xf]
      %v297 = vld [vmem:[%s1] sm:$0xf]
      %v298 = vld [vmem:[%s1 + $0x4] sm:$0xf]
      %v299 = vld [vmem:[%s1 + $0x8] sm:$0xf]
      %v300 = vld [vmem:[%s1 + $0xc] sm:$0xf]
      %v301 = vld [vmem:[%s1 + $0x10] sm:$0xf]
      %v302 = vld [vmem:[%s1 + $0x14] sm:$0xf]
      %v303 = vld [vmem:[%s1 + $0x18] sm:$0xf]
      %v304 = vld [vmem:[%s1 + $0x1c] sm:$0xf]
      %v305 = vld [vmem:[%s1 + $0x20] sm:$0xf]
      %v306 = vld [vmem:[%s1 + $0x24] sm:$0xf]
      %v307 = vld [vmem:[%s1 + $0x28] sm:$0xf]
      %v308 = vld [vmem:[%s1 + $0x2c] sm:$0xf]
      %v309 = vld [vmem:[%s1 + $0x30] sm:$0xf]
      %v310 = vld [vmem:[%s1 + $0x34] sm:$0xf]
      %v311 = vld [vmem:[%s1 + $0x38] sm:$0xf]
      %v312 = vld [vmem:[%s1 + $0x3c] sm:$0xf]
      %s313 = sadd.s32 %s286, 18
      %s314 = smul.addr %s313, 4
      %s315 = scalar_lea.vmem %s266, %s314
      %v316 = vld [vmem:[%s315] sm:$0xf]
      %v317 = vld [vmem:[%s315 + $0x8] sm:$0xf]
      %v318 = vld [vmem:[%s315 + $0x10] sm:$0xf]
      %v319 = vld [vmem:[%s315 + $0x18] sm:$0xf]
      %v320 = vld [vmem:[%s315 + $0x20] sm:$0xf]
      %v321 = vld [vmem:[%s315 + $0x28] sm:$0xf]
      %v322 = vld [vmem:[%s315 + $0x30] sm:$0xf]
      %v323 = vld [vmem:[%s315 + $0x38] sm:$0xf]
      %s324 = scalar_lea.vmem %s1, 64
      %v325 = vld [vmem:[%s324] sm:$0xf]
      %v326 = vld [vmem:[%s324 + $0x4] sm:$0xf]
      %v327 = vld [vmem:[%s324 + $0x8] sm:$0xf]
      %v328 = vld [vmem:[%s324 + $0xc] sm:$0xf]
      %v329 = vld [vmem:[%s324 + $0x10] sm:$0xf]
      %v330 = vld [vmem:[%s324 + $0x14] sm:$0xf]
      %v331 = vld [vmem:[%s324 + $0x18] sm:$0xf]
      %v332 = vld [vmem:[%s324 + $0x1c] sm:$0xf]
      %v333 = vld [vmem:[%s324 + $0x20] sm:$0xf]
      %v334 = vld [vmem:[%s324 + $0x24] sm:$0xf]
      %v335 = vld [vmem:[%s324 + $0x28] sm:$0xf]
      %v336 = vld [vmem:[%s324 + $0x2c] sm:$0xf]
      %v337 = vld [vmem:[%s324 + $0x30] sm:$0xf]
      %v338 = vld [vmem:[%s324 + $0x34] sm:$0xf]
      %v339 = vld [vmem:[%s324 + $0x38] sm:$0xf]
      %v340 = vld [vmem:[%s324 + $0x3c] sm:$0xf]
      %v349 = vunpack.c.l.b16 %v316
      %v350 = vunpack.c.l.b16 %v317
      %v351 = vunpack.c.l.b16 %v318
      %v352 = vunpack.c.l.b16 %v319
      %v353 = vunpack.c.l.b16 %v320
      %v354 = vunpack.c.l.b16 %v321
      %v355 = vunpack.c.l.b16 %v322
      %v356 = vunpack.c.l.b16 %v323
      %v357 = vpack.c.b16 %v350, %v349
      %v358 = vpack.c.b16 %v352, %v351
      %v359 = vpack.c.b16 %v354, %v353
      %v360 = vpack.c.b16 %v356, %v355
      %v381 = vunpack.c.l.b16 %v325
      %v382 = vunpack.c.l.b16 %v326
      %v383 = vunpack.c.l.b16 %v327
      %v384 = vunpack.c.l.b16 %v328
      %v385 = vunpack.c.l.b16 %v329
      %v386 = vunpack.c.l.b16 %v330
      %v387 = vunpack.c.l.b16 %v331
      %v388 = vunpack.c.l.b16 %v332
      %v389 = vunpack.c.l.b16 %v333
      %v390 = vunpack.c.l.b16 %v334
      %v391 = vunpack.c.l.b16 %v335
      %v392 = vunpack.c.l.b16 %v336
      %v393 = vunpack.c.l.b16 %v337
      %v394 = vunpack.c.l.b16 %v338
      %v395 = vunpack.c.l.b16 %v339
      %v396 = vunpack.c.l.b16 %v340
      %v397 = vpack.c.b16 %v382, %v381
      %v398 = vpack.c.b16 %v384, %v383
      %v399 = vpack.c.b16 %v386, %v385
      %v400 = vpack.c.b16 %v388, %v387
      %v401 = vpack.c.b16 %v390, %v389
      %v402 = vpack.c.b16 %v392, %v391
      %v403 = vpack.c.b16 %v394, %v393
      %v404 = vpack.c.b16 %v396, %v395
      %413 = vmatprep.subr.bf16.mxu0 0
      %414 = vmatpush1.bf16.msra.mxu0 %v397
      %415 = vmatprep.subr.bf16.mxu0 0
      %416 = vmatpush1.bf16.msra.mxu0 %v398
      %417 = vmatprep.subr.bf16.mxu0 0
      %418 = vmatpush1.bf16.msra.mxu0 %v399
      %419 = vmatprep.subr.bf16.mxu0 0
      %420 = vmatpush1.bf16.msra.mxu0 %v400
      %421 = vmatprep.subr.bf16.mxu0 0
      %422 = vmatpush1.bf16.msra.mxu0 %v401
      %423 = vmatprep.subr.bf16.mxu0 0
      %424 = vmatpush1.bf16.msra.mxu0 %v402
      %425 = vmatprep.subr.bf16.mxu0 0
      %426 = vmatpush1.bf16.msra.mxu0 %v403
      %427 = vmatprep.subr.bf16.mxu0 0
      %428 = vmatpush1.bf16.msra.mxu0 %v404
      %429 = vmatprep.subr.bf16.mxu0 0
      %430 = vmatpush1.bf16.msra.mxu0 0
      %431 = vmatprep.subr.bf16.mxu0 0
      %432 = vmatpush1.bf16.msra.mxu0 0
      %433 = vmatprep.subr.bf16.mxu0 0
      %434 = vmatpush1.bf16.msra.mxu0 0
      %435 = vmatprep.subr.bf16.mxu0 0
      %436 = vmatpush1.bf16.msra.mxu0 0
      %437 = vmatprep.subr.bf16.mxu0 0
      %438 = vmatpush1.bf16.msra.mxu0 0
      %439 = vmatprep.subr.bf16.mxu0 0
      %440 = vmatpush1.bf16.msra.mxu0 0
      %441 = vmatprep.subr.bf16.mxu0 0
      %442 = vmatpush1.bf16.msra.mxu0 0
      %443 = vmatprep.subr.bf16.mxu0 0
      %444 = vmatpush1.bf16.msra.mxu0 0
      %445 = vmatprep.mubr.bf16.mxu0 0
      %446 = vmatmul.mubr.bf16.gmra.mrb[0].mxu0 %v357
      %v447 = vpop.f32.mrb[0].mxu0
      %v448 = vadd.f32 0.0, %v447
      %v449 = vpop.f32.mrb[0].mxu0
      %v450 = vpop.f32.mrb[0].mxu0
      %v451 = vadd.f32 0.0, %v450
      %v452 = vpop.f32.mrb[0].mxu0
      %453 = vmatprep.mubr.bf16.mxu0 0
      %454 = vmatmul.mubr.bf16.gmra.mrb[0].mxu0 %v358
      %v455 = vpop.f32.mrb[0].mxu0
      %v456 = vadd.f32 0.0, %v455
      %v457 = vpop.f32.mrb[0].mxu0
      %v458 = vpop.f32.mrb[0].mxu0
      %v459 = vadd.f32 0.0, %v458
      %v460 = vpop.f32.mrb[0].mxu0
      %461 = vmatprep.mubr.bf16.mxu0 0
      %462 = vmatmul.mubr.bf16.gmra.mrb[0].mxu0 %v359
      %v463 = vpop.f32.mrb[0].mxu0
      %v464 = vadd.f32 0.0, %v463
      %v465 = vpop.f32.mrb[0].mxu0
      %v466 = vpop.f32.mrb[0].mxu0
      %v467 = vadd.f32 0.0, %v466
      %v468 = vpop.f32.mrb[0].mxu0
      %469 = vmatprep.mubr.bf16.mxu0 0
      %470 = vmatmul.mubr.bf16.gmra.mrb[0].mxu0 %v360
      %v471 = vpop.f32.mrb[0].mxu0
      %v472 = vadd.f32 0.0, %v471
      %v473 = vpop.f32.mrb[0].mxu0
      %v474 = vpop.f32.mrb[0].mxu0
      %v475 = vadd.f32 0.0, %v474
      %v476 = vpop.f32.mrb[0].mxu0
      %477 = vdwg.mxu0
      %v486 = vunpack.c.l.b16 %v289
      %v487 = vunpack.c.l.b16 %v290
      %v488 = vunpack.c.l.b16 %v291
      %v489 = vunpack.c.l.b16 %v292
      %v490 = vunpack.c.l.b16 %v293
      %v491 = vunpack.c.l.b16 %v294
      %v492 = vunpack.c.l.b16 %v295
      %v493 = vunpack.c.l.b16 %v296
      %v494 = vpack.c.b16 %v487, %v486
      %v495 = vpack.c.b16 %v489, %v488
      %v496 = vpack.c.b16 %v491, %v490
      %v497 = vpack.c.b16 %v493, %v492
      %v518 = vunpack.c.l.b16 %v297
      %v519 = vunpack.c.l.b16 %v298
      %v520 = vunpack.c.l.b16 %v299
      %v521 = vunpack.c.l.b16 %v300
      %v522 = vunpack.c.l.b16 %v301
      %v523 = vunpack.c.l.b16 %v302
      %v524 = vunpack.c.l.b16 %v303
      %v525 = vunpack.c.l.b16 %v304
      %v526 = vunpack.c.l.b16 %v305
      %v527 = vunpack.c.l.b16 %v306
      %v528 = vunpack.c.l.b16 %v307
      %v529 = vunpack.c.l.b16 %v308
      %v530 = vunpack.c.l.b16 %v309
      %v531 = vunpack.c.l.b16 %v310
      %v532 = vunpack.c.l.b16 %v311
      %v533 = vunpack.c.l.b16 %v312
      %v534 = vpack.c.b16 %v519, %v518
      %v535 = vpack.c.b16 %v521, %v520
      %v536 = vpack.c.b16 %v523, %v522
      %v537 = vpack.c.b16 %v525, %v524
      %v538 = vpack.c.b16 %v527, %v526
      %v539 = vpack.c.b16 %v529, %v528
      %v540 = vpack.c.b16 %v531, %v530
      %v541 = vpack.c.b16 %v533, %v532
      %550 = vmatprep.subr.bf16.mxu0 0
      %551 = vmatpush1.bf16.msra.mxu0 %v534
      %552 = vmatprep.subr.bf16.mxu0 0
      %553 = vmatpush1.bf16.msra.mxu0 %v535
      %554 = vmatprep.subr.bf16.mxu0 0
      %555 = vmatpush1.bf16.msra.mxu0 %v536
      %556 = vmatprep.subr.bf16.mxu0 0
      %557 = vmatpush1.bf16.msra.mxu0 %v537
      %558 = vmatprep.subr.bf16.mxu0 0
      %559 = vmatpush1.bf16.msra.mxu0 %v538
      %560 = vmatprep.subr.bf16.mxu0 0
      %561 = vmatpush1.bf16.msra.mxu0 %v539
      %562 = vmatprep.subr.bf16.mxu0 0
      %563 = vmatpush1.bf16.msra.mxu0 %v540
      %564 = vmatprep.subr.bf16.mxu0 0
      %565 = vmatpush1.bf16.msra.mxu0 %v541
      %566 = vmatprep.subr.bf16.mxu0 0
      %567 = vmatpush1.bf16.msra.mxu0 0
      %568 = vmatprep.subr.bf16.mxu0 0
      %569 = vmatpush1.bf16.msra.mxu0 0
      %570 = vmatprep.subr.bf16.mxu0 0
      %571 = vmatpush1.bf16.msra.mxu0 0
      %572 = vmatprep.subr.bf16.mxu0 0
      %573 = vmatpush1.bf16.msra.mxu0 0
      %574 = vmatprep.subr.bf16.mxu0 0
      %575 = vmatpush1.bf16.msra.mxu0 0
      %576 = vmatprep.subr.bf16.mxu0 0
      %577 = vmatpush1.bf16.msra.mxu0 0
      %578 = vmatprep.subr.bf16.mxu0 0
      %579 = vmatpush1.bf16.msra.mxu0 0
      %580 = vmatprep.subr.bf16.mxu0 0
      %581 = vmatpush1.bf16.msra.mxu0 0
      %582 = vmatprep.mubr.bf16.mxu0 0
      %583 = vmatmul.mubr.bf16.gmra.mrb[0].mxu0 %v494
      %v584 = vpop.f32.mrb[0].mxu0
      %v585 = vadd.f32 %v448, %v584
      %v586 = vpop.f32.mrb[0].mxu0
      %v587 = vpop.f32.mrb[0].mxu0
      %v588 = vadd.f32 %v451, %v587
      %v589 = vpop.f32.mrb[0].mxu0
      %590 = vmatprep.mubr.bf16.mxu0 0
      %591 = vmatmul.mubr.bf16.gmra.mrb[0].mxu0 %v495
      %v592 = vpop.f32.mrb[0].mxu0
      %v593 = vadd.f32 %v456, %v592
      %v594 = vpop.f32.mrb[0].mxu0
      %v595 = vpop.f32.mrb[0].mxu0
      %v596 = vadd.f32 %v459, %v595
      %v597 = vpop.f32.mrb[0].mxu0
      %598 = vmatprep.mubr.bf16.mxu0 0
      %599 = vmatmul.mubr.bf16.gmra.mrb[0].mxu0 %v496
      %v600 = vpop.f32.mrb[0].mxu0
      %v601 = vadd.f32 %v464, %v600
      %v602 = vpop.f32.mrb[0].mxu0
      %v603 = vpop.f32.mrb[0].mxu0
      %v604 = vadd.f32 %v467, %v603
      %v605 = vpop.f32.mrb[0].mxu0
      %606 = vmatprep.mubr.bf16.mxu0 0
      %607 = vmatmul.mubr.bf16.gmra.mrb[0].mxu0 %v497
      %v608 = vpop.f32.mrb[0].mxu0
      %v609 = vadd.f32 %v472, %v608
      %v610 = vpop.f32.mrb[0].mxu0
      %v611 = vpop.f32.mrb[0].mxu0
      %v612 = vadd.f32 %v475, %v611
      %v613 = vpop.f32.mrb[0].mxu0
      %614 = vdwg.mxu0
      %v615 = vld [vmem:[%s288] sm:$0xf]
      %v616 = vld [vmem:[%s288 + $0x4] sm:$0x1]
      %v617 = vld [vmem:[%s288 + $0x8] sm:$0xf]
      %v618 = vld [vmem:[%s288 + $0xc] sm:$0x1]
      %v619 = vld [vmem:[%s288 + $0x10] sm:$0xf]
      %v620 = vld [vmem:[%s288 + $0x14] sm:$0x1]
      %v621 = vld [vmem:[%s288 + $0x18] sm:$0xf]
      %v622 = vld [vmem:[%s288 + $0x1c] sm:$0x1]
      %v623 = vld [vmem:[%s288 + $0x20] sm:$0xf]
      %v624 = vld [vmem:[%s288 + $0x24] sm:$0x1]
      %v625 = vld [vmem:[%s288 + $0x28] sm:$0xf]
      %v626 = vld [vmem:[%s288 + $0x2c] sm:$0x1]
      %v627 = vld [vmem:[%s288 + $0x30] sm:$0xf]
      %v628 = vld [vmem:[%s288 + $0x34] sm:$0x1]
      %v629 = vld [vmem:[%s288 + $0x38] sm:$0xf]
      %v630 = vld [vmem:[%s288 + $0x3c] sm:$0x1]
      %vm631 = vsmask.f32 3328
      %vm632 = vsmask.f32 7440
      %vm633 = vmor %vm631, %vm632
      %v635 = vshrl.u32 %v615, 16
      %v637 = vrot.slane %v635, 4
      %v638 = vshll.u32 %v615, 16
      %v640 = vrot.slane %v638, 5
      %v641 = vor.u32 %v637, %v640
      %v642 = vrot.slane %v641, 4
      %v644 = vshll.u32 %v616, 16
      %v646 = vrot.slane %v644, 5
      %v647 = vsel %vm633, %v642, %v646
      %v649 = vshrl.u32 %v617, 16
      %v651 = vrot.slane %v649, 4
      %v652 = vshll.u32 %v617, 16
      %v654 = vrot.slane %v652, 5
      %v655 = vor.u32 %v651, %v654
      %v656 = vrot.slane %v655, 4
      %v658 = vshll.u32 %v618, 16
      %v660 = vrot.slane %v658, 5
      %v661 = vsel %vm633, %v656, %v660
      %v663 = vshrl.u32 %v619, 16
      %v665 = vrot.slane %v663, 4
      %v666 = vshll.u32 %v619, 16
      %v668 = vrot.slane %v666, 5
      %v669 = vor.u32 %v665, %v668
      %v670 = vrot.slane %v669, 4
      %v672 = vshll.u32 %v620, 16
      %v674 = vrot.slane %v672, 5
      %v675 = vsel %vm633, %v670, %v674
      %v677 = vshrl.u32 %v621, 16
      %v679 = vrot.slane %v677, 4
      %v680 = vshll.u32 %v621, 16
      %v682 = vrot.slane %v680, 5
      %v683 = vor.u32 %v679, %v682
      %v684 = vrot.slane %v683, 4
      %v686 = vshll.u32 %v622, 16
      %v688 = vrot.slane %v686, 5
      %v689 = vsel %vm633, %v684, %v688
      %v691 = vshrl.u32 %v623, 16
      %v693 = vrot.slane %v691, 4
      %v694 = vshll.u32 %v623, 16
      %v696 = vrot.slane %v694, 5
      %v697 = vor.u32 %v693, %v696
      %v698 = vrot.slane %v697, 4
      %v700 = vshll.u32 %v624, 16
      %v702 = vrot.slane %v700, 5
      %v703 = vsel %vm633, %v698, %v702
      %v705 = vshrl.u32 %v625, 16
      %v707 = vrot.slane %v705, 4
      %v708 = vshll.u32 %v625, 16
      %v710 = vrot.slane %v708, 5
      %v711 = vor.u32 %v707, %v710
      %v712 = vrot.slane %v711, 4
      %v714 = vshll.u32 %v626, 16
      %v716 = vrot.slane %v714, 5
      %v717 = vsel %vm633, %v712, %v716
      %v719 = vshrl.u32 %v627, 16
      %v721 = vrot.slane %v719, 4
      %v722 = vshll.u32 %v627, 16
      %v724 = vrot.slane %v722, 5
      %v725 = vor.u32 %v721, %v724
      %v726 = vrot.slane %v725, 4
      %v728 = vshll.u32 %v628, 16
      %v730 = vrot.slane %v728, 5
      %v731 = vsel %vm633, %v726, %v730
      %v733 = vshrl.u32 %v629, 16
      %v735 = vrot.slane %v733, 4
      %v736 = vshll.u32 %v629, 16
      %v738 = vrot.slane %v736, 5
      %v739 = vor.u32 %v735, %v738
      %v740 = vrot.slane %v739, 4
      %v742 = vshll.u32 %v630, 16
      %v744 = vrot.slane %v742, 5
      %v745 = vsel %vm633, %v740, %v744
      %s746 = scalar_lea.vmem %s1, 128
      %v747 = vld [vmem:[%s746] sm:$0xf]
      %v748 = vld [vmem:[%s746 + $0x4] sm:$0xf]
      %v749 = vld [vmem:[%s746 + $0x8] sm:$0xf]
      %v750 = vld [vmem:[%s746 + $0xc] sm:$0xf]
      %v751 = vld [vmem:[%s746 + $0x10] sm:$0xf]
      %v752 = vld [vmem:[%s746 + $0x14] sm:$0xf]
      %v753 = vld [vmem:[%s746 + $0x18] sm:$0xf]
      %v754 = vld [vmem:[%s746 + $0x1c] sm:$0xf]
      %v755 = vld [vmem:[%s746 + $0x20] sm:$0xf]
      %v756 = vld [vmem:[%s746 + $0x24] sm:$0xf]
      %v757 = vld [vmem:[%s746 + $0x28] sm:$0xf]
      %v758 = vld [vmem:[%s746 + $0x2c] sm:$0xf]
      %v759 = vld [vmem:[%s746 + $0x30] sm:$0xf]
      %v760 = vld [vmem:[%s746 + $0x34] sm:$0xf]
      %v761 = vld [vmem:[%s746 + $0x38] sm:$0xf]
      %v762 = vld [vmem:[%s746 + $0x3c] sm:$0xf]
      %v763 = vunpack.c.l.b16 %v647
      %v764 = vunpack.c.l.b16 %v661
      %v765 = vunpack.c.l.b16 %v675
      %v766 = vunpack.c.l.b16 %v689
      %v767 = vunpack.c.l.b16 %v703
      %v768 = vunpack.c.l.b16 %v717
      %v769 = vunpack.c.l.b16 %v731
      %v770 = vunpack.c.l.b16 %v745
      %v771 = vpack.c.b16 %v764, %v763
      %v772 = vpack.c.b16 %v766, %v765
      %v773 = vpack.c.b16 %v768, %v767
      %v774 = vpack.c.b16 %v770, %v769
      %v795 = vunpack.c.l.b16 %v747
      %v796 = vunpack.c.l.b16 %v748
      %v797 = vunpack.c.l.b16 %v749
      %v798 = vunpack.c.l.b16 %v750
      %v799 = vunpack.c.l.b16 %v751
      %v800 = vunpack.c.l.b16 %v752
      %v801 = vunpack.c.l.b16 %v753
      %v802 = vunpack.c.l.b16 %v754
      %v803 = vunpack.c.l.b16 %v755
      %v804 = vunpack.c.l.b16 %v756
      %v805 = vunpack.c.l.b16 %v757
      %v806 = vunpack.c.l.b16 %v758
      %v807 = vunpack.c.l.b16 %v759
      %v808 = vunpack.c.l.b16 %v760
      %v809 = vunpack.c.l.b16 %v761
      %v810 = vunpack.c.l.b16 %v762
      %v811 = vpack.c.b16 %v796, %v795
      %v812 = vpack.c.b16 %v798, %v797
      %v813 = vpack.c.b16 %v800, %v799
      %v814 = vpack.c.b16 %v802, %v801
      %v815 = vpack.c.b16 %v804, %v803
      %v816 = vpack.c.b16 %v806, %v805
      %v817 = vpack.c.b16 %v808, %v807
      %v818 = vpack.c.b16 %v810, %v809
      %827 = vmatprep.subr.bf16.mxu0 0
      %828 = vmatpush1.bf16.msra.mxu0 %v811
      %829 = vmatprep.subr.bf16.mxu0 0
      %830 = vmatpush1.bf16.msra.mxu0 %v812
      %831 = vmatprep.subr.bf16.mxu0 0
      %832 = vmatpush1.bf16.msra.mxu0 %v813
      %833 = vmatprep.subr.bf16.mxu0 0
      %834 = vmatpush1.bf16.msra.mxu0 %v814
      %835 = vmatprep.subr.bf16.mxu0 0
      %836 = vmatpush1.bf16.msra.mxu0 %v815
      %837 = vmatprep.subr.bf16.mxu0 0
      %838 = vmatpush1.bf16.msra.mxu0 %v816
      %839 = vmatprep.subr.bf16.mxu0 0
      %840 = vmatpush1.bf16.msra.mxu0 %v817
      %841 = vmatprep.subr.bf16.mxu0 0
      %842 = vmatpush1.bf16.msra.mxu0 %v818
      %843 = vmatprep.subr.bf16.mxu0 0
      %844 = vmatpush1.bf16.msra.mxu0 0
      %845 = vmatprep.subr.bf16.mxu0 0
      %846 = vmatpush1.bf16.msra.mxu0 0
      %847 = vmatprep.subr.bf16.mxu0 0
      %848 = vmatpush1.bf16.msra.mxu0 0
      %849 = vmatprep.subr.bf16.mxu0 0
      %850 = vmatpush1.bf16.msra.mxu0 0
      %851 = vmatprep.subr.bf16.mxu0 0
      %852 = vmatpush1.bf16.msra.mxu0 0
      %853 = vmatprep.subr.bf16.mxu0 0
      %854 = vmatpush1.bf16.msra.mxu0 0
      %855 = vmatprep.subr.bf16.mxu0 0
      %856 = vmatpush1.bf16.msra.mxu0 0
      %857 = vmatprep.subr.bf16.mxu0 0
      %858 = vmatpush1.bf16.msra.mxu0 0
      %859 = vmatprep.mubr.bf16.mxu0 0
      %860 = vmatmul.mubr.bf16.gmra.mrb[0].mxu0 %v771
      %v861 = vpop.f32.mrb[0].mxu0
      %v862 = vadd.f32 0.0, %v861
      %v863 = vpop.f32.mrb[0].mxu0
      %v864 = vpop.f32.mrb[0].mxu0
      %v865 = vadd.f32 0.0, %v864
      %v866 = vpop.f32.mrb[0].mxu0
      %867 = vmatprep.mubr.bf16.mxu0 0
      %868 = vmatmul.mubr.bf16.gmra.mrb[0].mxu0 %v772
      %v869 = vpop.f32.mrb[0].mxu0
      %v870 = vadd.f32 0.0, %v869
      %v871 = vpop.f32.mrb[0].mxu0
      %v872 = vpop.f32.mrb[0].mxu0
      %v873 = vadd.f32 0.0, %v872
      %v874 = vpop.f32.mrb[0].mxu0
      %875 = vmatprep.mubr.bf16.mxu0 0
      %876 = vmatmul.mubr.bf16.gmra.mrb[0].mxu0 %v773
      %v877 = vpop.f32.mrb[0].mxu0
      %v878 = vadd.f32 0.0, %v877
      %v879 = vpop.f32.mrb[0].mxu0
      %v880 = vpop.f32.mrb[0].mxu0
      %v881 = vadd.f32 0.0, %v880
      %v882 = vpop.f32.mrb[0].mxu0
      %883 = vmatprep.mubr.bf16.mxu0 0
      %884 = vmatmul.mubr.bf16.gmra.mrb[0].mxu0 %v774
      %v885 = vpop.f32.mrb[0].mxu0
      %v886 = vadd.f32 0.0, %v885
      %v887 = vpop.f32.mrb[0].mxu0
      %v888 = vpop.f32.mrb[0].mxu0
      %v889 = vadd.f32 0.0, %v888
      %v890 = vpop.f32.mrb[0].mxu0
      %891 = vdwg.mxu0
      %v892 = vadd.f32 %v585, %v862
      %v893 = vadd.f32 %v588, %v865
      %v894 = vadd.f32 %v593, %v870
      %v895 = vadd.f32 %v596, %v873
      %v896 = vadd.f32 %v601, %v878
      %v897 = vadd.f32 %v604, %v881
      %v898 = vadd.f32 %v609, %v886
      %v899 = vadd.f32 %v612, %v889
      %s900 = sadd.s32 %s286, 36
      %s901 = smul.addr %s900, 4
      %s902 = scalar_lea.vmem %s266, %s901
      %v903 = vld [vmem:[%s902] sm:$0xf]
      %v904 = vld [vmem:[%s902 + $0x8] sm:$0xf]
      %v905 = vld [vmem:[%s902 + $0x10] sm:$0xf]
      %v906 = vld [vmem:[%s902 + $0x18] sm:$0xf]
      %v907 = vld [vmem:[%s902 + $0x20] sm:$0xf]
      %v908 = vld [vmem:[%s902 + $0x28] sm:$0xf]
      %v909 = vld [vmem:[%s902 + $0x30] sm:$0xf]
      %v910 = vld [vmem:[%s902 + $0x38] sm:$0xf]
      %s911 = scalar_lea.vmem %s1, 192
      %v912 = vld [vmem:[%s911] sm:$0xf]
      %v913 = vld [vmem:[%s911 + $0x4] sm:$0xf]
      %v914 = vld [vmem:[%s911 + $0x8] sm:$0xf]
      %v915 = vld [vmem:[%s911 + $0xc] sm:$0xf]
      %v916 = vld [vmem:[%s911 + $0x10] sm:$0xf]
      %v917 = vld [vmem:[%s911 + $0x14] sm:$0xf]
      %v918 = vld [vmem:[%s911 + $0x18] sm:$0xf]
      %v919 = vld [vmem:[%s911 + $0x1c] sm:$0xf]
      %v920 = vld [vmem:[%s911 + $0x20] sm:$0xf]
      %v921 = vld [vmem:[%s911 + $0x24] sm:$0xf]
      %v922 = vld [vmem:[%s911 + $0x28] sm:$0xf]
      %v923 = vld [vmem:[%s911 + $0x2c] sm:$0xf]
      %v924 = vld [vmem:[%s911 + $0x30] sm:$0xf]
      %v925 = vld [vmem:[%s911 + $0x34] sm:$0xf]
      %v926 = vld [vmem:[%s911 + $0x38] sm:$0xf]
      %v927 = vld [vmem:[%s911 + $0x3c] sm:$0xf]
      %v936 = vunpack.c.l.b16 %v903
      %v937 = vunpack.c.l.b16 %v904
      %v938 = vunpack.c.l.b16 %v905
      %v939 = vunpack.c.l.b16 %v906
      %v940 = vunpack.c.l.b16 %v907
      %v941 = vunpack.c.l.b16 %v908
      %v942 = vunpack.c.l.b16 %v909
      %v943 = vunpack.c.l.b16 %v910
      %v944 = vpack.c.b16 %v937, %v936
      %v945 = vpack.c.b16 %v939, %v938
      %v946 = vpack.c.b16 %v941, %v940
      %v947 = vpack.c.b16 %v943, %v942
      %v968 = vunpack.c.l.b16 %v912
      %v969 = vunpack.c.l.b16 %v913
      %v970 = vunpack.c.l.b16 %v914
      %v971 = vunpack.c.l.b16 %v915
      %v972 = vunpack.c.l.b16 %v916
      %v973 = vunpack.c.l.b16 %v917
      %v974 = vunpack.c.l.b16 %v918
      %v975 = vunpack.c.l.b16 %v919
      %v976 = vunpack.c.l.b16 %v920
      %v977 = vunpack.c.l.b16 %v921
      %v978 = vunpack.c.l.b16 %v922
      %v979 = vunpack.c.l.b16 %v923
      %v980 = vunpack.c.l.b16 %v924
      %v981 = vunpack.c.l.b16 %v925
      %v982 = vunpack.c.l.b16 %v926
      %v983 = vunpack.c.l.b16 %v927
      %v984 = vpack.c.b16 %v969, %v968
      %v985 = vpack.c.b16 %v971, %v970
      %v986 = vpack.c.b16 %v973, %v972
      %v987 = vpack.c.b16 %v975, %v974
      %v988 = vpack.c.b16 %v977, %v976
      %v989 = vpack.c.b16 %v979, %v978
      %v990 = vpack.c.b16 %v981, %v980
      %v991 = vpack.c.b16 %v983, %v982
      %1000 = vmatprep.subr.bf16.mxu0 0
      %1001 = vmatpush1.bf16.msra.mxu0 %v984
      %1002 = vmatprep.subr.bf16.mxu0 0
      %1003 = vmatpush1.bf16.msra.mxu0 %v985
      %1004 = vmatprep.subr.bf16.mxu0 0
      %1005 = vmatpush1.bf16.msra.mxu0 %v986
      %1006 = vmatprep.subr.bf16.mxu0 0
      %1007 = vmatpush1.bf16.msra.mxu0 %v987
      %1008 = vmatprep.subr.bf16.mxu0 0
      %1009 = vmatpush1.bf16.msra.mxu0 %v988
      %1010 = vmatprep.subr.bf16.mxu0 0
      %1011 = vmatpush1.bf16.msra.mxu0 %v989
      %1012 = vmatprep.subr.bf16.mxu0 0
      %1013 = vmatpush1.bf16.msra.mxu0 %v990
      %1014 = vmatprep.subr.bf16.mxu0 0
      %1015 = vmatpush1.bf16.msra.mxu0 %v991
      %1016 = vmatprep.subr.bf16.mxu0 0
      %1017 = vmatpush1.bf16.msra.mxu0 0
      %1018 = vmatprep.subr.bf16.mxu0 0
      %1019 = vmatpush1.bf16.msra.mxu0 0
      %1020 = vmatprep.subr.bf16.mxu0 0
      %1021 = vmatpush1.bf16.msra.mxu0 0
      %1022 = vmatprep.subr.bf16.mxu0 0
      %1023 = vmatpush1.bf16.msra.mxu0 0
      %1024 = vmatprep.subr.bf16.mxu0 0
      %1025 = vmatpush1.bf16.msra.mxu0 0
      %1026 = vmatprep.subr.bf16.mxu0 0
      %1027 = vmatpush1.bf16.msra.mxu0 0
      %1028 = vmatprep.subr.bf16.mxu0 0
      %1029 = vmatpush1.bf16.msra.mxu0 0
      %1030 = vmatprep.subr.bf16.mxu0 0
      %1031 = vmatpush1.bf16.msra.mxu0 0
      %1032 = vmatprep.mubr.bf16.mxu0 0
      %1033 = vmatmul.mubr.bf16.gmra.mrb[0].mxu0 %v944
      %v1034 = vpop.f32.mrb[0].mxu0
      %v1035 = vadd.f32 0.0, %v1034
      %v1036 = vpop.f32.mrb[0].mxu0
      %v1037 = vpop.f32.mrb[0].mxu0
      %v1038 = vadd.f32 0.0, %v1037
      %v1039 = vpop.f32.mrb[0].mxu0
      %1040 = vmatprep.mubr.bf16.mxu0 0
      %1041 = vmatmul.mubr.bf16.gmra.mrb[0].mxu0 %v945
      %v1042 = vpop.f32.mrb[0].mxu0
      %v1043 = vadd.f32 0.0, %v1042
      %v1044 = vpop.f32.mrb[0].mxu0
      %v1045 = vpop.f32.mrb[0].mxu0
      %v1046 = vadd.f32 0.0, %v1045
      %v1047 = vpop.f32.mrb[0].mxu0
      %1048 = vmatprep.mubr.bf16.mxu0 0
      %1049 = vmatmul.mubr.bf16.gmra.mrb[0].mxu0 %v946
      %v1050 = vpop.f32.mrb[0].mxu0
      %v1051 = vadd.f32 0.0, %v1050
      %v1052 = vpop.f32.mrb[0].mxu0
      %v1053 = vpop.f32.mrb[0].mxu0
      %v1054 = vadd.f32 0.0, %v1053
      %v1055 = vpop.f32.mrb[0].mxu0
      %1056 = vmatprep.mubr.bf16.mxu0 0
      %1057 = vmatmul.mubr.bf16.gmra.mrb[0].mxu0 %v947
      %v1058 = vpop.f32.mrb[0].mxu0
      %v1059 = vadd.f32 0.0, %v1058
      %v1060 = vpop.f32.mrb[0].mxu0
      %v1061 = vpop.f32.mrb[0].mxu0
      %v1062 = vadd.f32 0.0, %v1061
      %v1063 = vpop.f32.mrb[0].mxu0
      %1064 = vdwg.mxu0
      %v1065 = vadd.f32 %v892, %v1035
      %v1066 = vadd.f32 %v893, %v1038
      %v1067 = vadd.f32 %v894, %v1043
      %v1068 = vadd.f32 %v895, %v1046
      %v1069 = vadd.f32 %v896, %v1051
      %v1070 = vadd.f32 %v897, %v1054
      %v1071 = vadd.f32 %v898, %v1059
      %v1072 = vadd.f32 %v899, %v1062
      %s1073 = sadd.s32 %s286, 54
      %s1074 = smul.addr %s1073, 4
      %s1075 = scalar_lea.vmem %s266, %s1074
      %v1076 = vld [vmem:[%s1075] sm:$0xf]
      %v1077 = vld [vmem:[%s1075 + $0x8] sm:$0xf]
      %v1078 = vld [vmem:[%s1075 + $0x10] sm:$0xf]
      %v1079 = vld [vmem:[%s1075 + $0x18] sm:$0xf]
      %v1080 = vld [vmem:[%s1075 + $0x20] sm:$0xf]
      %v1081 = vld [vmem:[%s1075 + $0x28] sm:$0xf]
      %v1082 = vld [vmem:[%s1075 + $0x30] sm:$0xf]
      %v1083 = vld [vmem:[%s1075 + $0x38] sm:$0xf]
      %s1084 = scalar_lea.vmem %s1, 256
      %v1085 = vld [vmem:[%s1084] sm:$0xf]
      %v1086 = vld [vmem:[%s1084 + $0x4] sm:$0xf]
      %v1087 = vld [vmem:[%s1084 + $0x8] sm:$0xf]
      %v1088 = vld [vmem:[%s1084 + $0xc] sm:$0xf]
      %v1089 = vld [vmem:[%s1084 + $0x10] sm:$0xf]
      %v1090 = vld [vmem:[%s1084 + $0x14] sm:$0xf]
      %v1091 = vld [vmem:[%s1084 + $0x18] sm:$0xf]
      %v1092 = vld [vmem:[%s1084 + $0x1c] sm:$0xf]
      %v1093 = vld [vmem:[%s1084 + $0x20] sm:$0xf]
      %v1094 = vld [vmem:[%s1084 + $0x24] sm:$0xf]
      %v1095 = vld [vmem:[%s1084 + $0x28] sm:$0xf]
      %v1096 = vld [vmem:[%s1084 + $0x2c] sm:$0xf]
      %v1097 = vld [vmem:[%s1084 + $0x30] sm:$0xf]
      %v1098 = vld [vmem:[%s1084 + $0x34] sm:$0xf]
      %v1099 = vld [vmem:[%s1084 + $0x38] sm:$0xf]
      %v1100 = vld [vmem:[%s1084 + $0x3c] sm:$0xf]
      %v1109 = vunpack.c.l.b16 %v1076
      %v1110 = vunpack.c.l.b16 %v1077
      %v1111 = vunpack.c.l.b16 %v1078
      %v1112 = vunpack.c.l.b16 %v1079
      %v1113 = vunpack.c.l.b16 %v1080
      %v1114 = vunpack.c.l.b16 %v1081
      %v1115 = vunpack.c.l.b16 %v1082
      %v1116 = vunpack.c.l.b16 %v1083
      %v1117 = vpack.c.b16 %v1110, %v1109
      %v1118 = vpack.c.b16 %v1112, %v1111
      %v1119 = vpack.c.b16 %v1114, %v1113
      %v1120 = vpack.c.b16 %v1116, %v1115
      %v1141 = vunpack.c.l.b16 %v1085
      %v1142 = vunpack.c.l.b16 %v1086
      %v1143 = vunpack.c.l.b16 %v1087
      %v1144 = vunpack.c.l.b16 %v1088
      %v1145 = vunpack.c.l.b16 %v1089
      %v1146 = vunpack.c.l.b16 %v1090
      %v1147 = vunpack.c.l.b16 %v1091
      %v1148 = vunpack.c.l.b16 %v1092
      %v1149 = vunpack.c.l.b16 %v1093
      %v1150 = vunpack.c.l.b16 %v1094
      %v1151 = vunpack.c.l.b16 %v1095
      %v1152 = vunpack.c.l.b16 %v1096
      %v1153 = vunpack.c.l.b16 %v1097
      %v1154 = vunpack.c.l.b16 %v1098
      %v1155 = vunpack.c.l.b16 %v1099
      %v1156 = vunpack.c.l.b16 %v1100
      %v1157 = vpack.c.b16 %v1142, %v1141
      %v1158 = vpack.c.b16 %v1144, %v1143
      %v1159 = vpack.c.b16 %v1146, %v1145
      %v1160 = vpack.c.b16 %v1148, %v1147
      %v1161 = vpack.c.b16 %v1150, %v1149
      %v1162 = vpack.c.b16 %v1152, %v1151
      %v1163 = vpack.c.b16 %v1154, %v1153
      %v1164 = vpack.c.b16 %v1156, %v1155
      %1173 = vmatprep.subr.bf16.mxu0 0
      %1174 = vmatpush1.bf16.msra.mxu0 %v1157
      %1175 = vmatprep.subr.bf16.mxu0 0
      %1176 = vmatpush1.bf16.msra.mxu0 %v1158
      %1177 = vmatprep.subr.bf16.mxu0 0
      %1178 = vmatpush1.bf16.msra.mxu0 %v1159
      %1179 = vmatprep.subr.bf16.mxu0 0
      %1180 = vmatpush1.bf16.msra.mxu0 %v1160
      %1181 = vmatprep.subr.bf16.mxu0 0
      %1182 = vmatpush1.bf16.msra.mxu0 %v1161
      %1183 = vmatprep.subr.bf16.mxu0 0
      %1184 = vmatpush1.bf16.msra.mxu0 %v1162
      %1185 = vmatprep.subr.bf16.mxu0 0
      %1186 = vmatpush1.bf16.msra.mxu0 %v1163
      %1187 = vmatprep.subr.bf16.mxu0 0
      %1188 = vmatpush1.bf16.msra.mxu0 %v1164
      %1189 = vmatprep.subr.bf16.mxu0 0
      %1190 = vmatpush1.bf16.msra.mxu0 0
      %1191 = vmatprep.subr.bf16.mxu0 0
      %1192 = vmatpush1.bf16.msra.mxu0 0
      %1193 = vmatprep.subr.bf16.mxu0 0
      %1194 = vmatpush1.bf16.msra.mxu0 0
      %1195 = vmatprep.subr.bf16.mxu0 0
      %1196 = vmatpush1.bf16.msra.mxu0 0
      %1197 = vmatprep.subr.bf16.mxu0 0
      %1198 = vmatpush1.bf16.msra.mxu0 0
      %1199 = vmatprep.subr.bf16.mxu0 0
      %1200 = vmatpush1.bf16.msra.mxu0 0
      %1201 = vmatprep.subr.bf16.mxu0 0
      %1202 = vmatpush1.bf16.msra.mxu0 0
      %1203 = vmatprep.subr.bf16.mxu0 0
      %1204 = vmatpush1.bf16.msra.mxu0 0
      %1205 = vmatprep.mubr.bf16.mxu0 0
      %1206 = vmatmul.mubr.bf16.gmra.mrb[0].mxu0 %v1117
      %v1207 = vpop.f32.mrb[0].mxu0
      %v1208 = vadd.f32 0.0, %v1207
      %v1209 = vpop.f32.mrb[0].mxu0
      %v1210 = vpop.f32.mrb[0].mxu0
      %v1211 = vadd.f32 0.0, %v1210
      %v1212 = vpop.f32.mrb[0].mxu0
      %1213 = vmatprep.mubr.bf16.mxu0 0
      %1214 = vmatmul.mubr.bf16.gmra.mrb[0].mxu0 %v1118
      %v1215 = vpop.f32.mrb[0].mxu0
      %v1216 = vadd.f32 0.0, %v1215
      %v1217 = vpop.f32.mrb[0].mxu0
      %v1218 = vpop.f32.mrb[0].mxu0
      %v1219 = vadd.f32 0.0, %v1218
      %v1220 = vpop.f32.mrb[0].mxu0
      %1221 = vmatprep.mubr.bf16.mxu0 0
      %1222 = vmatmul.mubr.bf16.gmra.mrb[0].mxu0 %v1119
      %v1223 = vpop.f32.mrb[0].mxu0
      %v1224 = vadd.f32 0.0, %v1223
      %v1225 = vpop.f32.mrb[0].mxu0
      %v1226 = vpop.f32.mrb[0].mxu0
      %v1227 = vadd.f32 0.0, %v1226
      %v1228 = vpop.f32.mrb[0].mxu0
      %1229 = vmatprep.mubr.bf16.mxu0 0
      %1230 = vmatmul.mubr.bf16.gmra.mrb[0].mxu0 %v1120
      %v1231 = vpop.f32.mrb[0].mxu0
      %v1232 = vadd.f32 0.0, %v1231
      %v1233 = vpop.f32.mrb[0].mxu0
      %v1234 = vpop.f32.mrb[0].mxu0
      %v1235 = vadd.f32 0.0, %v1234
      %v1236 = vpop.f32.mrb[0].mxu0
      %1237 = vdwg.mxu0
      %v1238 = vadd.f32 %v1065, %v1208
      %v1239 = vadd.f32 %v1066, %v1211
      %v1240 = vadd.f32 %v1067, %v1216
      %v1241 = vadd.f32 %v1068, %v1219
      %v1242 = vadd.f32 %v1069, %v1224
      %v1243 = vadd.f32 %v1070, %v1227
      %v1244 = vadd.f32 %v1071, %v1232
      %v1245 = vadd.f32 %v1072, %v1235
      %v1246 = vld [vmem:[%s902] sm:$0xf]
      %v1247 = vld [vmem:[%s902 + $0x4] sm:$0x1]
      %v1248 = vld [vmem:[%s902 + $0x8] sm:$0xf]
      %v1249 = vld [vmem:[%s902 + $0xc] sm:$0x1]
      %v1250 = vld [vmem:[%s902 + $0x10] sm:$0xf]
      %v1251 = vld [vmem:[%s902 + $0x14] sm:$0x1]
      %v1252 = vld [vmem:[%s902 + $0x18] sm:$0xf]
      %v1253 = vld [vmem:[%s902 + $0x1c] sm:$0x1]
      %v1254 = vld [vmem:[%s902 + $0x20] sm:$0xf]
      %v1255 = vld [vmem:[%s902 + $0x24] sm:$0x1]
      %v1256 = vld [vmem:[%s902 + $0x28] sm:$0xf]
      %v1257 = vld [vmem:[%s902 + $0x2c] sm:$0x1]
      %v1258 = vld [vmem:[%s902 + $0x30] sm:$0xf]
      %v1259 = vld [vmem:[%s902 + $0x34] sm:$0x1]
      %v1260 = vld [vmem:[%s902 + $0x38] sm:$0xf]
      %v1261 = vld [vmem:[%s902 + $0x3c] sm:$0x1]
      %v1263 = vshrl.u32 %v1246, 16
      %v1265 = vrot.slane %v1263, 4
      %v1266 = vshll.u32 %v1246, 16
      %v1268 = vrot.slane %v1266, 5
      %v1269 = vor.u32 %v1265, %v1268
      %v1270 = vrot.slane %v1269, 4
      %v1272 = vshll.u32 %v1247, 16
      %v1274 = vrot.slane %v1272, 5
      %v1275 = vsel %vm633, %v1270, %v1274
      %v1277 = vshrl.u32 %v1248, 16
      %v1279 = vrot.slane %v1277, 4
      %v1280 = vshll.u32 %v1248, 16
      %v1282 = vrot.slane %v1280, 5
      %v1283 = vor.u32 %v1279, %v1282
      %v1284 = vrot.slane %v1283, 4
      %v1286 = vshll.u32 %v1249, 16
      %v1288 = vrot.slane %v1286, 5
      %v1289 = vsel %vm633, %v1284, %v1288
      %v1291 = vshrl.u32 %v1250, 16
      %v1293 = vrot.slane %v1291, 4
      %v1294 = vshll.u32 %v1250, 16
      %v1296 = vrot.slane %v1294, 5
      %v1297 = vor.u32 %v1293, %v1296
      %v1298 = vrot.slane %v1297, 4
      %v1300 = vshll.u32 %v1251, 16
      %v1302 = vrot.slane %v1300, 5
      %v1303 = vsel %vm633, %v1298, %v1302
      %v1305 = vshrl.u32 %v1252, 16
      %v1307 = vrot.slane %v1305, 4
      %v1308 = vshll.u32 %v1252, 16
      %v1310 = vrot.slane %v1308, 5
      %v1311 = vor.u32 %v1307, %v1310
      %v1312 = vrot.slane %v1311, 4
      %v1314 = vshll.u32 %v1253, 16
      %v1316 = vrot.slane %v1314, 5
      %v1317 = vsel %vm633, %v1312, %v1316
      %v1319 = vshrl.u32 %v1254, 16
      %v1321 = vrot.slane %v1319, 4
      %v1322 = vshll.u32 %v1254, 16
      %v1324 = vrot.slane %v1322, 5
      %v1325 = vor.u32 %v1321, %v1324
      %v1326 = vrot.slane %v1325, 4
      %v1328 = vshll.u32 %v1255, 16
      %v1330 = vrot.slane %v1328, 5
      %v1331 = vsel %vm633, %v1326, %v1330
      %v1333 = vshrl.u32 %v1256, 16
      %v1335 = vrot.slane %v1333, 4
      %v1336 = vshll.u32 %v1256, 16
      %v1338 = vrot.slane %v1336, 5
      %v1339 = vor.u32 %v1335, %v1338
      %v1340 = vrot.slane %v1339, 4
      %v1342 = vshll.u32 %v1257, 16
      %v1344 = vrot.slane %v1342, 5
      %v1345 = vsel %vm633, %v1340, %v1344
      %v1347 = vshrl.u32 %v1258, 16
      %v1349 = vrot.slane %v1347, 4
      %v1350 = vshll.u32 %v1258, 16
      %v1352 = vrot.slane %v1350, 5
      %v1353 = vor.u32 %v1349, %v1352
      %v1354 = vrot.slane %v1353, 4
      %v1356 = vshll.u32 %v1259, 16
      %v1358 = vrot.slane %v1356, 5
      %v1359 = vsel %vm633, %v1354, %v1358
      %v1361 = vshrl.u32 %v1260, 16
      %v1363 = vrot.slane %v1361, 4
      %v1364 = vshll.u32 %v1260, 16
      %v1366 = vrot.slane %v1364, 5
      %v1367 = vor.u32 %v1363, %v1366
      %v1368 = vrot.slane %v1367, 4
      %v1370 = vshll.u32 %v1261, 16
      %v1372 = vrot.slane %v1370, 5
      %v1373 = vsel %vm633, %v1368, %v1372
      %s1374 = scalar_lea.vmem %s1, 320
      %v1375 = vld [vmem:[%s1374] sm:$0xf]
      %v1376 = vld [vmem:[%s1374 + $0x4] sm:$0xf]
      %v1377 = vld [vmem:[%s1374 + $0x8] sm:$0xf]
      %v1378 = vld [vmem:[%s1374 + $0xc] sm:$0xf]
      %v1379 = vld [vmem:[%s1374 + $0x10] sm:$0xf]
      %v1380 = vld [vmem:[%s1374 + $0x14] sm:$0xf]
      %v1381 = vld [vmem:[%s1374 + $0x18] sm:$0xf]
      %v1382 = vld [vmem:[%s1374 + $0x1c] sm:$0xf]
      %v1383 = vld [vmem:[%s1374 + $0x20] sm:$0xf]
      %v1384 = vld [vmem:[%s1374 + $0x24] sm:$0xf]
      %v1385 = vld [vmem:[%s1374 + $0x28] sm:$0xf]
      %v1386 = vld [vmem:[%s1374 + $0x2c] sm:$0xf]
      %v1387 = vld [vmem:[%s1374 + $0x30] sm:$0xf]
      %v1388 = vld [vmem:[%s1374 + $0x34] sm:$0xf]
      %v1389 = vld [vmem:[%s1374 + $0x38] sm:$0xf]
      %v1390 = vld [vmem:[%s1374 + $0x3c] sm:$0xf]
      %v1391 = vunpack.c.l.b16 %v1275
      %v1392 = vunpack.c.l.b16 %v1289
      %v1393 = vunpack.c.l.b16 %v1303
      %v1394 = vunpack.c.l.b16 %v1317
      %v1395 = vunpack.c.l.b16 %v1331
      %v1396 = vunpack.c.l.b16 %v1345
      %v1397 = vunpack.c.l.b16 %v1359
      %v1398 = vunpack.c.l.b16 %v1373
      %v1399 = vpack.c.b16 %v1392, %v1391
      %v1400 = vpack.c.b16 %v1394, %v1393
      %v1401 = vpack.c.b16 %v1396, %v1395
      %v1402 = vpack.c.b16 %v1398, %v1397
      %v1423 = vunpack.c.l.b16 %v1375
      %v1424 = vunpack.c.l.b16 %v1376
      %v1425 = vunpack.c.l.b16 %v1377
      %v1426 = vunpack.c.l.b16 %v1378
      %v1427 = vunpack.c.l.b16 %v1379
      %v1428 = vunpack.c.l.b16 %v1380
      %v1429 = vunpack.c.l.b16 %v1381
      %v1430 = vunpack.c.l.b16 %v1382
      %v1431 = vunpack.c.l.b16 %v1383
      %v1432 = vunpack.c.l.b16 %v1384
      %v1433 = vunpack.c.l.b16 %v1385
      %v1434 = vunpack.c.l.b16 %v1386
      %v1435 = vunpack.c.l.b16 %v1387
      %v1436 = vunpack.c.l.b16 %v1388
      %v1437 = vunpack.c.l.b16 %v1389
      %v1438 = vunpack.c.l.b16 %v1390
      %v1439 = vpack.c.b16 %v1424, %v1423
      %v1440 = vpack.c.b16 %v1426, %v1425
      %v1441 = vpack.c.b16 %v1428, %v1427
      %v1442 = vpack.c.b16 %v1430, %v1429
      %v1443 = vpack.c.b16 %v1432, %v1431
      %v1444 = vpack.c.b16 %v1434, %v1433
      %v1445 = vpack.c.b16 %v1436, %v1435
      %v1446 = vpack.c.b16 %v1438, %v1437
      %1455 = vmatprep.subr.bf16.mxu0 0
      %1456 = vmatpush1.bf16.msra.mxu0 %v1439
      %1457 = vmatprep.subr.bf16.mxu0 0
      %1458 = vmatpush1.bf16.msra.mxu0 %v1440
      %1459 = vmatprep.subr.bf16.mxu0 0
      %1460 = vmatpush1.bf16.msra.mxu0 %v1441
      %1461 = vmatprep.subr.bf16.mxu0 0
      %1462 = vmatpush1.bf16.msra.mxu0 %v1442
      %1463 = vmatprep.subr.bf16.mxu0 0
      %1464 = vmatpush1.bf16.msra.mxu0 %v1443
      %1465 = vmatprep.subr.bf16.mxu0 0
      %1466 = vmatpush1.bf16.msra.mxu0 %v1444
      %1467 = vmatprep.subr.bf16.mxu0 0
      %1468 = vmatpush1.bf16.msra.mxu0 %v1445
      %1469 = vmatprep.subr.bf16.mxu0 0
      %1470 = vmatpush1.bf16.msra.mxu0 %v1446
      %1471 = vmatprep.subr.bf16.mxu0 0
      %1472 = vmatpush1.bf16.msra.mxu0 0
      %1473 = vmatprep.subr.bf16.mxu0 0
      %1474 = vmatpush1.bf16.msra.mxu0 0
      %1475 = vmatprep.subr.bf16.mxu0 0
      %1476 = vmatpush1.bf16.msra.mxu0 0
      %1477 = vmatprep.subr.bf16.mxu0 0
      %1478 = vmatpush1.bf16.msra.mxu0 0
      %1479 = vmatprep.subr.bf16.mxu0 0
      %1480 = vmatpush1.bf16.msra.mxu0 0
      %1481 = vmatprep.subr.bf16.mxu0 0
      %1482 = vmatpush1.bf16.msra.mxu0 0
      %1483 = vmatprep.subr.bf16.mxu0 0
      %1484 = vmatpush1.bf16.msra.mxu0 0
      %1485 = vmatprep.subr.bf16.mxu0 0
      %1486 = vmatpush1.bf16.msra.mxu0 0
      %1487 = vmatprep.mubr.bf16.mxu0 0
      %1488 = vmatmul.mubr.bf16.gmra.mrb[0].mxu0 %v1399
      %v1489 = vpop.f32.mrb[0].mxu0
      %v1490 = vadd.f32 0.0, %v1489
      %v1491 = vpop.f32.mrb[0].mxu0
      %v1492 = vpop.f32.mrb[0].mxu0
      %v1493 = vadd.f32 0.0, %v1492
      %v1494 = vpop.f32.mrb[0].mxu0
      %1495 = vmatprep.mubr.bf16.mxu0 0
      %1496 = vmatmul.mubr.bf16.gmra.mrb[0].mxu0 %v1400
      %v1497 = vpop.f32.mrb[0].mxu0
      %v1498 = vadd.f32 0.0, %v1497
      %v1499 = vpop.f32.mrb[0].mxu0
      %v1500 = vpop.f32.mrb[0].mxu0
      %v1501 = vadd.f32 0.0, %v1500
      %v1502 = vpop.f32.mrb[0].mxu0
      %1503 = vmatprep.mubr.bf16.mxu0 0
      %1504 = vmatmul.mubr.bf16.gmra.mrb[0].mxu0 %v1401
      %v1505 = vpop.f32.mrb[0].mxu0
      %v1506 = vadd.f32 0.0, %v1505
      %v1507 = vpop.f32.mrb[0].mxu0
      %v1508 = vpop.f32.mrb[0].mxu0
      %v1509 = vadd.f32 0.0, %v1508
      %v1510 = vpop.f32.mrb[0].mxu0
      %1511 = vmatprep.mubr.bf16.mxu0 0
      %1512 = vmatmul.mubr.bf16.gmra.mrb[0].mxu0 %v1402
      %v1513 = vpop.f32.mrb[0].mxu0
      %v1514 = vadd.f32 0.0, %v1513
      %v1515 = vpop.f32.mrb[0].mxu0
      %v1516 = vpop.f32.mrb[0].mxu0
      %v1517 = vadd.f32 0.0, %v1516
      %v1518 = vpop.f32.mrb[0].mxu0
      %1519 = vdwg.mxu0
      %v1520 = vadd.f32 %v1238, %v1490
      %v1521 = vadd.f32 %v1239, %v1493
      %v1522 = vadd.f32 %v1240, %v1498
      %v1523 = vadd.f32 %v1241, %v1501
      %v1524 = vadd.f32 %v1242, %v1506
      %v1525 = vadd.f32 %v1243, %v1509
      %v1526 = vadd.f32 %v1244, %v1514
      %v1527 = vadd.f32 %v1245, %v1517
      %s1528 = sadd.s32 0, 1
      %s1529 = smul.u32 %s1528, 2
      %s1530 = smul.addr %s1529, 4
      %s1531 = scalar_lea.vmem %s266, %s1530
      %v1532 = vld [vmem:[%s1531] sm:$0xf]
      %v1533 = vld [vmem:[%s1531 + $0x8] sm:$0xf]
      %v1534 = vld [vmem:[%s1531 + $0x10] sm:$0xf]
      %v1535 = vld [vmem:[%s1531 + $0x18] sm:$0xf]
      %v1536 = vld [vmem:[%s1531 + $0x20] sm:$0xf]
      %v1537 = vld [vmem:[%s1531 + $0x28] sm:$0xf]
      %v1538 = vld [vmem:[%s1531 + $0x30] sm:$0xf]
      %v1539 = vld [vmem:[%s1531 + $0x38] sm:$0xf]
      %s1540 = scalar_lea.vmem %s1, 384
      %v1541 = vld [vmem:[%s1540] sm:$0xf]
      %v1542 = vld [vmem:[%s1540 + $0x4] sm:$0xf]
      %v1543 = vld [vmem:[%s1540 + $0x8] sm:$0xf]
      %v1544 = vld [vmem:[%s1540 + $0xc] sm:$0xf]
      %v1545 = vld [vmem:[%s1540 + $0x10] sm:$0xf]
      %v1546 = vld [vmem:[%s1540 + $0x14] sm:$0xf]
      %v1547 = vld [vmem:[%s1540 + $0x18] sm:$0xf]
      %v1548 = vld [vmem:[%s1540 + $0x1c] sm:$0xf]
      %v1549 = vld [vmem:[%s1540 + $0x20] sm:$0xf]
      %v1550 = vld [vmem:[%s1540 + $0x24] sm:$0xf]
      %v1551 = vld [vmem:[%s1540 + $0x28] sm:$0xf]
      %v1552 = vld [vmem:[%s1540 + $0x2c] sm:$0xf]
      %v1553 = vld [vmem:[%s1540 + $0x30] sm:$0xf]
      %v1554 = vld [vmem:[%s1540 + $0x34] sm:$0xf]
      %v1555 = vld [vmem:[%s1540 + $0x38] sm:$0xf]
      %v1556 = vld [vmem:[%s1540 + $0x3c] sm:$0xf]
      %v1565 = vunpack.c.l.b16 %v1532
      %v1566 = vunpack.c.l.b16 %v1533
      %v1567 = vunpack.c.l.b16 %v1534
      %v1568 = vunpack.c.l.b16 %v1535
      %v1569 = vunpack.c.l.b16 %v1536
      %v1570 = vunpack.c.l.b16 %v1537
      %v1571 = vunpack.c.l.b16 %v1538
      %v1572 = vunpack.c.l.b16 %v1539
      %v1573 = vpack.c.b16 %v1566, %v1565
      %v1574 = vpack.c.b16 %v1568, %v1567
      %v1575 = vpack.c.b16 %v1570, %v1569
      %v1576 = vpack.c.b16 %v1572, %v1571
      %v1597 = vunpack.c.l.b16 %v1541
      %v1598 = vunpack.c.l.b16 %v1542
      %v1599 = vunpack.c.l.b16 %v1543
      %v1600 = vunpack.c.l.b16 %v1544
      %v1601 = vunpack.c.l.b16 %v1545
      %v1602 = vunpack.c.l.b16 %v1546
      %v1603 = vunpack.c.l.b16 %v1547
      %v1604 = vunpack.c.l.b16 %v1548
      %v1605 = vunpack.c.l.b16 %v1549
      %v1606 = vunpack.c.l.b16 %v1550
      %v1607 = vunpack.c.l.b16 %v1551
      %v1608 = vunpack.c.l.b16 %v1552
      %v1609 = vunpack.c.l.b16 %v1553
      %v1610 = vunpack.c.l.b16 %v1554
      %v1611 = vunpack.c.l.b16 %v1555
      %v1612 = vunpack.c.l.b16 %v1556
      %v1613 = vpack.c.b16 %v1598, %v1597
      %v1614 = vpack.c.b16 %v1600, %v1599
      %v1615 = vpack.c.b16 %v1602, %v1601
      %v1616 = vpack.c.b16 %v1604, %v1603
      %v1617 = vpack.c.b16 %v1606, %v1605
      %v1618 = vpack.c.b16 %v1608, %v1607
      %v1619 = vpack.c.b16 %v1610, %v1609
      %v1620 = vpack.c.b16 %v1612, %v1611
      %1629 = vmatprep.subr.bf16.mxu0 0
      %1630 = vmatpush1.bf16.msra.mxu0 %v1613
      %1631 = vmatprep.subr.bf16.mxu0 0
      %1632 = vmatpush1.bf16.msra.mxu0 %v1614
      %1633 = vmatprep.subr.bf16.mxu0 0
      %1634 = vmatpush1.bf16.msra.mxu0 %v1615
      %1635 = vmatprep.subr.bf16.mxu0 0
      %1636 = vmatpush1.bf16.msra.mxu0 %v1616
      %1637 = vmatprep.subr.bf16.mxu0 0
      %1638 = vmatpush1.bf16.msra.mxu0 %v1617
      %1639 = vmatprep.subr.bf16.mxu0 0
      %1640 = vmatpush1.bf16.msra.mxu0 %v1618
      %1641 = vmatprep.subr.bf16.mxu0 0
      %1642 = vmatpush1.bf16.msra.mxu0 %v1619
      %1643 = vmatprep.subr.bf16.mxu0 0
      %1644 = vmatpush1.bf16.msra.mxu0 %v1620
      %1645 = vmatprep.subr.bf16.mxu0 0
      %1646 = vmatpush1.bf16.msra.mxu0 0
      %1647 = vmatprep.subr.bf16.mxu0 0
      %1648 = vmatpush1.bf16.msra.mxu0 0
      %1649 = vmatprep.subr.bf16.mxu0 0
      %1650 = vmatpush1.bf16.msra.mxu0 0
      %1651 = vmatprep.subr.bf16.mxu0 0
      %1652 = vmatpush1.bf16.msra.mxu0 0
      %1653 = vmatprep.subr.bf16.mxu0 0
      %1654 = vmatpush1.bf16.msra.mxu0 0
      %1655 = vmatprep.subr.bf16.mxu0 0
      %1656 = vmatpush1.bf16.msra.mxu0 0
      %1657 = vmatprep.subr.bf16.mxu0 0
      %1658 = vmatpush1.bf16.msra.mxu0 0
      %1659 = vmatprep.subr.bf16.mxu0 0
      %1660 = vmatpush1.bf16.msra.mxu0 0
      %1661 = vmatprep.mubr.bf16.mxu0 0
      %1662 = vmatmul.mubr.bf16.gmra.mrb[0].mxu0 %v1573
      %v1663 = vpop.f32.mrb[0].mxu0
      %v1664 = vadd.f32 0.0, %v1663
      %v1665 = vpop.f32.mrb[0].mxu0
      %v1666 = vpop.f32.mrb[0].mxu0
      %v1667 = vadd.f32 0.0, %v1666
      %v1668 = vpop.f32.mrb[0].mxu0
      %1669 = vmatprep.mubr.bf16.mxu0 0
      %1670 = vmatmul.mubr.bf16.gmra.mrb[0].mxu0 %v1574
      %v1671 = vpop.f32.mrb[0].mxu0
      %v1672 = vadd.f32 0.0, %v1671
      %v1673 = vpop.f32.mrb[0].mxu0
      %v1674 = vpop.f32.mrb[0].mxu0
      %v1675 = vadd.f32 0.0, %v1674
      %v1676 = vpop.f32.mrb[0].mxu0
      %1677 = vmatprep.mubr.bf16.mxu0 0
      %1678 = vmatmul.mubr.bf16.gmra.mrb[0].mxu0 %v1575
      %v1679 = vpop.f32.mrb[0].mxu0
      %v1680 = vadd.f32 0.0, %v1679
      %v1681 = vpop.f32.mrb[0].mxu0
      %v1682 = vpop.f32.mrb[0].mxu0
      %v1683 = vadd.f32 0.0, %v1682
      %v1684 = vpop.f32.mrb[0].mxu0
      %1685 = vmatprep.mubr.bf16.mxu0 0
      %1686 = vmatmul.mubr.bf16.gmra.mrb[0].mxu0 %v1576
      %v1687 = vpop.f32.mrb[0].mxu0
      %v1688 = vadd.f32 0.0, %v1687
      %v1689 = vpop.f32.mrb[0].mxu0
      %v1690 = vpop.f32.mrb[0].mxu0
      %v1691 = vadd.f32 0.0, %v1690
      %v1692 = vpop.f32.mrb[0].mxu0
      %1693 = vdwg.mxu0
      %v1694 = vadd.f32 %v1520, %v1664
      %v1695 = vadd.f32 %v1521, %v1667
      %v1696 = vadd.f32 %v1522, %v1672
      %v1697 = vadd.f32 %v1523, %v1675
      %v1698 = vadd.f32 %v1524, %v1680
      %v1699 = vadd.f32 %v1525, %v1683
      %v1700 = vadd.f32 %v1526, %v1688
      %v1701 = vadd.f32 %v1527, %v1691
      %s1702 = sadd.s32 %s1529, 18
      %s1703 = smul.addr %s1702, 4
      %s1704 = scalar_lea.vmem %s266, %s1703
      %v1705 = vld [vmem:[%s1704] sm:$0xf]
      %v1706 = vld [vmem:[%s1704 + $0x8] sm:$0xf]
      %v1707 = vld [vmem:[%s1704 + $0x10] sm:$0xf]
      %v1708 = vld [vmem:[%s1704 + $0x18] sm:$0xf]
      %v1709 = vld [vmem:[%s1704 + $0x20] sm:$0xf]
      %v1710 = vld [vmem:[%s1704 + $0x28] sm:$0xf]
      %v1711 = vld [vmem:[%s1704 + $0x30] sm:$0xf]
      %v1712 = vld [vmem:[%s1704 + $0x38] sm:$0xf]
      %s1713 = scalar_lea.vmem %s1, 448
      %v1714 = vld [vmem:[%s1713] sm:$0xf]
      %v1715 = vld [vmem:[%s1713 + $0x4] sm:$0xf]
      %v1716 = vld [vmem:[%s1713 + $0x8] sm:$0xf]
      %v1717 = vld [vmem:[%s1713 + $0xc] sm:$0xf]
      %v1718 = vld [vmem:[%s1713 + $0x10] sm:$0xf]
      %v1719 = vld [vmem:[%s1713 + $0x14] sm:$0xf]
      %v1720 = vld [vmem:[%s1713 + $0x18] sm:$0xf]
      %v1721 = vld [vmem:[%s1713 + $0x1c] sm:$0xf]
      %v1722 = vld [vmem:[%s1713 + $0x20] sm:$0xf]
      %v1723 = vld [vmem:[%s1713 + $0x24] sm:$0xf]
      %v1724 = vld [vmem:[%s1713 + $0x28] sm:$0xf]
      %v1725 = vld [vmem:[%s1713 + $0x2c] sm:$0xf]
      %v1726 = vld [vmem:[%s1713 + $0x30] sm:$0xf]
      %v1727 = vld [vmem:[%s1713 + $0x34] sm:$0xf]
      %v1728 = vld [vmem:[%s1713 + $0x38] sm:$0xf]
      %v1729 = vld [vmem:[%s1713 + $0x3c] sm:$0xf]
      %v1738 = vunpack.c.l.b16 %v1705
      %v1739 = vunpack.c.l.b16 %v1706
      %v1740 = vunpack.c.l.b16 %v1707
      %v1741 = vunpack.c.l.b16 %v1708
      %v1742 = vunpack.c.l.b16 %v1709
      %v1743 = vunpack.c.l.b16 %v1710
      %v1744 = vunpack.c.l.b16 %v1711
      %v1745 = vunpack.c.l.b16 %v1712
      %v1746 = vpack.c.b16 %v1739, %v1738
      %v1747 = vpack.c.b16 %v1741, %v1740
      %v1748 = vpack.c.b16 %v1743, %v1742
      %v1749 = vpack.c.b16 %v1745, %v1744
      %v1770 = vunpack.c.l.b16 %v1714
      %v1771 = vunpack.c.l.b16 %v1715
      %v1772 = vunpack.c.l.b16 %v1716
      %v1773 = vunpack.c.l.b16 %v1717
      %v1774 = vunpack.c.l.b16 %v1718
      %v1775 = vunpack.c.l.b16 %v1719
      %v1776 = vunpack.c.l.b16 %v1720
      %v1777 = vunpack.c.l.b16 %v1721
      %v1778 = vunpack.c.l.b16 %v1722
      %v1779 = vunpack.c.l.b16 %v1723
      %v1780 = vunpack.c.l.b16 %v1724
      %v1781 = vunpack.c.l.b16 %v1725
      %v1782 = vunpack.c.l.b16 %v1726
      %v1783 = vunpack.c.l.b16 %v1727
      %v1784 = vunpack.c.l.b16 %v1728
      %v1785 = vunpack.c.l.b16 %v1729
      %v1786 = vpack.c.b16 %v1771, %v1770
      %v1787 = vpack.c.b16 %v1773, %v1772
      %v1788 = vpack.c.b16 %v1775, %v1774
      %v1789 = vpack.c.b16 %v1777, %v1776
      %v1790 = vpack.c.b16 %v1779, %v1778
      %v1791 = vpack.c.b16 %v1781, %v1780
      %v1792 = vpack.c.b16 %v1783, %v1782
      %v1793 = vpack.c.b16 %v1785, %v1784
      %1802 = vmatprep.subr.bf16.mxu0 0
      %1803 = vmatpush1.bf16.msra.mxu0 %v1786
      %1804 = vmatprep.subr.bf16.mxu0 0
      %1805 = vmatpush1.bf16.msra.mxu0 %v1787
      %1806 = vmatprep.subr.bf16.mxu0 0
      %1807 = vmatpush1.bf16.msra.mxu0 %v1788
      %1808 = vmatprep.subr.bf16.mxu0 0
      %1809 = vmatpush1.bf16.msra.mxu0 %v1789
      %1810 = vmatprep.subr.bf16.mxu0 0
      %1811 = vmatpush1.bf16.msra.mxu0 %v1790
      %1812 = vmatprep.subr.bf16.mxu0 0
      %1813 = vmatpush1.bf16.msra.mxu0 %v1791
      %1814 = vmatprep.subr.bf16.mxu0 0
      %1815 = vmatpush1.bf16.msra.mxu0 %v1792
      %1816 = vmatprep.subr.bf16.mxu0 0
      %1817 = vmatpush1.bf16.msra.mxu0 %v1793
      %1818 = vmatprep.subr.bf16.mxu0 0
      %1819 = vmatpush1.bf16.msra.mxu0 0
      %1820 = vmatprep.subr.bf16.mxu0 0
      %1821 = vmatpush1.bf16.msra.mxu0 0
      %1822 = vmatprep.subr.bf16.mxu0 0
      %1823 = vmatpush1.bf16.msra.mxu0 0
      %1824 = vmatprep.subr.bf16.mxu0 0
      %1825 = vmatpush1.bf16.msra.mxu0 0
      %1826 = vmatprep.subr.bf16.mxu0 0
      %1827 = vmatpush1.bf16.msra.mxu0 0
      %1828 = vmatprep.subr.bf16.mxu0 0
      %1829 = vmatpush1.bf16.msra.mxu0 0
      %1830 = vmatprep.subr.bf16.mxu0 0
      %1831 = vmatpush1.bf16.msra.mxu0 0
      %1832 = vmatprep.subr.bf16.mxu0 0
      %1833 = vmatpush1.bf16.msra.mxu0 0
      %1834 = vmatprep.mubr.bf16.mxu0 0
      %1835 = vmatmul.mubr.bf16.gmra.mrb[0].mxu0 %v1746
      %v1836 = vpop.f32.mrb[0].mxu0
      %v1837 = vadd.f32 0.0, %v1836
      %v1838 = vpop.f32.mrb[0].mxu0
      %v1839 = vpop.f32.mrb[0].mxu0
      %v1840 = vadd.f32 0.0, %v1839
      %v1841 = vpop.f32.mrb[0].mxu0
      %1842 = vmatprep.mubr.bf16.mxu0 0
      %1843 = vmatmul.mubr.bf16.gmra.mrb[0].mxu0 %v1747
      %v1844 = vpop.f32.mrb[0].mxu0
      %v1845 = vadd.f32 0.0, %v1844
      %v1846 = vpop.f32.mrb[0].mxu0
      %v1847 = vpop.f32.mrb[0].mxu0
      %v1848 = vadd.f32 0.0, %v1847
      %v1849 = vpop.f32.mrb[0].mxu0
      %1850 = vmatprep.mubr.bf16.mxu0 0
      %1851 = vmatmul.mubr.bf16.gmra.mrb[0].mxu0 %v1748
      %v1852 = vpop.f32.mrb[0].mxu0
      %v1853 = vadd.f32 0.0, %v1852
      %v1854 = vpop.f32.mrb[0].mxu0
      %v1855 = vpop.f32.mrb[0].mxu0
      %v1856 = vadd.f32 0.0, %v1855
      %v1857 = vpop.f32.mrb[0].mxu0
      %1858 = vmatprep.mubr.bf16.mxu0 0
      %1859 = vmatmul.mubr.bf16.gmra.mrb[0].mxu0 %v1749
      %v1860 = vpop.f32.mrb[0].mxu0
      %v1861 = vadd.f32 0.0, %v1860
      %v1862 = vpop.f32.mrb[0].mxu0
      %v1863 = vpop.f32.mrb[0].mxu0
      %v1864 = vadd.f32 0.0, %v1863
      %v1865 = vpop.f32.mrb[0].mxu0
      %1866 = vdwg.mxu0
      %v1867 = vadd.f32 %v1694, %v1837
      %v1868 = vadd.f32 %v1695, %v1840
      %v1869 = vadd.f32 %v1696, %v1845
      %v1870 = vadd.f32 %v1697, %v1848
      %v1871 = vadd.f32 %v1698, %v1853
      %v1872 = vadd.f32 %v1699, %v1856
      %v1873 = vadd.f32 %v1700, %v1861
      %v1874 = vadd.f32 %v1701, %v1864
      %v1875 = vld [vmem:[%s1531] sm:$0xf]
      %v1876 = vld [vmem:[%s1531 + $0x4] sm:$0x1]
      %v1877 = vld [vmem:[%s1531 + $0x8] sm:$0xf]
      %v1878 = vld [vmem:[%s1531 + $0xc] sm:$0x1]
      %v1879 = vld [vmem:[%s1531 + $0x10] sm:$0xf]
      %v1880 = vld [vmem:[%s1531 + $0x14] sm:$0x1]
      %v1881 = vld [vmem:[%s1531 + $0x18] sm:$0xf]
      %v1882 = vld [vmem:[%s1531 + $0x1c] sm:$0x1]
      %v1883 = vld [vmem:[%s1531 + $0x20] sm:$0xf]
      %v1884 = vld [vmem:[%s1531 + $0x24] sm:$0x1]
      %v1885 = vld [vmem:[%s1531 + $0x28] sm:$0xf]
      %v1886 = vld [vmem:[%s1531 + $0x2c] sm:$0x1]
      %v1887 = vld [vmem:[%s1531 + $0x30] sm:$0xf]
      %v1888 = vld [vmem:[%s1531 + $0x34] sm:$0x1]
      %v1889 = vld [vmem:[%s1531 + $0x38] sm:$0xf]
      %v1890 = vld [vmem:[%s1531 + $0x3c] sm:$0x1]
      %v1892 = vshrl.u32 %v1875, 16
      %v1894 = vrot.slane %v1892, 4
      %v1895 = vshll.u32 %v1875, 16
      %v1897 = vrot.slane %v1895, 5
      %v1898 = vor.u32 %v1894, %v1897
      %v1899 = vrot.slane %v1898, 4
      %v1901 = vshll.u32 %v1876, 16
      %v1903 = vrot.slane %v1901, 5
      %v1904 = vsel %vm633, %v1899, %v1903
      %v1906 = vshrl.u32 %v1877, 16
      %v1908 = vrot.slane %v1906, 4
      %v1909 = vshll.u32 %v1877, 16
      %v1911 = vrot.slane %v1909, 5
      %v1912 = vor.u32 %v1908, %v1911
      %v1913 = vrot.slane %v1912, 4
      %v1915 = vshll.u32 %v1878, 16
      %v1917 = vrot.slane %v1915, 5
      %v1918 = vsel %vm633, %v1913, %v1917
      %v1920 = vshrl.u32 %v1879, 16
      %v1922 = vrot.slane %v1920, 4
      %v1923 = vshll.u32 %v1879, 16
      %v1925 = vrot.slane %v1923, 5
      %v1926 = vor.u32 %v1922, %v1925
      %v1927 = vrot.slane %v1926, 4
      %v1929 = vshll.u32 %v1880, 16
      %v1931 = vrot.slane %v1929, 5
      %v1932 = vsel %vm633, %v1927, %v1931
      %v1934 = vshrl.u32 %v1881, 16
      %v1936 = vrot.slane %v1934, 4
      %v1937 = vshll.u32 %v1881, 16
      %v1939 = vrot.slane %v1937, 5
      %v1940 = vor.u32 %v1936, %v1939
      %v1941 = vrot.slane %v1940, 4
      %v1943 = vshll.u32 %v1882, 16
      %v1945 = vrot.slane %v1943, 5
      %v1946 = vsel %vm633, %v1941, %v1945
      %v1948 = vshrl.u32 %v1883, 16
      %v1950 = vrot.slane %v1948, 4
      %v1951 = vshll.u32 %v1883, 16
      %v1953 = vrot.slane %v1951, 5
      %v1954 = vor.u32 %v1950, %v1953
      %v1955 = vrot.slane %v1954, 4
      %v1957 = vshll.u32 %v1884, 16
      %v1959 = vrot.slane %v1957, 5
      %v1960 = vsel %vm633, %v1955, %v1959
      %v1962 = vshrl.u32 %v1885, 16
      %v1964 = vrot.slane %v1962, 4
      %v1965 = vshll.u32 %v1885, 16
      %v1967 = vrot.slane %v1965, 5
      %v1968 = vor.u32 %v1964, %v1967
      %v1969 = vrot.slane %v1968, 4
      %v1971 = vshll.u32 %v1886, 16
      %v1973 = vrot.slane %v1971, 5
      %v1974 = vsel %vm633, %v1969, %v1973
      %v1976 = vshrl.u32 %v1887, 16
      %v1978 = vrot.slane %v1976, 4
      %v1979 = vshll.u32 %v1887, 16
      %v1981 = vrot.slane %v1979, 5
      %v1982 = vor.u32 %v1978, %v1981
      %v1983 = vrot.slane %v1982, 4
      %v1985 = vshll.u32 %v1888, 16
      %v1987 = vrot.slane %v1985, 5
      %v1988 = vsel %vm633, %v1983, %v1987
      %v1990 = vshrl.u32 %v1889, 16
      %v1992 = vrot.slane %v1990, 4
      %v1993 = vshll.u32 %v1889, 16
      %v1995 = vrot.slane %v1993, 5
      %v1996 = vor.u32 %v1992, %v1995
      %v1997 = vrot.slane %v1996, 4
      %v1999 = vshll.u32 %v1890, 16
      %v2001 = vrot.slane %v1999, 5
      %v2002 = vsel %vm633, %v1997, %v2001
      %s2003 = scalar_lea.vmem %s1, 512
      %v2004 = vld [vmem:[%s2003] sm:$0xf]
      %v2005 = vld [vmem:[%s2003 + $0x4] sm:$0xf]
      %v2006 = vld [vmem:[%s2003 + $0x8] sm:$0xf]
      %v2007 = vld [vmem:[%s2003 + $0xc] sm:$0xf]
      %v2008 = vld [vmem:[%s2003 + $0x10] sm:$0xf]
      %v2009 = vld [vmem:[%s2003 + $0x14] sm:$0xf]
      %v2010 = vld [vmem:[%s2003 + $0x18] sm:$0xf]
      %v2011 = vld [vmem:[%s2003 + $0x1c] sm:$0xf]
      %v2012 = vld [vmem:[%s2003 + $0x20] sm:$0xf]
      %v2013 = vld [vmem:[%s2003 + $0x24] sm:$0xf]
      %v2014 = vld [vmem:[%s2003 + $0x28] sm:$0xf]
      %v2015 = vld [vmem:[%s2003 + $0x2c] sm:$0xf]
      %v2016 = vld [vmem:[%s2003 + $0x30] sm:$0xf]
      %v2017 = vld [vmem:[%s2003 + $0x34] sm:$0xf]
      %v2018 = vld [vmem:[%s2003 + $0x38] sm:$0xf]
      %v2019 = vld [vmem:[%s2003 + $0x3c] sm:$0xf]
      %v2020 = vunpack.c.l.b16 %v1904
      %v2021 = vunpack.c.l.b16 %v1918
      %v2022 = vunpack.c.l.b16 %v1932
      %v2023 = vunpack.c.l.b16 %v1946
      %v2024 = vunpack.c.l.b16 %v1960
      %v2025 = vunpack.c.l.b16 %v1974
      %v2026 = vunpack.c.l.b16 %v1988
      %v2027 = vunpack.c.l.b16 %v2002
      %v2028 = vpack.c.b16 %v2021, %v2020
      %v2029 = vpack.c.b16 %v2023, %v2022
      %v2030 = vpack.c.b16 %v2025, %v2024
      %v2031 = vpack.c.b16 %v2027, %v2026
      %v2052 = vunpack.c.l.b16 %v2004
      %v2053 = vunpack.c.l.b16 %v2005
      %v2054 = vunpack.c.l.b16 %v2006
      %v2055 = vunpack.c.l.b16 %v2007
      %v2056 = vunpack.c.l.b16 %v2008
      %v2057 = vunpack.c.l.b16 %v2009
      %v2058 = vunpack.c.l.b16 %v2010
      %v2059 = vunpack.c.l.b16 %v2011
      %v2060 = vunpack.c.l.b16 %v2012
      %v2061 = vunpack.c.l.b16 %v2013
      %v2062 = vunpack.c.l.b16 %v2014
      %v2063 = vunpack.c.l.b16 %v2015
      %v2064 = vunpack.c.l.b16 %v2016
      %v2065 = vunpack.c.l.b16 %v2017
      %v2066 = vunpack.c.l.b16 %v2018
      %v2067 = vunpack.c.l.b16 %v2019
      %v2068 = vpack.c.b16 %v2053, %v2052
      %v2069 = vpack.c.b16 %v2055, %v2054
      %v2070 = vpack.c.b16 %v2057, %v2056
      %v2071 = vpack.c.b16 %v2059, %v2058
      %v2072 = vpack.c.b16 %v2061, %v2060
      %v2073 = vpack.c.b16 %v2063, %v2062
      %v2074 = vpack.c.b16 %v2065, %v2064
      %v2075 = vpack.c.b16 %v2067, %v2066
      %2084 = vmatprep.subr.bf16.mxu0 0
      %2085 = vmatpush1.bf16.msra.mxu0 %v2068
      %2086 = vmatprep.subr.bf16.mxu0 0
      %2087 = vmatpush1.bf16.msra.mxu0 %v2069
      %2088 = vmatprep.subr.bf16.mxu0 0
      %2089 = vmatpush1.bf16.msra.mxu0 %v2070
      %2090 = vmatprep.subr.bf16.mxu0 0
      %2091 = vmatpush1.bf16.msra.mxu0 %v2071
      %2092 = vmatprep.subr.bf16.mxu0 0
      %2093 = vmatpush1.bf16.msra.mxu0 %v2072
      %2094 = vmatprep.subr.bf16.mxu0 0
      %2095 = vmatpush1.bf16.msra.mxu0 %v2073
      %2096 = vmatprep.subr.bf16.mxu0 0
      %2097 = vmatpush1.bf16.msra.mxu0 %v2074
      %2098 = vmatprep.subr.bf16.mxu0 0
      %2099 = vmatpush1.bf16.msra.mxu0 %v2075
      %2100 = vmatprep.subr.bf16.mxu0 0
      %2101 = vmatpush1.bf16.msra.mxu0 0
      %2102 = vmatprep.subr.bf16.mxu0 0
      %2103 = vmatpush1.bf16.msra.mxu0 0
      %2104 = vmatprep.subr.bf16.mxu0 0
      %2105 = vmatpush1.bf16.msra.mxu0 0
      %2106 = vmatprep.subr.bf16.mxu0 0
      %2107 = vmatpush1.bf16.msra.mxu0 0
      %2108 = vmatprep.subr.bf16.mxu0 0
      %2109 = vmatpush1.bf16.msra.mxu0 0
      %2110 = vmatprep.subr.bf16.mxu0 0
      %2111 = vmatpush1.bf16.msra.mxu0 0
      %2112 = vmatprep.subr.bf16.mxu0 0
      %2113 = vmatpush1.bf16.msra.mxu0 0
      %2114 = vmatprep.subr.bf16.mxu0 0
      %2115 = vmatpush1.bf16.msra.mxu0 0
      %2116 = vmatprep.mubr.bf16.mxu0 0
      %2117 = vmatmul.mubr.bf16.gmra.mrb[0].mxu0 %v2028
      %v2118 = vpop.f32.mrb[0].mxu0
      %v2119 = vadd.f32 0.0, %v2118
      %v2120 = vpop.f32.mrb[0].mxu0
      %v2121 = vpop.f32.mrb[0].mxu0
      %v2122 = vadd.f32 0.0, %v2121
      %v2123 = vpop.f32.mrb[0].mxu0
      %2124 = vmatprep.mubr.bf16.mxu0 0
      %2125 = vmatmul.mubr.bf16.gmra.mrb[0].mxu0 %v2029
      %v2126 = vpop.f32.mrb[0].mxu0
      %v2127 = vadd.f32 0.0, %v2126
      %v2128 = vpop.f32.mrb[0].mxu0
      %v2129 = vpop.f32.mrb[0].mxu0
      %v2130 = vadd.f32 0.0, %v2129
      %v2131 = vpop.f32.mrb[0].mxu0
      %2132 = vmatprep.mubr.bf16.mxu0 0
      %2133 = vmatmul.mubr.bf16.gmra.mrb[0].mxu0 %v2030
      %v2134 = vpop.f32.mrb[0].mxu0
      %v2135 = vadd.f32 0.0, %v2134
      %v2136 = vpop.f32.mrb[0].mxu0
      %v2137 = vpop.f32.mrb[0].mxu0
      %v2138 = vadd.f32 0.0, %v2137
      %v2139 = vpop.f32.mrb[0].mxu0
      %2140 = vmatprep.mubr.bf16.mxu0 0
      %2141 = vmatmul.mubr.bf16.gmra.mrb[0].mxu0 %v2031
      %v2142 = vpop.f32.mrb[0].mxu0
      %v2143 = vadd.f32 0.0, %v2142
      %v2144 = vpop.f32.mrb[0].mxu0
      %v2145 = vpop.f32.mrb[0].mxu0
      %v2146 = vadd.f32 0.0, %v2145
      %v2147 = vpop.f32.mrb[0].mxu0
      %2148 = vdwg.mxu0
      %v2149 = vadd.f32 %v1867, %v2119
      %v2150 = vadd.f32 %v1868, %v2122
      %v2151 = vadd.f32 %v1869, %v2127
      %v2152 = vadd.f32 %v1870, %v2130
      %v2153 = vadd.f32 %v1871, %v2135
      %v2154 = vadd.f32 %v1872, %v2138
      %v2155 = vadd.f32 %v1873, %v2143
      %v2156 = vadd.f32 %v1874, %v2146
      %v2157 = vpack.c.bf16 %v2149, %v2149
      %v2158 = vpack.c.bf16 %v2150, %v2150
      %v2159 = vpack.c.bf16 %v2151, %v2151
      %v2160 = vpack.c.bf16 %v2152, %v2152
      %v2161 = vpack.c.bf16 %v2153, %v2153
      %v2162 = vpack.c.bf16 %v2154, %v2154
      %v2163 = vpack.c.bf16 %v2155, %v2155
      %v2164 = vpack.c.bf16 %v2156, %v2156
      %2165 = vst [vmem:[%s271] sm:$0xf] %v2157
      %2166 = vst [vmem:[%s271 + $0x4] sm:$0xf] %v2158
      %2167 = vst [vmem:[%s271 + $0x8] sm:$0xf] %v2159
      %2168 = vst [vmem:[%s271 + $0xc] sm:$0xf] %v2160
      %2169 = vst [vmem:[%s271 + $0x10] sm:$0xf] %v2161
      %2170 = vst [vmem:[%s271 + $0x14] sm:$0xf] %v2162
      %2171 = vst [vmem:[%s271 + $0x18] sm:$0xf] %v2163
      %2172 = vst [vmem:[%s271 + $0x1c] sm:$0xf] %v2164
      %v2173 = vadd.f32 %v2149, %v2150
      %v2174 = vadd.f32 %v2173, %v2151
      %v2175 = vadd.f32 %v2174, %v2152
      %v2176 = vadd.f32 %v2175, %v2153
      %v2177 = vadd.f32 %v2176, %v2154
      %v2178 = vadd.f32 %v2177, %v2155
      %v2179 = vadd.f32 %v2178, %v2156
      %v2180 = vrot.slane %v2179, 4
      %v2181 = vadd.f32 %v2179, %v2180
      %v2182 = vrot.slane %v2181, 2
      %v2183 = vadd.f32 %v2181, %v2182
      %v2184 = vrot.slane %v2183, 1
      %v2185 = vadd.f32 %v2183, %v2184
      %v2186 = vmul.f32 %v2149, %v2149
      %v2187 = vmul.f32 %v2150, %v2150
      %v2188 = vmul.f32 %v2151, %v2151
      %v2189 = vmul.f32 %v2152, %v2152
      %v2190 = vmul.f32 %v2153, %v2153
      %v2191 = vmul.f32 %v2154, %v2154
      %v2192 = vmul.f32 %v2155, %v2155
      %v2193 = vmul.f32 %v2156, %v2156
      %v2194 = vadd.f32 %v2186, %v2187
      %v2195 = vadd.f32 %v2194, %v2188
      %v2196 = vadd.f32 %v2195, %v2189
      %v2197 = vadd.f32 %v2196, %v2190
      %v2198 = vadd.f32 %v2197, %v2191
      %v2199 = vadd.f32 %v2198, %v2192
      %v2200 = vadd.f32 %v2199, %v2193
      %v2201 = vrot.slane %v2200, 4
      %v2202 = vadd.f32 %v2200, %v2201
      %v2203 = vrot.slane %v2202, 2
      %v2204 = vadd.f32 %v2202, %v2203
      %v2205 = vrot.slane %v2204, 1
      %v2206 = vadd.f32 %v2204, %v2205
      %vm2207 = vcmask 1040384
      %v2208 = vsel %vm2207, %v2185, %v2206
      %v2209 = vld [vmem:[%s1075] sm:$0xf]
      %v2210 = vld [vmem:[%s1075 + $0x8] sm:$0xf]
      %v2211 = vld [vmem:[%s1075 + $0x10] sm:$0xf]
      %v2212 = vld [vmem:[%s1075 + $0x18] sm:$0xf]
      %v2213 = vld [vmem:[%s1075 + $0x20] sm:$0xf]
      %v2214 = vld [vmem:[%s1075 + $0x28] sm:$0xf]
      %v2215 = vld [vmem:[%s1075 + $0x30] sm:$0xf]
      %v2216 = vld [vmem:[%s1075 + $0x38] sm:$0xf]
      %v2217 = vld [vmem:[%s2] sm:$0xf]
      %v2218 = vld [vmem:[%s2 + $0x4] sm:$0xf]
      %v2219 = vld [vmem:[%s2 + $0x8] sm:$0xf]
      %v2220 = vld [vmem:[%s2 + $0xc] sm:$0xf]
      %v2221 = vld [vmem:[%s2 + $0x10] sm:$0xf]
      %v2222 = vld [vmem:[%s2 + $0x14] sm:$0xf]
      %v2223 = vld [vmem:[%s2 + $0x18] sm:$0xf]
      %v2224 = vld [vmem:[%s2 + $0x1c] sm:$0xf]
      %v2225 = vld [vmem:[%s2 + $0x20] sm:$0xf]
      %v2226 = vld [vmem:[%s2 + $0x24] sm:$0xf]
      %v2227 = vld [vmem:[%s2 + $0x28] sm:$0xf]
      %v2228 = vld [vmem:[%s2 + $0x2c] sm:$0xf]
      %v2229 = vld [vmem:[%s2 + $0x30] sm:$0xf]
      %v2230 = vld [vmem:[%s2 + $0x34] sm:$0xf]
      %v2231 = vld [vmem:[%s2 + $0x38] sm:$0xf]
      %v2232 = vld [vmem:[%s2 + $0x3c] sm:$0xf]
      %v2241 = vunpack.c.l.b16 %v2209
      %v2242 = vunpack.c.l.b16 %v2210
      %v2243 = vunpack.c.l.b16 %v2211
      %v2244 = vunpack.c.l.b16 %v2212
      %v2245 = vunpack.c.l.b16 %v2213
      %v2246 = vunpack.c.l.b16 %v2214
      %v2247 = vunpack.c.l.b16 %v2215
      %v2248 = vunpack.c.l.b16 %v2216
      %v2249 = vpack.c.b16 %v2242, %v2241
      %v2250 = vpack.c.b16 %v2244, %v2243
      %v2251 = vpack.c.b16 %v2246, %v2245
      %v2252 = vpack.c.b16 %v2248, %v2247
      %v2273 = vunpack.c.l.b16 %v2217
      %v2274 = vunpack.c.l.b16 %v2218
      %v2275 = vunpack.c.l.b16 %v2219
      %v2276 = vunpack.c.l.b16 %v2220
      %v2277 = vunpack.c.l.b16 %v2221
      %v2278 = vunpack.c.l.b16 %v2222
      %v2279 = vunpack.c.l.b16 %v2223
      %v2280 = vunpack.c.l.b16 %v2224
      %v2281 = vunpack.c.l.b16 %v2225
      %v2282 = vunpack.c.l.b16 %v2226
      %v2283 = vunpack.c.l.b16 %v2227
      %v2284 = vunpack.c.l.b16 %v2228
      %v2285 = vunpack.c.l.b16 %v2229
      %v2286 = vunpack.c.l.b16 %v2230
      %v2287 = vunpack.c.l.b16 %v2231
      %v2288 = vunpack.c.l.b16 %v2232
      %v2289 = vpack.c.b16 %v2274, %v2273
      %v2290 = vpack.c.b16 %v2276, %v2275
      %v2291 = vpack.c.b16 %v2278, %v2277
      %v2292 = vpack.c.b16 %v2280, %v2279
      %v2293 = vpack.c.b16 %v2282, %v2281
      %v2294 = vpack.c.b16 %v2284, %v2283
      %v2295 = vpack.c.b16 %v2286, %v2285
      %v2296 = vpack.c.b16 %v2288, %v2287
      %2305 = vmatprep.subr.bf16.mxu0 0
      %2306 = vmatpush1.bf16.msra.mxu0 %v2289
      %2307 = vmatprep.subr.bf16.mxu0 0
      %2308 = vmatpush1.bf16.msra.mxu0 %v2290
      %2309 = vmatprep.subr.bf16.mxu0 0
      %2310 = vmatpush1.bf16.msra.mxu0 %v2291
      %2311 = vmatprep.subr.bf16.mxu0 0
      %2312 = vmatpush1.bf16.msra.mxu0 %v2292
      %2313 = vmatprep.subr.bf16.mxu0 0
      %2314 = vmatpush1.bf16.msra.mxu0 %v2293
      %2315 = vmatprep.subr.bf16.mxu0 0
      %2316 = vmatpush1.bf16.msra.mxu0 %v2294
      %2317 = vmatprep.subr.bf16.mxu0 0
      %2318 = vmatpush1.bf16.msra.mxu0 %v2295
      %2319 = vmatprep.subr.bf16.mxu0 0
      %2320 = vmatpush1.bf16.msra.mxu0 %v2296
      %2321 = vmatprep.subr.bf16.mxu0 0
      %2322 = vmatpush1.bf16.msra.mxu0 0
      %2323 = vmatprep.subr.bf16.mxu0 0
      %2324 = vmatpush1.bf16.msra.mxu0 0
      %2325 = vmatprep.subr.bf16.mxu0 0
      %2326 = vmatpush1.bf16.msra.mxu0 0
      %2327 = vmatprep.subr.bf16.mxu0 0
      %2328 = vmatpush1.bf16.msra.mxu0 0
      %2329 = vmatprep.subr.bf16.mxu0 0
      %2330 = vmatpush1.bf16.msra.mxu0 0
      %2331 = vmatprep.subr.bf16.mxu0 0
      %2332 = vmatpush1.bf16.msra.mxu0 0
      %2333 = vmatprep.subr.bf16.mxu0 0
      %2334 = vmatpush1.bf16.msra.mxu0 0
      %2335 = vmatprep.subr.bf16.mxu0 0
      %2336 = vmatpush1.bf16.msra.mxu0 0
      %2337 = vmatprep.mubr.bf16.mxu0 0
      %2338 = vmatmul.mubr.bf16.gmra.mrb[0].mxu0 %v2249
      %v2339 = vpop.f32.mrb[0].mxu0
      %v2340 = vadd.f32 0.0, %v2339
      %v2341 = vpop.f32.mrb[0].mxu0
      %v2342 = vpop.f32.mrb[0].mxu0
      %v2343 = vadd.f32 0.0, %v2342
      %v2344 = vpop.f32.mrb[0].mxu0
      %2345 = vmatprep.mubr.bf16.mxu0 0
      %2346 = vmatmul.mubr.bf16.gmra.mrb[0].mxu0 %v2250
      %v2347 = vpop.f32.mrb[0].mxu0
      %v2348 = vadd.f32 0.0, %v2347
      %v2349 = vpop.f32.mrb[0].mxu0
      %v2350 = vpop.f32.mrb[0].mxu0
      %v2351 = vadd.f32 0.0, %v2350
      %v2352 = vpop.f32.mrb[0].mxu0
      %2353 = vmatprep.mubr.bf16.mxu0 0
      %2354 = vmatmul.mubr.bf16.gmra.mrb[0].mxu0 %v2251
      %v2355 = vpop.f32.mrb[0].mxu0
      %v2356 = vadd.f32 0.0, %v2355
      %v2357 = vpop.f32.mrb[0].mxu0
      %v2358 = vpop.f32.mrb[0].mxu0
      %v2359 = vadd.f32 0.0, %v2358
      %v2360 = vpop.f32.mrb[0].mxu0
      %2361 = vmatprep.mubr.bf16.mxu0 0
      %2362 = vmatmul.mubr.bf16.gmra.mrb[0].mxu0 %v2252
      %v2363 = vpop.f32.mrb[0].mxu0
      %v2364 = vadd.f32 0.0, %v2363
      %v2365 = vpop.f32.mrb[0].mxu0
      %v2366 = vpop.f32.mrb[0].mxu0
      %v2367 = vadd.f32 0.0, %v2366
      %v2368 = vpop.f32.mrb[0].mxu0
      %2369 = vdwg.mxu0
      %v2370 = vpack.c.bf16 %v2340, %v2340
      %v2371 = vpack.c.bf16 %v2343, %v2343
      %v2372 = vpack.c.bf16 %v2348, %v2348
      %v2373 = vpack.c.bf16 %v2351, %v2351
      %v2374 = vpack.c.bf16 %v2356, %v2356
      %v2375 = vpack.c.bf16 %v2359, %v2359
      %v2376 = vpack.c.bf16 %v2364, %v2364
      %v2377 = vpack.c.bf16 %v2367, %v2367
      %2378 = vst [vmem:[%s280] sm:$0xf] %v2370
      %2379 = vst [vmem:[%s280 + $0x4] sm:$0xf] %v2371
      %2380 = vst [vmem:[%s280 + $0x8] sm:$0xf] %v2372
      %2381 = vst [vmem:[%s280 + $0xc] sm:$0xf] %v2373
      %2382 = vst [vmem:[%s280 + $0x10] sm:$0xf] %v2374
      %2383 = vst [vmem:[%s280 + $0x14] sm:$0xf] %v2375
      %2384 = vst [vmem:[%s280 + $0x18] sm:$0xf] %v2376
      %2385 = vst [vmem:[%s280 + $0x1c] sm:$0xf] %v2377
      %v2386 = vadd.f32 %v2340, %v2343
      %v2387 = vadd.f32 %v2386, %v2348
      %v2388 = vadd.f32 %v2387, %v2351
      %v2389 = vadd.f32 %v2388, %v2356
      %v2390 = vadd.f32 %v2389, %v2359
      %v2391 = vadd.f32 %v2390, %v2364
      %v2392 = vadd.f32 %v2391, %v2367
      %v2393 = vrot.slane %v2392, 4
      %v2394 = vadd.f32 %v2392, %v2393
      %v2395 = vrot.slane %v2394, 2
      %v2396 = vadd.f32 %v2394, %v2395
      %v2397 = vrot.slane %v2396, 1
      %v2398 = vadd.f32 %v2396, %v2397
      %v2399 = vmul.f32 %v2340, %v2340
      %v2400 = vmul.f32 %v2343, %v2343
      %v2401 = vmul.f32 %v2348, %v2348
      %v2402 = vmul.f32 %v2351, %v2351
      %v2403 = vmul.f32 %v2356, %v2356
      %v2404 = vmul.f32 %v2359, %v2359
      %v2405 = vmul.f32 %v2364, %v2364
      %v2406 = vmul.f32 %v2367, %v2367
      %v2407 = vadd.f32 %v2399, %v2400
      %v2408 = vadd.f32 %v2407, %v2401
      %v2409 = vadd.f32 %v2408, %v2402
      %v2410 = vadd.f32 %v2409, %v2403
      %v2411 = vadd.f32 %v2410, %v2404
      %v2412 = vadd.f32 %v2411, %v2405
      %v2413 = vadd.f32 %v2412, %v2406
      %v2414 = vrot.slane %v2413, 4
      %v2415 = vadd.f32 %v2413, %v2414
      %v2416 = vrot.slane %v2415, 2
      %v2417 = vadd.f32 %v2415, %v2416
      %v2418 = vrot.slane %v2417, 1
      %v2419 = vadd.f32 %v2417, %v2418
      %v2420 = vsel %vm2207, %v2398, %v2419
      %v2421 = vadd.f32 %v2208, 0.0
      %v2422 = vadd.f32 %v2420, 0.0
      %2423 = vst [vmem:[%s275] sm:$0x3] %v2421
      %2424 = vst [vmem:[%s284] sm:$0x3] %v2422
      %p2425 = scmp.lt.s32.totalorder %s18, 1
      %s2426 = scalar_select %p2425, %s18, 1
      %s2427 = smul.addr %s2426, 8
      %s2428 = smul.addr %s2427, 4
      %s2429 = scalar_lea.vmem %s3, %s2428
      %p2430 = scmp.lt.s32.totalorder %s18, 1
      %s2431 = scalar_select %p2430, %s18, 1
      %s2432 = smul.addr %s2431, 2
      %s2433 = scalar_lea.vmem %s4, %s2432
      %p2434 = scmp.lt.s32.totalorder %s18, 1
      %s2435 = scalar_select %p2434, %s18, 1
      %s2436 = smul.addr %s2435, 8
      %s2437 = smul.addr %s2436, 4
      %s2438 = scalar_lea.vmem %s5, %s2437
      %p2439 = scmp.lt.s32.totalorder %s18, 1
      %s2440 = scalar_select %p2439, %s18, 1
      %s2441 = smul.addr %s2440, 2
      %s2442 = scalar_lea.vmem %s6, %s2441
      // Predicated region
      $region33: #{basic_block_forward.3} parent=31 // pred_check
        %p2443 = pneg %p104
      $region34: #{basic_block_forward.3} parent=31 // pred_check_branch
        %2445 = sbr.rel (%p2443) target = $region36
      $region35: #{basic_block_forward.3} parent=31 // pred_region
        _
      $region36: #{basic_block_forward.3} parent=31 // pred_fallthru
        _
      // Predicated region
      $region37: #{basic_block_forward.3} parent=31 // pred_check
        %p2446 = pneg %p130
      $region38: #{basic_block_forward.3} parent=31 // pred_check_branch
        %2448 = sbr.rel (%p2446) target = $region40
      $region39: #{basic_block_forward.3} parent=31 // pred_region
        _
      $region40: #{basic_block_forward.3} parent=31 // pred_fallthru
        _
      // Predicated region
      $region41: #{basic_block_forward.3} parent=31 // pred_check
        %p2449 = pneg %p156
      $region42: #{basic_block_forward.3} parent=31 // pred_check_branch
        %2451 = sbr.rel (%p2449) target = $region44
      $region43: #{basic_block_forward.3} parent=31 // pred_region
        _
      $region44: #{basic_block_forward.3} parent=31 // pred_fallthru
        _
      // Predicated region
      $region45: #{basic_block_forward.3} parent=31 // pred_check
        %p2452 = pneg %p182
      $region46: #{basic_block_forward.3} parent=31 // pred_check_branch
        %2454 = sbr.rel (%p2452) target = $region48
      $region47: #{basic_block_forward.3} parent=31 // pred_region
        _
      $region48: #{basic_block_forward.3} parent=31 // pred_fallthru
        _
    $region32: #{basic_block_forward.3} parent=5 // pred_fallthru
      _
    %p2455 = scmp.le.s32.totalorder 2, %s13
    // Predicated region
    $region49: #{basic_block_forward.3} parent=5 // pred_check
      %p2456 = pneg %p2455
    $region50: #{basic_block_forward.3} parent=5 // pred_check_branch
      %2458 = sbr.rel (%p2456) target = $region52
    $region51: #{basic_block_forward.3} parent=5 // pred_region
      %s2459 = ssub.s32 %s13, 2
      // Predicated region
      $region53: #{basic_block_forward.3} parent=51 // pred_check
        %p2460 = pneg %p110
      $region54: #{basic_block_forward.3} parent=51 // pred_check_branch
        %2462 = sbr.rel (%p2460) target = $region56
      $region55: #{basic_block_forward.3} parent=51 // pred_region
        %p2463 = scmp.lt.s32.totalorder %s19, 1
        %s2464 = scalar_select %p2463, %s19, 1
        %s2465 = smul.addr %s2464, 8
        %s2466 = smul.addr %s2465, 4
        %s2467 = scalar_lea.vmem %s3, %s2466
      $region56: #{basic_block_forward.3} parent=51 // pred_fallthru
        _
      // Predicated region
      $region57: #{basic_block_forward.3} parent=51 // pred_check
        %p2468 = pneg %p136
      $region58: #{basic_block_forward.3} parent=51 // pred_check_branch
        %2470 = sbr.rel (%p2468) target = $region60
      $region59: #{basic_block_forward.3} parent=51 // pred_region
        %p2471 = scmp.lt.s32.totalorder %s19, 1
        %s2472 = scalar_select %p2471, %s19, 1
        %s2473 = smul.addr %s2472, 2
        %s2474 = scalar_lea.vmem %s4, %s2473
      $region60: #{basic_block_forward.3} parent=51 // pred_fallthru
        _
      // Predicated region
      $region61: #{basic_block_forward.3} parent=51 // pred_check
        %p2475 = pneg %p162
      $region62: #{basic_block_forward.3} parent=51 // pred_check_branch
        %2477 = sbr.rel (%p2475) target = $region64
      $region63: #{basic_block_forward.3} parent=51 // pred_region
        %p2478 = scmp.lt.s32.totalorder %s19, 1
        %s2479 = scalar_select %p2478, %s19, 1
        %s2480 = smul.addr %s2479, 8
        %s2481 = smul.addr %s2480, 4
        %s2482 = scalar_lea.vmem %s5, %s2481
      $region64: #{basic_block_forward.3} parent=51 // pred_fallthru
        _
      // Predicated region
      $region65: #{basic_block_forward.3} parent=51 // pred_check
        %p2483 = pneg %p188
      $region66: #{basic_block_forward.3} parent=51 // pred_check_branch
        %2485 = sbr.rel (%p2483) target = $region68
      $region67: #{basic_block_forward.3} parent=51 // pred_region
        %p2486 = scmp.lt.s32.totalorder %s19, 1
        %s2487 = scalar_select %p2486, %s19, 1
        %s2488 = smul.addr %s2487, 2
        %s2489 = scalar_lea.vmem %s6, %s2488
      $region68: #{basic_block_forward.3} parent=51 // pred_fallthru
        _
    $region52: #{basic_block_forward.3} parent=5 // pred_fallthru
      _
  $region6: #{basic_block_forward.3} parent=0 // loop_footer
    %s17 = sadd.s32 1, %s13
  $region7: #{basic_block_forward.3} parent=0 // loop_footer_branch
    %12 = sbr.rel target = $region3
  $region8: #{basic_block_forward.3} parent=0 // loop_exit
    _

</llo_original>
